<compile_context>
chip_gen: v5e
topology: v5e:2x2
jax: 0.10.0
libtpu: 0.0.40
codegen_flags: <defaults>
</compile_context>

<pallas_src>
import functools

import jax
import jax.numpy as jnp
from jax.experimental import pallas as pl
from jax.experimental.pallas import tpu as pltpu

CATE1_CNT = 20
CLS_PAD = 128                # lane-dense padded classifier width (>= CATE1_CNT)
BN_EPS = 1e-5                # PyTorch BatchNorm1d default eps
MAX_PAD = 2                  # max(k // 2) over the two GLU kernel sizes (3, 5)
MATMUL_DTYPE = jnp.bfloat16  # MXU input dtype (f32 accumulation everywhere)


def _round_up(x, m):
    return ((x + m - 1) // m) * m


def _device_defaults():
    """Per-generation (batch-tile target, vmem_limit_bytes or None, bf16 sigmoid)."""
    try:
        kind = jax.devices()[0].device_kind.lower()
    except Exception:
        kind = ""
    if "v7" in kind:                                   # 64 MiB VMEM / TC
        return 16, 48 * 2**20, True
    if "v6" in kind:                                   # 128 MiB VMEM
        return 32, 96 * 2**20, True
    if "v5e" in kind or "v5 lite" in kind or "v5lite" in kind:
        return 32, 96 * 2**20, False                   # no bf16 EUP/VPU on v5e
    if "v5" in kind or "v4" in kind:                   # v5p / v4: 128 MiB VMEM
        return 32, 96 * 2**20, True
    return 8, None, False                              # unknown (v2/v3/...): conservative


def fused_forward_kernel(title_ref, desc_ref, ws_ref, we_ref, bglu_ref,
                         wfc_ref, bfc_ref, wclf_ref, bclf_ref, out_ref,
                         *, lt, lt_out, ld, ld_out, dp, bf16_gate):
    """Whole Cate1Classifier forward for one batch tile.

    title_ref/desc_ref: (bt, Lout + 2*MAX_PAD, dp) zero-padded bf16 embeddings
    ws_ref:             (3*dp, 4*dp) shared-tap weights [lin3|gate3|lin5|gate5]
    we_ref:             (2*dp, 2*dp) k=5-only edge-tap weights [lin5|gate5]
    bglu_ref:           (1, 4*dp)    fused GLU biases (f32)
    wfc_ref/bfc_ref:    (4*dp, Hp)/(1, Hp) fc with BN1+BN2 folded in
    wclf_ref/bclf_ref:  (Hp, CLS_PAD)/(1, CLS_PAD) zero-padded classifier
    out_ref:            (bt, CLS_PAD) logits (cols >= CATE1_CNT are zero)
    """

    def glu_pair_max(x_ref, L, Lout):
        """(bt, 2*dp) = [max-over-seq GLU(k=3) | GLU(k=5)] for one input."""
        bt = x_ref.shape[0]
        M = bt * Lout

        # Interior positions p=1..3 are shared by both branches: one fused
        # (dp, 4*dp) matmul per position, accumulated in f32.
        acc = jnp.zeros((M, 4 * dp), jnp.float32)
        for j, p in enumerate((1, 2, 3)):
            xs = x_ref[:, p:p + Lout, :].reshape(M, dp)     # free: Lout%8==0, dp%128==0
            acc = acc + jnp.dot(xs, ws_ref[j * dp:(j + 1) * dp, :],
                                preferred_element_type=jnp.float32)
        # k=5-only edge taps (positions 0 and 4).
        edge = jnp.zeros((M, 2 * dp), jnp.float32)
        for j, p in enumerate((0, 4)):
            xs = x_ref[:, p:p + Lout, :].reshape(M, dp)
            edge = edge + jnp.dot(xs, we_ref[j * dp:(j + 1) * dp, :],
                                  preferred_element_type=jnp.float32)

        ab = acc + bglu_ref[...]                            # (M, 4*dp)
        lin3, gate3 = ab[:, :dp], ab[:, dp:2 * dp]          # 128-aligned lane slices
        lin5 = ab[:, 2 * dp:3 * dp] + edge[:, :dp]
        gate5 = ab[:, 3 * dp:] + edge[:, dp:]
        if bf16_gate:                                       # bf16 EUP path (v6e/v7x)
            gate3 = gate3.astype(jnp.bfloat16)
            gate5 = gate5.astype(jnp.bfloat16)
        g3 = lin3 * jax.nn.sigmoid(gate3).astype(jnp.float32)
        g5 = lin5 * jax.nn.sigmoid(gate5).astype(jnp.float32)

        g = jnp.concatenate([g3, g5], axis=-1).reshape(bt, Lout, 2 * dp)
        if Lout != L:                                       # mask padded positions
            valid = jax.lax.broadcasted_iota(jnp.int32, (1, Lout, 1), 1) < L
            g = jnp.where(valid, g, -jnp.inf)
        return jnp.max(g, axis=1)                           # (bt, 2*dp)

    tvec = glu_pair_max(title_ref, lt, lt_out)              # [title-k3 | title-k5]
    dvec = glu_pair_max(desc_ref, ld, ld_out)               # [desc-k3  | desc-k5 ]

    # Head: (BN1 folded) fc -> (BN2 folded) -> relu -> clf.  wfc row blocks were
    # pre-permuted to [t-k3 | t-k5 | d-k3 | d-k5] so the concat is lane-aligned
    # and the fc is a single wide-K matmul.
    feats = jnp.concatenate([tvec, dvec], axis=-1)          # (bt, 4*dp)
    h = jnp.dot(feats.astype(MATMUL_DTYPE), wfc_ref[...],
                preferred_element_type=jnp.float32) + bfc_ref[...]
    h = jnp.maximum(h, 0.0)
    logits = jnp.dot(h.astype(MATMUL_DTYPE), wclf_ref[...],
                     preferred_element_type=jnp.float32) + bclf_ref[...]
    out_ref[...] = logits                                   # (bt, 128) unmasked store


def init_params(key, vocab, emb_dim, h_d):
    ks = jax.random.split(key, 8)

    def xavier(k, shape, fan_in, fan_out):
        return jax.random.normal(k, shape, jnp.float32) * jnp.sqrt(2.0 / (fan_in + fan_out))

    emb = jax.random.normal(ks[0], (vocab, emb_dim), jnp.float32) * 0.1
    emb = emb.at[0].set(0.0)  # nn.Embedding(padding_idx=0)

    def bn_state(n):
        # BatchNorm1d defaults: weight=1, bias=0, running_mean=0, running_var=1
        return jnp.stack([jnp.ones((n,)), jnp.zeros((n,)),
                          jnp.zeros((n,)), jnp.ones((n,))]).astype(jnp.float32)

    def conv(k, kern):
        # (K, D_in, D_out) tap-major; PyTorch Conv1d xavier fan = channels * K
        return xavier(k, (kern, emb_dim, emb_dim), kern * emb_dim, kern * emb_dim)

    return dict(
        embedding=emb,
        glu1_wa=conv(ks[1], 3), glu1_ba=jnp.zeros((emb_dim,), jnp.float32),
        glu1_wb=conv(ks[2], 3), glu1_bb=jnp.zeros((emb_dim,), jnp.float32),
        glu2_wa=conv(ks[3], 5), glu2_ba=jnp.zeros((emb_dim,), jnp.float32),
        glu2_wb=conv(ks[4], 5), glu2_bb=jnp.zeros((emb_dim,), jnp.float32),
        fc_w=xavier(ks[5], (emb_dim * 4, h_d), emb_dim * 4, h_d),
        fc_b=jnp.zeros((h_d,), jnp.float32),
        clf_w=xavier(ks[6], (h_d, CATE1_CNT), h_d, CATE1_CNT),
        clf_b=jnp.zeros((CATE1_CNT,), jnp.float32),
        bn1=bn_state(emb_dim * 4),
        bn2=bn_state(h_d),
    )


def cate1_classifier_forward(params, title, desc, *, batch_block=None):
    emb = params["embedding"]
    D = emb.shape[1]
    B, Lt = title.shape
    _, Ld = desc.shape
    H = params["fc_w"].shape[1]

    Dp = _round_up(D, 128)        # lane-aligned embedding dim
    Hp = _round_up(H, 128)        # lane-aligned hidden dim
    Lt_out = _round_up(Lt, 8)     # conv-output rows (multiple of 8 -> free reshapes)
    Ld_out = _round_up(Ld, 8)

    bt_target, vmem_limit, bf16_gate = _device_defaults()
    bt = batch_block if batch_block is not None else min(bt_target, _round_up(B, 8))
    B_pad = _round_up(B, bt)

    # ---- trace-time glue: embedding gather + padding + parameter folding ----
    def embed_pad(tok, L, Lout):
        tok = jnp.pad(tok, ((0, B_pad - B), (0, 0)))        # pad batch (token 0 -> zero row)
        v = jnp.take(emb, tok, axis=0)                      # (B_pad, L, D)
        v = jnp.pad(v, ((0, 0), (MAX_PAD, MAX_PAD + Lout - L), (0, Dp - D)))
        return v.astype(MATMUL_DTYPE)                       # (B_pad, Lout + 4, Dp)

    title_p = embed_pad(title, Lt, Lt_out)
    desc_p = embed_pad(desc, Ld, Ld_out)

    def pad_tap(w):                                         # (D, D) -> (Dp, Dp)
        return jnp.pad(w, ((0, Dp - D), (0, Dp - D)))

    def pad_vec(b):                                         # (D,) -> (Dp,)
        return jnp.pad(b, (0, Dp - D))

    w3a, w3b = params["glu1_wa"], params["glu1_wb"]         # (3, D, D) linear / gate
    w5a, w5b = params["glu2_wa"], params["glu2_wb"]         # (5, D, D)

    # Shared interior positions p=1..3 (k=3 tap p-1, k=5 tap p): (3*Dp, 4*Dp).
    w_shared = jnp.concatenate([
        jnp.concatenate([pad_tap(w3a[p - 1]), pad_tap(w3b[p - 1]),
                         pad_tap(w5a[p]), pad_tap(w5b[p])], axis=1)
        for p in (1, 2, 3)], axis=0)
    # k=5-only edge positions p=0,4: (2*Dp, 2*Dp).
    w_edge = jnp.concatenate([
        jnp.concatenate([pad_tap(w5a[p]), pad_tap(w5b[p])], axis=1)
        for p in (0, 4)], axis=0)
    b_glu = jnp.concatenate([pad_vec(params["glu1_ba"]), pad_vec(params["glu1_bb"]),
                             pad_vec(params["glu2_ba"]), pad_vec(params["glu2_bb"])]
                            ).reshape(1, 4 * Dp)

    # Fold BN1 (pre-fc) and BN2 (post-fc) into fc (inference / running stats).
    # TODO(synk): BatchNorm train-mode batch statistics are not reproduced.
    def bn_scale_shift(bn):
        g, be, m, v = bn[0], bn[1], bn[2], bn[3]
        s = g * jax.lax.rsqrt(v + BN_EPS)
        return s, be - m * s

    s1, sh1 = bn_scale_shift(params["bn1"])
    s2, sh2 = bn_scale_shift(params["bn2"])
    wfc_fold = (params["fc_w"] * s1[:, None]) * s2[None, :]         # (4*D, H)
    bfc_fold = (sh1 @ params["fc_w"] + params["fc_b"]) * s2 + sh2   # (H,)

    # Pad fc to (4*Dp, Hp); permute row blocks so the in-kernel feature order
    # [title-k3 | title-k5 | desc-k3 | desc-k5] matches PyTorch's concat order
    # [title1, desc1, title2, desc2].
    wfc = jnp.zeros((4 * Dp, Hp), jnp.float32)
    for dst, src in enumerate((0, 2, 1, 3)):
        wfc = wfc.at[dst * Dp:dst * Dp + D, :H].set(wfc_fold[src * D:(src + 1) * D, :])
    bfc = jnp.zeros((1, Hp), jnp.float32).at[0, :H].set(bfc_fold)

    wclf = jnp.zeros((Hp, CLS_PAD), jnp.float32).at[:H, :CATE1_CNT].set(params["clf_w"])
    bclf = jnp.zeros((1, CLS_PAD), jnp.float32).at[0, :CATE1_CNT].set(params["clf_b"])

    # ---- fused Pallas call: grid over batch tiles (parallel across cores) ----
    kernel = functools.partial(fused_forward_kernel,
                               lt=Lt, lt_out=Lt_out, ld=Ld, ld_out=Ld_out,
                               dp=Dp, bf16_gate=bf16_gate)

    # Constant weights: whole-array VMEM residents (no pipelining / double buffer).
    resident = pl.BlockSpec(memory_space=pltpu.MemorySpace.VMEM)

    cp_kwargs = dict(dimension_semantics=("parallel",))
    if vmem_limit is not None:
        cp_kwargs["vmem_limit_bytes"] = vmem_limit

    # TODO(synk): at production L/D sizes also tile the sequence axis inside the
    # kernel (running max over L-chunks) so the f32 (bt*Lout, 4*Dp) accumulator
    # stays within v7x's 64 MiB VMEM.
    out = pl.pallas_call(
        kernel,
        out_shape=jax.ShapeDtypeStruct((B_pad, CLS_PAD), jnp.float32),
        grid_spec=pltpu.PrefetchScalarGridSpec(
            num_scalar_prefetch=0,
            grid=(B_pad // bt,),
            in_specs=[
                pl.BlockSpec((bt, Lt_out + 2 * MAX_PAD, Dp), lambda i: (i, 0, 0)),
                pl.BlockSpec((bt, Ld_out + 2 * MAX_PAD, Dp), lambda i: (i, 0, 0)),
                resident,  # w_shared
                resident,  # w_edge
                resident,  # b_glu
                resident,  # wfc
                resident,  # bfc
                resident,  # wclf
                resident,  # bclf
            ],
            out_specs=pl.BlockSpec((bt, CLS_PAD), lambda i: (i, 0)),
        ),
        compiler_params=pltpu.CompilerParams(**cp_kwargs),
    )(title_p, desc_p,
      w_shared.astype(MATMUL_DTYPE), w_edge.astype(MATMUL_DTYPE), b_glu,
      wfc.astype(MATMUL_DTYPE), bfc, wclf.astype(MATMUL_DTYPE), bclf)

    return out[:B, :CATE1_CNT]


if __name__ == "__main__":
    key = jax.random.PRNGKey(0)
    B, L_TITLE, L_DESC, EMB_DIM, H_D, VOCAB = 2, 8, 12, 32, 32, 50

    pkey, tkey, dkey = jax.random.split(key, 3)
    params = init_params(pkey, VOCAB, EMB_DIM, H_D)
    title = jax.random.randint(tkey, (B, L_TITLE), 0, VOCAB, dtype=jnp.int32)
    desc = jax.random.randint(dkey, (B, L_DESC), 0, VOCAB, dtype=jnp.int32)

    out = jax.jit(cate1_classifier_forward)(params, title, desc)
    out = jax.block_until_ready(out)
    assert out.shape == (B, CATE1_CNT) and out.dtype == jnp.float32
    print("KERNEL_OK")
</pallas_src>

<mosaic_0001>
module attributes {stable_mosaic.version = 11 : i64} {
  func.func @fused_forward_kernel(%arg0: i32, %arg1: memref<8x12x128xbf16, #tpu.memory_space<vmem>>, %arg2: memref<8x20x128xbf16, #tpu.memory_space<vmem>>, %arg3: memref<384x512xbf16, #tpu.memory_space<vmem>>, %arg4: memref<256x256xbf16, #tpu.memory_space<vmem>>, %arg5: memref<1x512xf32, #tpu.memory_space<vmem>>, %arg6: memref<512x128xbf16, #tpu.memory_space<vmem>>, %arg7: memref<1x128xf32, #tpu.memory_space<vmem>>, %arg8: memref<128x128xbf16, #tpu.memory_space<vmem>>, %arg9: memref<1x128xf32, #tpu.memory_space<vmem>>, %arg10: memref<8x128xf32, #tpu.memory_space<vmem>>) attributes {dimension_semantics = [#tpu.dimension_semantics<parallel>], iteration_bounds = array<i64: 1>, scalar_prefetch = 0 : i64, scratch_operands = 0 : i64, tpu.core_type = #tpu.core_type<tc>, window_params = [{transform_indices = @transform_0, window_bounds = array<i64: 8, 12, 128>}, {transform_indices = @transform_1, window_bounds = array<i64: 8, 20, 128>}, {pipeline_mode = #tpu.pipeline_mode<synchronous>, transform_indices = @transform_2, window_bounds = array<i64: 384, 512>}, {pipeline_mode = #tpu.pipeline_mode<synchronous>, transform_indices = @transform_3, window_bounds = array<i64: 256, 256>}, {pipeline_mode = #tpu.pipeline_mode<synchronous>, transform_indices = @transform_4, window_bounds = array<i64: 1, 512>}, {pipeline_mode = #tpu.pipeline_mode<synchronous>, transform_indices = @transform_5, window_bounds = array<i64: 512, 128>}, {pipeline_mode = #tpu.pipeline_mode<synchronous>, transform_indices = @transform_6, window_bounds = array<i64: 1, 128>}, {pipeline_mode = #tpu.pipeline_mode<synchronous>, transform_indices = @transform_7, window_bounds = array<i64: 128, 128>}, {pipeline_mode = #tpu.pipeline_mode<synchronous>, transform_indices = @transform_8, window_bounds = array<i64: 1, 128>}, {transform_indices = @transform_9, window_bounds = array<i64: 8, 128>}]} {
    %cst = arith.constant 0.000000e+00 : f32
    %0 = vector.broadcast %cst : f32 to vector<64x512xf32>
    %c0 = arith.constant 0 : index
    %c1 = arith.constant 1 : index
    %c0_0 = arith.constant 0 : index
    %1 = vector.load %arg1[%c0, %c1, %c0_0] : memref<8x12x128xbf16, #tpu.memory_space<vmem>>, vector<8x8x128xbf16>
    %2 = vector.shape_cast %1 : vector<8x8x128xbf16> to vector<64x128xbf16>
    %c0_1 = arith.constant 0 : index
    %c0_2 = arith.constant 0 : index
    %3 = vector.load %arg3[%c0_1, %c0_2] : memref<384x512xbf16, #tpu.memory_space<vmem>>, vector<128x512xbf16>
    %cst_3 = arith.constant dense<0.000000e+00> : vector<64x512xf32>
    %4 = tpu.matmul %2, %3, %cst_3 {dimension_numbers = #tpu.dot_dimension_numbers<[1], [0], [0], [1], [0, 0, 1, 1], [], []>} : vector<64x128xbf16>, vector<128x512xbf16>, vector<64x512xf32> -> vector<64x512xf32>
    %5 = arith.addf %0, %4 : vector<64x512xf32>
    %c0_4 = arith.constant 0 : index
    %c2 = arith.constant 2 : index
    %c0_5 = arith.constant 0 : index
    %6 = vector.load %arg1[%c0_4, %c2, %c0_5] : memref<8x12x128xbf16, #tpu.memory_space<vmem>>, vector<8x8x128xbf16>
    %7 = vector.shape_cast %6 : vector<8x8x128xbf16> to vector<64x128xbf16>
    %c128 = arith.constant 128 : index
    %c0_6 = arith.constant 0 : index
    %8 = vector.load %arg3[%c128, %c0_6] : memref<384x512xbf16, #tpu.memory_space<vmem>>, vector<128x512xbf16>
    %cst_7 = arith.constant dense<0.000000e+00> : vector<64x512xf32>
    %9 = tpu.matmul %7, %8, %cst_7 {dimension_numbers = #tpu.dot_dimension_numbers<[1], [0], [0], [1], [0, 0, 1, 1], [], []>} : vector<64x128xbf16>, vector<128x512xbf16>, vector<64x512xf32> -> vector<64x512xf32>
    %10 = arith.addf %5, %9 : vector<64x512xf32>
    %c0_8 = arith.constant 0 : index
    %c3 = arith.constant 3 : index
    %c0_9 = arith.constant 0 : index
    %11 = vector.load %arg1[%c0_8, %c3, %c0_9] : memref<8x12x128xbf16, #tpu.memory_space<vmem>>, vector<8x8x128xbf16>
    %12 = vector.shape_cast %11 : vector<8x8x128xbf16> to vector<64x128xbf16>
    %c256 = arith.constant 256 : index
    %c0_10 = arith.constant 0 : index
    %13 = vector.load %arg3[%c256, %c0_10] : memref<384x512xbf16, #tpu.memory_space<vmem>>, vector<128x512xbf16>
    %cst_11 = arith.constant dense<0.000000e+00> : vector<64x512xf32>
    %14 = tpu.matmul %12, %13, %cst_11 {dimension_numbers = #tpu.dot_dimension_numbers<[1], [0], [0], [1], [0, 0, 1, 1], [], []>} : vector<64x128xbf16>, vector<128x512xbf16>, vector<64x512xf32> -> vector<64x512xf32>
    %15 = arith.addf %10, %14 : vector<64x512xf32>
    %cst_12 = arith.constant 0.000000e+00 : f32
    %16 = vector.broadcast %cst_12 : f32 to vector<64x256xf32>
    %c0_13 = arith.constant 0 : index
    %c0_14 = arith.constant 0 : index
    %c0_15 = arith.constant 0 : index
    %17 = vector.load %arg1[%c0_13, %c0_14, %c0_15] : memref<8x12x128xbf16, #tpu.memory_space<vmem>>, vector<8x8x128xbf16>
    %18 = vector.shape_cast %17 : vector<8x8x128xbf16> to vector<64x128xbf16>
    %c0_16 = arith.constant 0 : index
    %c0_17 = arith.constant 0 : index
    %19 = vector.load %arg4[%c0_16, %c0_17] : memref<256x256xbf16, #tpu.memory_space<vmem>>, vector<128x256xbf16>
    %cst_18 = arith.constant dense<0.000000e+00> : vector<64x256xf32>
    %20 = tpu.matmul %18, %19, %cst_18 {dimension_numbers = #tpu.dot_dimension_numbers<[1], [0], [0], [1], [0, 0, 1, 1], [], []>} : vector<64x128xbf16>, vector<128x256xbf16>, vector<64x256xf32> -> vector<64x256xf32>
    %21 = arith.addf %16, %20 : vector<64x256xf32>
    %c0_19 = arith.constant 0 : index
    %c4 = arith.constant 4 : index
    %c0_20 = arith.constant 0 : index
    %22 = vector.load %arg1[%c0_19, %c4, %c0_20] : memref<8x12x128xbf16, #tpu.memory_space<vmem>>, vector<8x8x128xbf16>
    %23 = vector.shape_cast %22 : vector<8x8x128xbf16> to vector<64x128xbf16>
    %c128_21 = arith.constant 128 : index
    %c0_22 = arith.constant 0 : index
    %24 = vector.load %arg4[%c128_21, %c0_22] : memref<256x256xbf16, #tpu.memory_space<vmem>>, vector<128x256xbf16>
    %cst_23 = arith.constant dense<0.000000e+00> : vector<64x256xf32>
    %25 = tpu.matmul %23, %24, %cst_23 {dimension_numbers = #tpu.dot_dimension_numbers<[1], [0], [0], [1], [0, 0, 1, 1], [], []>} : vector<64x128xbf16>, vector<128x256xbf16>, vector<64x256xf32> -> vector<64x256xf32>
    %26 = arith.addf %21, %25 : vector<64x256xf32>
    %c0_24 = arith.constant 0 : index
    %c0_25 = arith.constant 0 : index
    %27 = vector.load %arg5[%c0_24, %c0_25] : memref<1x512xf32, #tpu.memory_space<vmem>>, vector<1x512xf32>
    %28 = vector.broadcast %27 : vector<1x512xf32> to vector<64x512xf32>
    %29 = arith.addf %15, %28 : vector<64x512xf32>
    %30 = vector.extract_strided_slice %29 {offsets = [0, 0], sizes = [64, 128], strides = [1, 1]} : vector<64x512xf32> to vector<64x128xf32>
    %31 = vector.extract_strided_slice %29 {offsets = [0, 128], sizes = [64, 128], strides = [1, 1]} : vector<64x512xf32> to vector<64x128xf32>
    %32 = vector.extract_strided_slice %29 {offsets = [0, 256], sizes = [64, 128], strides = [1, 1]} : vector<64x512xf32> to vector<64x128xf32>
    %33 = vector.extract_strided_slice %26 {offsets = [0, 0], sizes = [64, 128], strides = [1, 1]} : vector<64x256xf32> to vector<64x128xf32>
    %34 = arith.addf %32, %33 : vector<64x128xf32>
    %35 = vector.extract_strided_slice %29 {offsets = [0, 384], sizes = [64, 128], strides = [1, 1]} : vector<64x512xf32> to vector<64x128xf32>
    %36 = vector.extract_strided_slice %26 {offsets = [0, 128], sizes = [64, 128], strides = [1, 1]} : vector<64x256xf32> to vector<64x128xf32>
    %37 = arith.addf %35, %36 : vector<64x128xf32>
    %38 = arith.negf %31 : vector<64x128xf32>
    %39 = math.exp %38 : vector<64x128xf32>
    %cst_26 = arith.constant 1.000000e+00 : f32
    %40 = vector.broadcast %cst_26 : f32 to vector<64x128xf32>
    %41 = arith.addf %40, %39 : vector<64x128xf32>
    %42 = arith.divf %40, %41 : vector<64x128xf32>
    %43 = arith.mulf %30, %42 : vector<64x128xf32>
    %44 = arith.negf %37 : vector<64x128xf32>
    %45 = math.exp %44 : vector<64x128xf32>
    %cst_27 = arith.constant 1.000000e+00 : f32
    %46 = vector.broadcast %cst_27 : f32 to vector<64x128xf32>
    %47 = arith.addf %46, %45 : vector<64x128xf32>
    %48 = arith.divf %46, %47 : vector<64x128xf32>
    %49 = arith.mulf %34, %48 : vector<64x128xf32>
    %50 = tpu.concatenate %43, %49 in 1 : vector<64x128xf32>, vector<64x128xf32> -> vector<64x256xf32>
    %51 = vector.shape_cast %50 : vector<64x256xf32> to vector<8x8x256xf32>
    %cst_28 = arith.constant dense<0xFF800000> : vector<8x256xf32>
    %52 = vector.multi_reduction <maximumf>, %51, %cst_28 [1] : vector<8x8x256xf32> to vector<8x256xf32>
    %cst_29 = arith.constant 0.000000e+00 : f32
    %53 = vector.broadcast %cst_29 : f32 to vector<128x512xf32>
    %c0_30 = arith.constant 0 : index
    %c1_31 = arith.constant 1 : index
    %c0_32 = arith.constant 0 : index
    %54 = vector.load %arg2[%c0_30, %c1_31, %c0_32] : memref<8x20x128xbf16, #tpu.memory_space<vmem>>, vector<8x16x128xbf16>
    %55 = vector.shape_cast %54 : vector<8x16x128xbf16> to vector<128x128xbf16>
    %c0_33 = arith.constant 0 : index
    %c0_34 = arith.constant 0 : index
    %56 = vector.load %arg3[%c0_33, %c0_34] : memref<384x512xbf16, #tpu.memory_space<vmem>>, vector<128x512xbf16>
    %cst_35 = arith.constant dense<0.000000e+00> : vector<128x512xf32>
    %57 = tpu.matmul %55, %56, %cst_35 {dimension_numbers = #tpu.dot_dimension_numbers<[1], [0], [0], [1], [0, 0, 1, 1], [], []>} : vector<128x128xbf16>, vector<128x512xbf16>, vector<128x512xf32> -> vector<128x512xf32>
    %58 = arith.addf %53, %57 : vector<128x512xf32>
    %c0_36 = arith.constant 0 : index
    %c2_37 = arith.constant 2 : index
    %c0_38 = arith.constant 0 : index
    %59 = vector.load %arg2[%c0_36, %c2_37, %c0_38] : memref<8x20x128xbf16, #tpu.memory_space<vmem>>, vector<8x16x128xbf16>
    %60 = vector.shape_cast %59 : vector<8x16x128xbf16> to vector<128x128xbf16>
    %c128_39 = arith.constant 128 : index
    %c0_40 = arith.constant 0 : index
    %61 = vector.load %arg3[%c128_39, %c0_40] : memref<384x512xbf16, #tpu.memory_space<vmem>>, vector<128x512xbf16>
    %cst_41 = arith.constant dense<0.000000e+00> : vector<128x512xf32>
    %62 = tpu.matmul %60, %61, %cst_41 {dimension_numbers = #tpu.dot_dimension_numbers<[1], [0], [0], [1], [0, 0, 1, 1], [], []>} : vector<128x128xbf16>, vector<128x512xbf16>, vector<128x512xf32> -> vector<128x512xf32>
    %63 = arith.addf %58, %62 : vector<128x512xf32>
    %c0_42 = arith.constant 0 : index
    %c3_43 = arith.constant 3 : index
    %c0_44 = arith.constant 0 : index
    %64 = vector.load %arg2[%c0_42, %c3_43, %c0_44] : memref<8x20x128xbf16, #tpu.memory_space<vmem>>, vector<8x16x128xbf16>
    %65 = vector.shape_cast %64 : vector<8x16x128xbf16> to vector<128x128xbf16>
    %c256_45 = arith.constant 256 : index
    %c0_46 = arith.constant 0 : index
    %66 = vector.load %arg3[%c256_45, %c0_46] : memref<384x512xbf16, #tpu.memory_space<vmem>>, vector<128x512xbf16>
    %cst_47 = arith.constant dense<0.000000e+00> : vector<128x512xf32>
    %67 = tpu.matmul %65, %66, %cst_47 {dimension_numbers = #tpu.dot_dimension_numbers<[1], [0], [0], [1], [0, 0, 1, 1], [], []>} : vector<128x128xbf16>, vector<128x512xbf16>, vector<128x512xf32> -> vector<128x512xf32>
    %68 = arith.addf %63, %67 : vector<128x512xf32>
    %cst_48 = arith.constant 0.000000e+00 : f32
    %69 = vector.broadcast %cst_48 : f32 to vector<128x256xf32>
    %c0_49 = arith.constant 0 : index
    %c0_50 = arith.constant 0 : index
    %c0_51 = arith.constant 0 : index
    %70 = vector.load %arg2[%c0_49, %c0_50, %c0_51] : memref<8x20x128xbf16, #tpu.memory_space<vmem>>, vector<8x16x128xbf16>
    %71 = vector.shape_cast %70 : vector<8x16x128xbf16> to vector<128x128xbf16>
    %c0_52 = arith.constant 0 : index
    %c0_53 = arith.constant 0 : index
    %72 = vector.load %arg4[%c0_52, %c0_53] : memref<256x256xbf16, #tpu.memory_space<vmem>>, vector<128x256xbf16>
    %cst_54 = arith.constant dense<0.000000e+00> : vector<128x256xf32>
    %73 = tpu.matmul %71, %72, %cst_54 {dimension_numbers = #tpu.dot_dimension_numbers<[1], [0], [0], [1], [0, 0, 1, 1], [], []>} : vector<128x128xbf16>, vector<128x256xbf16>, vector<128x256xf32> -> vector<128x256xf32>
    %74 = arith.addf %69, %73 : vector<128x256xf32>
    %c0_55 = arith.constant 0 : index
    %c4_56 = arith.constant 4 : index
    %c0_57 = arith.constant 0 : index
    %75 = vector.load %arg2[%c0_55, %c4_56, %c0_57] : memref<8x20x128xbf16, #tpu.memory_space<vmem>>, vector<8x16x128xbf16>
    %76 = vector.shape_cast %75 : vector<8x16x128xbf16> to vector<128x128xbf16>
    %c128_58 = arith.constant 128 : index
    %c0_59 = arith.constant 0 : index
    %77 = vector.load %arg4[%c128_58, %c0_59] : memref<256x256xbf16, #tpu.memory_space<vmem>>, vector<128x256xbf16>
    %cst_60 = arith.constant dense<0.000000e+00> : vector<128x256xf32>
    %78 = tpu.matmul %76, %77, %cst_60 {dimension_numbers = #tpu.dot_dimension_numbers<[1], [0], [0], [1], [0, 0, 1, 1], [], []>} : vector<128x128xbf16>, vector<128x256xbf16>, vector<128x256xf32> -> vector<128x256xf32>
    %79 = arith.addf %74, %78 : vector<128x256xf32>
    %c0_61 = arith.constant 0 : index
    %c0_62 = arith.constant 0 : index
    %80 = vector.load %arg5[%c0_61, %c0_62] : memref<1x512xf32, #tpu.memory_space<vmem>>, vector<1x512xf32>
    %81 = vector.broadcast %80 : vector<1x512xf32> to vector<128x512xf32>
    %82 = arith.addf %68, %81 : vector<128x512xf32>
    %83 = vector.extract_strided_slice %82 {offsets = [0, 0], sizes = [128, 128], strides = [1, 1]} : vector<128x512xf32> to vector<128x128xf32>
    %84 = vector.extract_strided_slice %82 {offsets = [0, 128], sizes = [128, 128], strides = [1, 1]} : vector<128x512xf32> to vector<128x128xf32>
    %85 = vector.extract_strided_slice %82 {offsets = [0, 256], sizes = [128, 128], strides = [1, 1]} : vector<128x512xf32> to vector<128x128xf32>
    %86 = vector.extract_strided_slice %79 {offsets = [0, 0], sizes = [128, 128], strides = [1, 1]} : vector<128x256xf32> to vector<128x128xf32>
    %87 = arith.addf %85, %86 : vector<128x128xf32>
    %88 = vector.extract_strided_slice %82 {offsets = [0, 384], sizes = [128, 128], strides = [1, 1]} : vector<128x512xf32> to vector<128x128xf32>
    %89 = vector.extract_strided_slice %79 {offsets = [0, 128], sizes = [128, 128], strides = [1, 1]} : vector<128x256xf32> to vector<128x128xf32>
    %90 = arith.addf %88, %89 : vector<128x128xf32>
    %91 = arith.negf %84 : vector<128x128xf32>
    %92 = math.exp %91 : vector<128x128xf32>
    %cst_63 = arith.constant 1.000000e+00 : f32
    %93 = vector.broadcast %cst_63 : f32 to vector<128x128xf32>
    %94 = arith.addf %93, %92 : vector<128x128xf32>
    %95 = arith.divf %93, %94 : vector<128x128xf32>
    %96 = arith.mulf %83, %95 : vector<128x128xf32>
    %97 = arith.negf %90 : vector<128x128xf32>
    %98 = math.exp %97 : vector<128x128xf32>
    %cst_64 = arith.constant 1.000000e+00 : f32
    %99 = vector.broadcast %cst_64 : f32 to vector<128x128xf32>
    %100 = arith.addf %99, %98 : vector<128x128xf32>
    %101 = arith.divf %99, %100 : vector<128x128xf32>
    %102 = arith.mulf %87, %101 : vector<128x128xf32>
    %103 = tpu.concatenate %96, %102 in 1 : vector<128x128xf32>, vector<128x128xf32> -> vector<128x256xf32>
    %104 = vector.shape_cast %103 : vector<128x256xf32> to vector<8x16x256xf32>
    %105 = tpu.iota {dimensions = array<i32: 1>} : vector<1x16x1xi32>
    %c12_i32 = arith.constant 12 : i32
    %106 = vector.broadcast %c12_i32 : i32 to vector<1x16x1xi32>
    %107 = arith.cmpi slt, %105, %106 : vector<1x16x1xi32>
    %cst_65 = arith.constant 0xFF800000 : f32
    %108 = vector.shape_cast %107 : vector<1x16x1xi1> to vector<1x16x1xi1>
    %109 = vector.broadcast %108 : vector<1x16x1xi1> to vector<8x16x256xi1>
    %110 = vector.broadcast %cst_65 : f32 to vector<8x16x256xf32>
    %111 = arith.select %109, %104, %110 : vector<8x16x256xi1>, vector<8x16x256xf32>
    %cst_66 = arith.constant dense<0xFF800000> : vector<8x256xf32>
    %112 = vector.multi_reduction <maximumf>, %111, %cst_66 [1] : vector<8x16x256xf32> to vector<8x256xf32>
    %113 = tpu.concatenate %52, %112 in 1 : vector<8x256xf32>, vector<8x256xf32> -> vector<8x512xf32>
    %114 = arith.truncf %113 : vector<8x512xf32> to vector<8x512xbf16>
    %c0_67 = arith.constant 0 : index
    %c0_68 = arith.constant 0 : index
    %115 = vector.load %arg6[%c0_67, %c0_68] : memref<512x128xbf16, #tpu.memory_space<vmem>>, vector<512x128xbf16>
    %cst_69 = arith.constant dense<0.000000e+00> : vector<8x128xf32>
    %116 = tpu.matmul %114, %115, %cst_69 {dimension_numbers = #tpu.dot_dimension_numbers<[1], [0], [0], [1], [0, 0, 1, 1], [], []>} : vector<8x512xbf16>, vector<512x128xbf16>, vector<8x128xf32> -> vector<8x128xf32>
    %c0_70 = arith.constant 0 : index
    %c0_71 = arith.constant 0 : index
    %117 = vector.load %arg7[%c0_70, %c0_71] : memref<1x128xf32, #tpu.memory_space<vmem>>, vector<1x128xf32>
    %118 = vector.broadcast %117 : vector<1x128xf32> to vector<8x128xf32>
    %119 = arith.addf %116, %118 : vector<8x128xf32>
    %cst_72 = arith.constant 0.000000e+00 : f32
    %120 = vector.broadcast %cst_72 : f32 to vector<8x128xf32>
    %121 = arith.maximumf %119, %120 : vector<8x128xf32>
    %122 = arith.truncf %121 : vector<8x128xf32> to vector<8x128xbf16>
    %c0_73 = arith.constant 0 : index
    %c0_74 = arith.constant 0 : index
    %123 = vector.load %arg8[%c0_73, %c0_74] : memref<128x128xbf16, #tpu.memory_space<vmem>>, vector<128x128xbf16>
    %cst_75 = arith.constant dense<0.000000e+00> : vector<8x128xf32>
    %124 = tpu.matmul %122, %123, %cst_75 {dimension_numbers = #tpu.dot_dimension_numbers<[1], [0], [0], [1], [0, 0, 1, 1], [], []>} : vector<8x128xbf16>, vector<128x128xbf16>, vector<8x128xf32> -> vector<8x128xf32>
    %c0_76 = arith.constant 0 : index
    %c0_77 = arith.constant 0 : index
    %125 = vector.load %arg9[%c0_76, %c0_77] : memref<1x128xf32, #tpu.memory_space<vmem>>, vector<1x128xf32>
    %126 = vector.broadcast %125 : vector<1x128xf32> to vector<8x128xf32>
    %127 = arith.addf %124, %126 : vector<8x128xf32>
    %c0_78 = arith.constant 0 : index
    %c0_79 = arith.constant 0 : index
    %128 = vector.load %arg10[%c0_78, %c0_79] : memref<8x128xf32, #tpu.memory_space<vmem>>, vector<8x128xf32>
    tpu.vector_store %arg10[%c0_78, %c0_79], %127 {strides = array<i32>} : memref<8x128xf32, #tpu.memory_space<vmem>>, vector<8x128xf32>,
    return
  }
  func.func @transform_0(%arg0: i32) -> (i32, i32, i32) {
    %c0_i32 = arith.constant 0 : i32
    %c0_i32_0 = arith.constant 0 : i32
    %c0_i32_1 = arith.constant 0 : i32
    return %arg0, %c0_i32, %c0_i32_0 : i32, i32, i32
  }
  func.func @transform_1(%arg0: i32) -> (i32, i32, i32) {
    %c0_i32 = arith.constant 0 : i32
    %c0_i32_0 = arith.constant 0 : i32
    %c0_i32_1 = arith.constant 0 : i32
    return %arg0, %c0_i32, %c0_i32_0 : i32, i32, i32
  }
  func.func @transform_2(%arg0: i32) -> (i32, i32) {
    %c0_i32 = arith.constant 0 : i32
    %c0_i32_0 = arith.constant 0 : i32
    %c0_i32_1 = arith.constant 0 : i32
    return %c0_i32, %c0_i32_0 : i32, i32
  }
  func.func @transform_3(%arg0: i32) -> (i32, i32) {
    %c0_i32 = arith.constant 0 : i32
    %c0_i32_0 = arith.constant 0 : i32
    %c0_i32_1 = arith.constant 0 : i32
    return %c0_i32, %c0_i32_0 : i32, i32
  }
  func.func @transform_4(%arg0: i32) -> (i32, i32) {
    %c0_i32 = arith.constant 0 : i32
    %c0_i32_0 = arith.constant 0 : i32
    %c0_i32_1 = arith.constant 0 : i32
    return %c0_i32, %c0_i32_0 : i32, i32
  }
  func.func @transform_5(%arg0: i32) -> (i32, i32) {
    %c0_i32 = arith.constant 0 : i32
    %c0_i32_0 = arith.constant 0 : i32
    %c0_i32_1 = arith.constant 0 : i32
    return %c0_i32, %c0_i32_0 : i32, i32
  }
  func.func @transform_6(%arg0: i32) -> (i32, i32) {
    %c0_i32 = arith.constant 0 : i32
    %c0_i32_0 = arith.constant 0 : i32
    %c0_i32_1 = arith.constant 0 : i32
    return %c0_i32, %c0_i32_0 : i32, i32
  }
  func.func @transform_7(%arg0: i32) -> (i32, i32) {
    %c0_i32 = arith.constant 0 : i32
    %c0_i32_0 = arith.constant 0 : i32
    %c0_i32_1 = arith.constant 0 : i32
    return %c0_i32, %c0_i32_0 : i32, i32
  }
  func.func @transform_8(%arg0: i32) -> (i32, i32) {
    %c0_i32 = arith.constant 0 : i32
    %c0_i32_0 = arith.constant 0 : i32
    %c0_i32_1 = arith.constant 0 : i32
    return %c0_i32, %c0_i32_0 : i32, i32
  }
  func.func @transform_9(%arg0: i32) -> (i32, i32) {
    %c0_i32 = arith.constant 0 : i32
    %c0_i32_0 = arith.constant 0 : i32
    return %arg0, %c0_i32 : i32, i32
  }
}

</mosaic_0001>

<llo_original>
// kernel: cate1_classifier_forward.1
$region0: #{cate1_classifier_forward.1}
  #allocation0 [shape = 'u32[]', space=smem, size = 0x4, offset = 0x4, fixed_abs, tag = 'smem constant byte address 0x4 - core index']
  #allocation1 [shape = 'u32[72,128]{1,0:T(1,128)}', space=vmem, size = 0x9000, scoped, tag = 'internal scratch']
  %s0 = inlined_call_operand.vmem [shape: bf16[8,12,128], index: 0, kind: input, shape index: {}]
  %s1 = inlined_call_operand.vmem [shape: bf16[8,20,128], index: 1, kind: input, shape index: {}]
  %s2 = inlined_call_operand.vmem [shape: bf16[384,512], index: 2, kind: input, shape index: {}]
  %s3 = inlined_call_operand.vmem [shape: bf16[256,256], index: 3, kind: input, shape index: {}]
  %s4 = inlined_call_operand.vmem [shape: f32[1,512], index: 4, kind: input, shape index: {}]
  %s5 = inlined_call_operand.vmem [shape: bf16[512,128], index: 5, kind: input, shape index: {}]
  %s6 = inlined_call_operand.vmem [shape: f32[1,128], index: 6, kind: input, shape index: {}]
  %s7 = inlined_call_operand.vmem [shape: bf16[128,128], index: 7, kind: input, shape index: {}]
  %s8 = inlined_call_operand.vmem [shape: f32[1,128], index: 8, kind: input, shape index: {}]
  %s9 = inlined_call_operand.vmem [shape: f32[8,128], index: 9, kind: output, shape index: {}]
  %s10 = sld [smem:[#allocation0]]
  $region46: #{cate1_classifier_forward.1} parent=0
    _
  %s12 = ssub.s32 1, %s10
  %s13 = scalar_select 0, %s12, %s10
  // Predicated region
  $region2: #{cate1_classifier_forward.1} parent=0 // pred_check
    _
  $region3: #{cate1_classifier_forward.1} parent=0 // pred_check_branch
    %15 = sbr.rel (0) target = $region5
  $region4: #{cate1_classifier_forward.1} parent=0 // pred_region
    _
  $region5: #{cate1_classifier_forward.1} parent=0 // pred_fallthru
    _
  // Predicated region
  $region6: #{cate1_classifier_forward.1} parent=0 // pred_check
    _
  $region7: #{cate1_classifier_forward.1} parent=0 // pred_check_branch
    %17 = sbr.rel (0) target = $region9
  $region8: #{cate1_classifier_forward.1} parent=0 // pred_region
    _
  $region9: #{cate1_classifier_forward.1} parent=0 // pred_fallthru
    _
  // Predicated region
  $region10: #{cate1_classifier_forward.1} parent=0 // pred_check
    _
  $region11: #{cate1_classifier_forward.1} parent=0 // pred_check_branch
    %19 = sbr.rel (0) target = $region13
  $region12: #{cate1_classifier_forward.1} parent=0 // pred_region
    _
  $region13: #{cate1_classifier_forward.1} parent=0 // pred_fallthru
    _
  // Predicated region
  $region14: #{cate1_classifier_forward.1} parent=0 // pred_check
    _
  $region15: #{cate1_classifier_forward.1} parent=0 // pred_check_branch
    %21 = sbr.rel (0) target = $region17
  $region16: #{cate1_classifier_forward.1} parent=0 // pred_region
    _
  $region17: #{cate1_classifier_forward.1} parent=0 // pred_fallthru
    _
  // Predicated region
  $region18: #{cate1_classifier_forward.1} parent=0 // pred_check
    _
  $region19: #{cate1_classifier_forward.1} parent=0 // pred_check_branch
    %23 = sbr.rel (0) target = $region21
  $region20: #{cate1_classifier_forward.1} parent=0 // pred_region
    _
  $region21: #{cate1_classifier_forward.1} parent=0 // pred_fallthru
    _
  // Predicated region
  $region22: #{cate1_classifier_forward.1} parent=0 // pred_check
    _
  $region23: #{cate1_classifier_forward.1} parent=0 // pred_check_branch
    %25 = sbr.rel (0) target = $region25
  $region24: #{cate1_classifier_forward.1} parent=0 // pred_region
    _
  $region25: #{cate1_classifier_forward.1} parent=0 // pred_fallthru
    _
  // Predicated region
  $region26: #{cate1_classifier_forward.1} parent=0 // pred_check
    _
  $region27: #{cate1_classifier_forward.1} parent=0 // pred_check_branch
    %27 = sbr.rel (0) target = $region29
  $region28: #{cate1_classifier_forward.1} parent=0 // pred_region
    _
  $region29: #{cate1_classifier_forward.1} parent=0 // pred_fallthru
    _
  // Predicated region
  $region30: #{cate1_classifier_forward.1} parent=0 // pred_check
    _
  $region31: #{cate1_classifier_forward.1} parent=0 // pred_check_branch
    %29 = sbr.rel (0) target = $region33
  $region32: #{cate1_classifier_forward.1} parent=0 // pred_region
    _
  $region33: #{cate1_classifier_forward.1} parent=0 // pred_fallthru
    _
  // Predicated region
  $region34: #{cate1_classifier_forward.1} parent=0 // pred_check
    _
  $region35: #{cate1_classifier_forward.1} parent=0 // pred_check_branch
    %31 = sbr.rel (0) target = $region37
  $region36: #{cate1_classifier_forward.1} parent=0 // pred_region
    _
  $region37: #{cate1_classifier_forward.1} parent=0 // pred_fallthru
    _
  %v32 = vld [vmem:[%s0] sm:$0xf]
  %v33 = vld [vmem:[%s0 + $0x4] sm:$0x1]
  %v34 = vld [vmem:[%s0 + $0x8] sm:$0xf]
  %v35 = vld [vmem:[%s0 + $0xc] sm:$0x1]
  %v36 = vld [vmem:[%s0 + $0x10] sm:$0xf]
  %v37 = vld [vmem:[%s0 + $0x14] sm:$0x1]
  %v38 = vld [vmem:[%s0 + $0x18] sm:$0xf]
  %v39 = vld [vmem:[%s0 + $0x1c] sm:$0x1]
  %v40 = vld [vmem:[%s0 + $0x20] sm:$0xf]
  %v41 = vld [vmem:[%s0 + $0x24] sm:$0x1]
  %v42 = vld [vmem:[%s0 + $0x28] sm:$0xf]
  %v43 = vld [vmem:[%s0 + $0x2c] sm:$0x1]
  %v44 = vld [vmem:[%s0 + $0x30] sm:$0xf]
  %v45 = vld [vmem:[%s0 + $0x34] sm:$0x1]
  %v46 = vld [vmem:[%s0 + $0x38] sm:$0xf]
  %v47 = vld [vmem:[%s0 + $0x3c] sm:$0x1]
  %vm48 = vsmask.f32 3328
  %vm49 = vsmask.f32 7440
  %vm50 = vmor %vm48, %vm49
  %v52 = vshrl.u32 %v32, 16
  %v54 = vrot.slane %v52, 4
  %v55 = vshll.u32 %v32, 16
  %v57 = vrot.slane %v55, 5
  %v58 = vor.u32 %v54, %v57
  %v59 = vrot.slane %v58, 4
  %v61 = vshll.u32 %v33, 16
  %v63 = vrot.slane %v61, 5
  %v64 = vsel %vm50, %v59, %v63
  %v66 = vshrl.u32 %v34, 16
  %v68 = vrot.slane %v66, 4
  %v69 = vshll.u32 %v34, 16
  %v71 = vrot.slane %v69, 5
  %v72 = vor.u32 %v68, %v71
  %v73 = vrot.slane %v72, 4
  %v75 = vshll.u32 %v35, 16
  %v77 = vrot.slane %v75, 5
  %v78 = vsel %vm50, %v73, %v77
  %v80 = vshrl.u32 %v36, 16
  %v82 = vrot.slane %v80, 4
  %v83 = vshll.u32 %v36, 16
  %v85 = vrot.slane %v83, 5
  %v86 = vor.u32 %v82, %v85
  %v87 = vrot.slane %v86, 4
  %v89 = vshll.u32 %v37, 16
  %v91 = vrot.slane %v89, 5
  %v92 = vsel %vm50, %v87, %v91
  %v94 = vshrl.u32 %v38, 16
  %v96 = vrot.slane %v94, 4
  %v97 = vshll.u32 %v38, 16
  %v99 = vrot.slane %v97, 5
  %v100 = vor.u32 %v96, %v99
  %v101 = vrot.slane %v100, 4
  %v103 = vshll.u32 %v39, 16
  %v105 = vrot.slane %v103, 5
  %v106 = vsel %vm50, %v101, %v105
  %v108 = vshrl.u32 %v40, 16
  %v110 = vrot.slane %v108, 4
  %v111 = vshll.u32 %v40, 16
  %v113 = vrot.slane %v111, 5
  %v114 = vor.u32 %v110, %v113
  %v115 = vrot.slane %v114, 4
  %v117 = vshll.u32 %v41, 16
  %v119 = vrot.slane %v117, 5
  %v120 = vsel %vm50, %v115, %v119
  %v122 = vshrl.u32 %v42, 16
  %v124 = vrot.slane %v122, 4
  %v125 = vshll.u32 %v42, 16
  %v127 = vrot.slane %v125, 5
  %v128 = vor.u32 %v124, %v127
  %v129 = vrot.slane %v128, 4
  %v131 = vshll.u32 %v43, 16
  %v133 = vrot.slane %v131, 5
  %v134 = vsel %vm50, %v129, %v133
  %v136 = vshrl.u32 %v44, 16
  %v138 = vrot.slane %v136, 4
  %v139 = vshll.u32 %v44, 16
  %v141 = vrot.slane %v139, 5
  %v142 = vor.u32 %v138, %v141
  %v143 = vrot.slane %v142, 4
  %v145 = vshll.u32 %v45, 16
  %v147 = vrot.slane %v145, 5
  %v148 = vsel %vm50, %v143, %v147
  %v150 = vshrl.u32 %v46, 16
  %v152 = vrot.slane %v150, 4
  %v153 = vshll.u32 %v46, 16
  %v155 = vrot.slane %v153, 5
  %v156 = vor.u32 %v152, %v155
  %v157 = vrot.slane %v156, 4
  %v159 = vshll.u32 %v47, 16
  %v161 = vrot.slane %v159, 5
  %v162 = vsel %vm50, %v157, %v161
  %v163 = vld [vmem:[%s2] sm:$0xff]
  %v164 = vld [vmem:[%s2 + $0x8] sm:$0xff]
  %v165 = vld [vmem:[%s2 + $0x10] sm:$0xff]
  %v166 = vld [vmem:[%s2 + $0x18] sm:$0xff]
  %v167 = vld [vmem:[%s2 + $0x20] sm:$0xff]
  %v168 = vld [vmem:[%s2 + $0x28] sm:$0xff]
  %v169 = vld [vmem:[%s2 + $0x30] sm:$0xff]
  %v170 = vld [vmem:[%s2 + $0x38] sm:$0xff]
  %v171 = vld [vmem:[%s2 + $0x40] sm:$0xff]
  %v172 = vld [vmem:[%s2 + $0x48] sm:$0xff]
  %v173 = vld [vmem:[%s2 + $0x50] sm:$0xff]
  %v174 = vld [vmem:[%s2 + $0x58] sm:$0xff]
  %v175 = vld [vmem:[%s2 + $0x60] sm:$0xff]
  %v176 = vld [vmem:[%s2 + $0x68] sm:$0xff]
  %v177 = vld [vmem:[%s2 + $0x70] sm:$0xff]
  %v178 = vld [vmem:[%s2 + $0x78] sm:$0xff]
  %v179 = vld [vmem:[%s2 + $0x80] sm:$0xff]
  %v180 = vld [vmem:[%s2 + $0x88] sm:$0xff]
  %v181 = vld [vmem:[%s2 + $0x90] sm:$0xff]
  %v182 = vld [vmem:[%s2 + $0x98] sm:$0xff]
  %v183 = vld [vmem:[%s2 + $0xa0] sm:$0xff]
  %v184 = vld [vmem:[%s2 + $0xa8] sm:$0xff]
  %v185 = vld [vmem:[%s2 + $0xb0] sm:$0xff]
  %v186 = vld [vmem:[%s2 + $0xb8] sm:$0xff]
  %v187 = vld [vmem:[%s2 + $0xc0] sm:$0xff]
  %v188 = vld [vmem:[%s2 + $0xc8] sm:$0xff]
  %v189 = vld [vmem:[%s2 + $0xd0] sm:$0xff]
  %v190 = vld [vmem:[%s2 + $0xd8] sm:$0xff]
  %v191 = vld [vmem:[%s2 + $0xe0] sm:$0xff]
  %v192 = vld [vmem:[%s2 + $0xe8] sm:$0xff]
  %v193 = vld [vmem:[%s2 + $0xf0] sm:$0xff]
  %v194 = vld [vmem:[%s2 + $0xf8] sm:$0xff]
  %v195 = vld [vmem:[%s0] sm:$0xe]
  %v196 = vld [vmem:[%s0 + $0x8] sm:$0xe]
  %v197 = vld [vmem:[%s0 + $0x10] sm:$0xe]
  %v198 = vld [vmem:[%s0 + $0x18] sm:$0xe]
  %v199 = vld [vmem:[%s0 + $0x20] sm:$0xe]
  %v200 = vld [vmem:[%s0 + $0x28] sm:$0xe]
  %v201 = vld [vmem:[%s0 + $0x30] sm:$0xe]
  %v202 = vld [vmem:[%s0 + $0x38] sm:$0xe]
  %vm219 = vcmask 1042432
  %vm220 = vcmask 1046532
  %vm221 = vmor %vm219, %vm220
  %v222 = vrot.slane %v195, 5
  %v223 = vrot.slane %v222, 4
  %v224 = vrot.slane %v33, 5
  %v225 = vsel %vm221, %v223, %v224
  %v226 = vrot.slane %v196, 5
  %v227 = vrot.slane %v226, 4
  %v228 = vrot.slane %v35, 5
  %v229 = vsel %vm221, %v227, %v228
  %v230 = vrot.slane %v197, 5
  %v231 = vrot.slane %v230, 4
  %v232 = vrot.slane %v37, 5
  %v233 = vsel %vm221, %v231, %v232
  %v234 = vrot.slane %v198, 5
  %v235 = vrot.slane %v234, 4
  %v236 = vrot.slane %v39, 5
  %v237 = vsel %vm221, %v235, %v236
  %v238 = vrot.slane %v199, 5
  %v239 = vrot.slane %v238, 4
  %v240 = vrot.slane %v41, 5
  %v241 = vsel %vm221, %v239, %v240
  %v242 = vrot.slane %v200, 5
  %v243 = vrot.slane %v242, 4
  %v244 = vrot.slane %v43, 5
  %v245 = vsel %vm221, %v243, %v244
  %v246 = vrot.slane %v201, 5
  %v247 = vrot.slane %v246, 4
  %v248 = vrot.slane %v45, 5
  %v249 = vsel %vm221, %v247, %v248
  %v250 = vrot.slane %v202, 5
  %v251 = vrot.slane %v250, 4
  %v252 = vrot.slane %v47, 5
  %v253 = vsel %vm221, %v251, %v252
  %v254 = vld [vmem:[%s2 + $0x100] sm:$0xff]
  %v255 = vld [vmem:[%s2 + $0x108] sm:$0xff]
  %v256 = vld [vmem:[%s2 + $0x110] sm:$0xff]
  %v257 = vld [vmem:[%s2 + $0x118] sm:$0xff]
  %v258 = vld [vmem:[%s2 + $0x120] sm:$0xff]
  %v259 = vld [vmem:[%s2 + $0x128] sm:$0xff]
  %v260 = vld [vmem:[%s2 + $0x130] sm:$0xff]
  %v261 = vld [vmem:[%s2 + $0x138] sm:$0xff]
  %v262 = vld [vmem:[%s2 + $0x140] sm:$0xff]
  %v263 = vld [vmem:[%s2 + $0x148] sm:$0xff]
  %v264 = vld [vmem:[%s2 + $0x150] sm:$0xff]
  %v265 = vld [vmem:[%s2 + $0x158] sm:$0xff]
  %v266 = vld [vmem:[%s2 + $0x160] sm:$0xff]
  %v267 = vld [vmem:[%s2 + $0x168] sm:$0xff]
  %v268 = vld [vmem:[%s2 + $0x170] sm:$0xff]
  %v269 = vld [vmem:[%s2 + $0x178] sm:$0xff]
  %v270 = vld [vmem:[%s2 + $0x180] sm:$0xff]
  %v271 = vld [vmem:[%s2 + $0x188] sm:$0xff]
  %v272 = vld [vmem:[%s2 + $0x190] sm:$0xff]
  %v273 = vld [vmem:[%s2 + $0x198] sm:$0xff]
  %v274 = vld [vmem:[%s2 + $0x1a0] sm:$0xff]
  %v275 = vld [vmem:[%s2 + $0x1a8] sm:$0xff]
  %v276 = vld [vmem:[%s2 + $0x1b0] sm:$0xff]
  %v277 = vld [vmem:[%s2 + $0x1b8] sm:$0xff]
  %v278 = vld [vmem:[%s2 + $0x1c0] sm:$0xff]
  %v279 = vld [vmem:[%s2 + $0x1c8] sm:$0xff]
  %v280 = vld [vmem:[%s2 + $0x1d0] sm:$0xff]
  %v281 = vld [vmem:[%s2 + $0x1d8] sm:$0xff]
  %v282 = vld [vmem:[%s2 + $0x1e0] sm:$0xff]
  %v283 = vld [vmem:[%s2 + $0x1e8] sm:$0xff]
  %v284 = vld [vmem:[%s2 + $0x1f0] sm:$0xff]
  %v285 = vld [vmem:[%s2 + $0x1f8] sm:$0xff]
  %v286 = vunpack.c.l.b16 %v225
  %v287 = vunpack.c.l.b16 %v229
  %v288 = vunpack.c.l.b16 %v233
  %v289 = vunpack.c.l.b16 %v237
  %v290 = vunpack.c.l.b16 %v241
  %v291 = vunpack.c.l.b16 %v245
  %v292 = vunpack.c.l.b16 %v249
  %v293 = vunpack.c.l.b16 %v253
  %v294 = vpack.c.b16 %v287, %v286
  %v295 = vpack.c.b16 %v289, %v288
  %v296 = vpack.c.b16 %v291, %v290
  %v297 = vpack.c.b16 %v293, %v292
  %v334 = vunpack.c.l.b16 %v254
  %v335 = vunpack.c.h.b16 %v254
  %v336 = vunpack.c.l.b16 %v255
  %v337 = vunpack.c.h.b16 %v255
  %v338 = vunpack.c.l.b16 %v256
  %v339 = vunpack.c.h.b16 %v256
  %v340 = vunpack.c.l.b16 %v257
  %v341 = vunpack.c.h.b16 %v257
  %v342 = vunpack.c.l.b16 %v258
  %v343 = vunpack.c.h.b16 %v258
  %v344 = vunpack.c.l.b16 %v259
  %v345 = vunpack.c.h.b16 %v259
  %v346 = vunpack.c.l.b16 %v260
  %v347 = vunpack.c.h.b16 %v260
  %v348 = vunpack.c.l.b16 %v261
  %v349 = vunpack.c.h.b16 %v261
  %v350 = vunpack.c.l.b16 %v262
  %v351 = vunpack.c.h.b16 %v262
  %v352 = vunpack.c.l.b16 %v263
  %v353 = vunpack.c.h.b16 %v263
  %v354 = vunpack.c.l.b16 %v264
  %v355 = vunpack.c.h.b16 %v264
  %v356 = vunpack.c.l.b16 %v265
  %v357 = vunpack.c.h.b16 %v265
  %v358 = vunpack.c.l.b16 %v266
  %v359 = vunpack.c.h.b16 %v266
  %v360 = vunpack.c.l.b16 %v267
  %v361 = vunpack.c.h.b16 %v267
  %v362 = vunpack.c.l.b16 %v268
  %v363 = vunpack.c.h.b16 %v268
  %v364 = vunpack.c.l.b16 %v269
  %v365 = vunpack.c.h.b16 %v269
  %v366 = vunpack.c.l.b16 %v270
  %v367 = vunpack.c.h.b16 %v270
  %v368 = vunpack.c.l.b16 %v271
  %v369 = vunpack.c.h.b16 %v271
  %v370 = vunpack.c.l.b16 %v272
  %v371 = vunpack.c.h.b16 %v272
  %v372 = vunpack.c.l.b16 %v273
  %v373 = vunpack.c.h.b16 %v273
  %v374 = vunpack.c.l.b16 %v274
  %v375 = vunpack.c.h.b16 %v274
  %v376 = vunpack.c.l.b16 %v275
  %v377 = vunpack.c.h.b16 %v275
  %v378 = vunpack.c.l.b16 %v276
  %v379 = vunpack.c.h.b16 %v276
  %v380 = vunpack.c.l.b16 %v277
  %v381 = vunpack.c.h.b16 %v277
  %v382 = vunpack.c.l.b16 %v278
  %v383 = vunpack.c.h.b16 %v278
  %v384 = vunpack.c.l.b16 %v279
  %v385 = vunpack.c.h.b16 %v279
  %v386 = vunpack.c.l.b16 %v280
  %v387 = vunpack.c.h.b16 %v280
  %v388 = vunpack.c.l.b16 %v281
  %v389 = vunpack.c.h.b16 %v281
  %v390 = vunpack.c.l.b16 %v282
  %v391 = vunpack.c.h.b16 %v282
  %v392 = vunpack.c.l.b16 %v283
  %v393 = vunpack.c.h.b16 %v283
  %v394 = vunpack.c.l.b16 %v284
  %v395 = vunpack.c.h.b16 %v284
  %v396 = vunpack.c.l.b16 %v285
  %v397 = vunpack.c.h.b16 %v285
  %v398 = vpack.c.b16 %v338, %v334
  %v399 = vpack.c.b16 %v339, %v335
  %v400 = vpack.c.b16 %v340, %v336
  %v401 = vpack.c.b16 %v341, %v337
  %v402 = vpack.c.b16 %v346, %v342
  %v403 = vpack.c.b16 %v347, %v343
  %v404 = vpack.c.b16 %v348, %v344
  %v405 = vpack.c.b16 %v349, %v345
  %v406 = vpack.c.b16 %v354, %v350
  %v407 = vpack.c.b16 %v355, %v351
  %v408 = vpack.c.b16 %v356, %v352
  %v409 = vpack.c.b16 %v357, %v353
  %v410 = vpack.c.b16 %v362, %v358
  %v411 = vpack.c.b16 %v363, %v359
  %v412 = vpack.c.b16 %v364, %v360
  %v413 = vpack.c.b16 %v365, %v361
  %v414 = vpack.c.b16 %v370, %v366
  %v415 = vpack.c.b16 %v371, %v367
  %v416 = vpack.c.b16 %v372, %v368
  %v417 = vpack.c.b16 %v373, %v369
  %v418 = vpack.c.b16 %v378, %v374
  %v419 = vpack.c.b16 %v379, %v375
  %v420 = vpack.c.b16 %v380, %v376
  %v421 = vpack.c.b16 %v381, %v377
  %v422 = vpack.c.b16 %v386, %v382
  %v423 = vpack.c.b16 %v387, %v383
  %v424 = vpack.c.b16 %v388, %v384
  %v425 = vpack.c.b16 %v389, %v385
  %v426 = vpack.c.b16 %v394, %v390
  %v427 = vpack.c.b16 %v395, %v391
  %v428 = vpack.c.b16 %v396, %v392
  %v429 = vpack.c.b16 %v397, %v393
  %462 = vmatpush.bf16.msra.mxu0 %v426
  %463 = vmatpush.bf16.msra.mxu0 %v422
  %464 = vmatpush.bf16.msra.mxu0 %v418
  %465 = vmatpush.bf16.msra.mxu0 %v414
  %466 = vmatpush.bf16.msra.mxu0 %v410
  %467 = vmatpush.bf16.msra.mxu0 %v406
  %468 = vmatpush.bf16.msra.mxu0 %v402
  %469 = vmatpush.bf16.msra.mxu0 %v398
  %470 = vmatmul.bf16.gmra.mxu0 %v294
  %v471 = vpop.f32.mrf.mxu0
  %v472 = vadd.f32 0.0, %v471
  %v473 = vpop.f32.mrf.mxu0
  %v474 = vadd.f32 0.0, %v473
  %475 = vmatmul.bf16.gmra.mxu0 %v295
  %v476 = vpop.f32.mrf.mxu0
  %v477 = vadd.f32 0.0, %v476
  %v478 = vpop.f32.mrf.mxu0
  %v479 = vadd.f32 0.0, %v478
  %480 = vmatmul.bf16.gmra.mxu0 %v296
  %v481 = vpop.f32.mrf.mxu0
  %v482 = vadd.f32 0.0, %v481
  %v483 = vpop.f32.mrf.mxu0
  %v484 = vadd.f32 0.0, %v483
  %485 = vmatmul.bf16.gmra.mxu0 %v297
  %v486 = vpop.f32.mrf.mxu0
  %v487 = vadd.f32 0.0, %v486
  %v488 = vpop.f32.mrf.mxu0
  %v489 = vadd.f32 0.0, %v488
  %490 = vdwg.mxu0
  %491 = vmatpush.bf16.msra.mxu0 %v427
  %492 = vmatpush.bf16.msra.mxu0 %v423
  %493 = vmatpush.bf16.msra.mxu0 %v419
  %494 = vmatpush.bf16.msra.mxu0 %v415
  %495 = vmatpush.bf16.msra.mxu0 %v411
  %496 = vmatpush.bf16.msra.mxu0 %v407
  %497 = vmatpush.bf16.msra.mxu0 %v403
  %498 = vmatpush.bf16.msra.mxu0 %v399
  %499 = vmatmul.bf16.gmra.mxu0 %v294
  %v500 = vpop.f32.mrf.mxu0
  %v501 = vadd.f32 0.0, %v500
  %v502 = vpop.f32.mrf.mxu0
  %v503 = vadd.f32 0.0, %v502
  %504 = vmatmul.bf16.gmra.mxu0 %v295
  %v505 = vpop.f32.mrf.mxu0
  %v506 = vadd.f32 0.0, %v505
  %v507 = vpop.f32.mrf.mxu0
  %v508 = vadd.f32 0.0, %v507
  %509 = vmatmul.bf16.gmra.mxu0 %v296
  %v510 = vpop.f32.mrf.mxu0
  %v511 = vadd.f32 0.0, %v510
  %v512 = vpop.f32.mrf.mxu0
  %v513 = vadd.f32 0.0, %v512
  %514 = vmatmul.bf16.gmra.mxu0 %v297
  %v515 = vpop.f32.mrf.mxu0
  %v516 = vadd.f32 0.0, %v515
  %v517 = vpop.f32.mrf.mxu0
  %v518 = vadd.f32 0.0, %v517
  %519 = vdwg.mxu0
  %520 = vmatpush.bf16.msra.mxu0 %v428
  %521 = vmatpush.bf16.msra.mxu0 %v424
  %522 = vmatpush.bf16.msra.mxu0 %v420
  %523 = vmatpush.bf16.msra.mxu0 %v416
  %524 = vmatpush.bf16.msra.mxu0 %v412
  %525 = vmatpush.bf16.msra.mxu0 %v408
  %526 = vmatpush.bf16.msra.mxu0 %v404
  %527 = vmatpush.bf16.msra.mxu0 %v400
  %528 = vmatmul.bf16.gmra.mxu0 %v294
  %v529 = vpop.f32.mrf.mxu0
  %v530 = vadd.f32 0.0, %v529
  %v531 = vpop.f32.mrf.mxu0
  %v532 = vadd.f32 0.0, %v531
  %533 = vmatmul.bf16.gmra.mxu0 %v295
  %v534 = vpop.f32.mrf.mxu0
  %v535 = vadd.f32 0.0, %v534
  %v536 = vpop.f32.mrf.mxu0
  %v537 = vadd.f32 0.0, %v536
  %538 = vmatmul.bf16.gmra.mxu0 %v296
  %v539 = vpop.f32.mrf.mxu0
  %v540 = vadd.f32 0.0, %v539
  %v541 = vpop.f32.mrf.mxu0
  %v542 = vadd.f32 0.0, %v541
  %543 = vmatmul.bf16.gmra.mxu0 %v297
  %v544 = vpop.f32.mrf.mxu0
  %v545 = vadd.f32 0.0, %v544
  %v546 = vpop.f32.mrf.mxu0
  %v547 = vadd.f32 0.0, %v546
  %548 = vdwg.mxu0
  %549 = vmatpush.bf16.msra.mxu0 %v429
  %550 = vmatpush.bf16.msra.mxu0 %v425
  %551 = vmatpush.bf16.msra.mxu0 %v421
  %552 = vmatpush.bf16.msra.mxu0 %v417
  %553 = vmatpush.bf16.msra.mxu0 %v413
  %554 = vmatpush.bf16.msra.mxu0 %v409
  %555 = vmatpush.bf16.msra.mxu0 %v405
  %556 = vmatpush.bf16.msra.mxu0 %v401
  %557 = vmatmul.bf16.gmra.mxu0 %v294
  %v558 = vpop.f32.mrf.mxu0
  %v559 = vadd.f32 0.0, %v558
  %v560 = vpop.f32.mrf.mxu0
  %v561 = vadd.f32 0.0, %v560
  %562 = vmatmul.bf16.gmra.mxu0 %v295
  %v563 = vpop.f32.mrf.mxu0
  %v564 = vadd.f32 0.0, %v563
  %v565 = vpop.f32.mrf.mxu0
  %v566 = vadd.f32 0.0, %v565
  %567 = vmatmul.bf16.gmra.mxu0 %v296
  %v568 = vpop.f32.mrf.mxu0
  %v569 = vadd.f32 0.0, %v568
  %v570 = vpop.f32.mrf.mxu0
  %v571 = vadd.f32 0.0, %v570
  %572 = vmatmul.bf16.gmra.mxu0 %v297
  %v573 = vpop.f32.mrf.mxu0
  %v574 = vadd.f32 0.0, %v573
  %v575 = vpop.f32.mrf.mxu0
  %v576 = vadd.f32 0.0, %v575
  %577 = vdwg.mxu0
  %v578 = vunpack.c.l.b16 %v64
  %v579 = vunpack.c.l.b16 %v78
  %v580 = vunpack.c.l.b16 %v92
  %v581 = vunpack.c.l.b16 %v106
  %v582 = vunpack.c.l.b16 %v120
  %v583 = vunpack.c.l.b16 %v134
  %v584 = vunpack.c.l.b16 %v148
  %v585 = vunpack.c.l.b16 %v162
  %v586 = vpack.c.b16 %v579, %v578
  %v587 = vpack.c.b16 %v581, %v580
  %v588 = vpack.c.b16 %v583, %v582
  %v589 = vpack.c.b16 %v585, %v584
  %v626 = vunpack.c.l.b16 %v163
  %v627 = vunpack.c.h.b16 %v163
  %v628 = vunpack.c.l.b16 %v164
  %v629 = vunpack.c.h.b16 %v164
  %v630 = vunpack.c.l.b16 %v165
  %v631 = vunpack.c.h.b16 %v165
  %v632 = vunpack.c.l.b16 %v166
  %v633 = vunpack.c.h.b16 %v166
  %v634 = vunpack.c.l.b16 %v167
  %v635 = vunpack.c.h.b16 %v167
  %v636 = vunpack.c.l.b16 %v168
  %v637 = vunpack.c.h.b16 %v168
  %v638 = vunpack.c.l.b16 %v169
  %v639 = vunpack.c.h.b16 %v169
  %v640 = vunpack.c.l.b16 %v170
  %v641 = vunpack.c.h.b16 %v170
  %v642 = vunpack.c.l.b16 %v171
  %v643 = vunpack.c.h.b16 %v171
  %v644 = vunpack.c.l.b16 %v172
  %v645 = vunpack.c.h.b16 %v172
  %v646 = vunpack.c.l.b16 %v173
  %v647 = vunpack.c.h.b16 %v173
  %v648 = vunpack.c.l.b16 %v174
  %v649 = vunpack.c.h.b16 %v174
  %v650 = vunpack.c.l.b16 %v175
  %v651 = vunpack.c.h.b16 %v175
  %v652 = vunpack.c.l.b16 %v176
  %v653 = vunpack.c.h.b16 %v176
  %v654 = vunpack.c.l.b16 %v177
  %v655 = vunpack.c.h.b16 %v177
  %v656 = vunpack.c.l.b16 %v178
  %v657 = vunpack.c.h.b16 %v178
  %v658 = vunpack.c.l.b16 %v179
  %v659 = vunpack.c.h.b16 %v179
  %v660 = vunpack.c.l.b16 %v180
  %v661 = vunpack.c.h.b16 %v180
  %v662 = vunpack.c.l.b16 %v181
  %v663 = vunpack.c.h.b16 %v181
  %v664 = vunpack.c.l.b16 %v182
  %v665 = vunpack.c.h.b16 %v182
  %v666 = vunpack.c.l.b16 %v183
  %v667 = vunpack.c.h.b16 %v183
  %v668 = vunpack.c.l.b16 %v184
  %v669 = vunpack.c.h.b16 %v184
  %v670 = vunpack.c.l.b16 %v185
  %v671 = vunpack.c.h.b16 %v185
  %v672 = vunpack.c.l.b16 %v186
  %v673 = vunpack.c.h.b16 %v186
  %v674 = vunpack.c.l.b16 %v187
  %v675 = vunpack.c.h.b16 %v187
  %v676 = vunpack.c.l.b16 %v188
  %v677 = vunpack.c.h.b16 %v188
  %v678 = vunpack.c.l.b16 %v189
  %v679 = vunpack.c.h.b16 %v189
  %v680 = vunpack.c.l.b16 %v190
  %v681 = vunpack.c.h.b16 %v190
  %v682 = vunpack.c.l.b16 %v191
  %v683 = vunpack.c.h.b16 %v191
  %v684 = vunpack.c.l.b16 %v192
  %v685 = vunpack.c.h.b16 %v192
  %v686 = vunpack.c.l.b16 %v193
  %v687 = vunpack.c.h.b16 %v193
  %v688 = vunpack.c.l.b16 %v194
  %v689 = vunpack.c.h.b16 %v194
  %v690 = vpack.c.b16 %v630, %v626
  %v691 = vpack.c.b16 %v631, %v627
  %v692 = vpack.c.b16 %v632, %v628
  %v693 = vpack.c.b16 %v633, %v629
  %v694 = vpack.c.b16 %v638, %v634
  %v695 = vpack.c.b16 %v639, %v635
  %v696 = vpack.c.b16 %v640, %v636
  %v697 = vpack.c.b16 %v641, %v637
  %v698 = vpack.c.b16 %v646, %v642
  %v699 = vpack.c.b16 %v647, %v643
  %v700 = vpack.c.b16 %v648, %v644
  %v701 = vpack.c.b16 %v649, %v645
  %v702 = vpack.c.b16 %v654, %v650
  %v703 = vpack.c.b16 %v655, %v651
  %v704 = vpack.c.b16 %v656, %v652
  %v705 = vpack.c.b16 %v657, %v653
  %v706 = vpack.c.b16 %v662, %v658
  %v707 = vpack.c.b16 %v663, %v659
  %v708 = vpack.c.b16 %v664, %v660
  %v709 = vpack.c.b16 %v665, %v661
  %v710 = vpack.c.b16 %v670, %v666
  %v711 = vpack.c.b16 %v671, %v667
  %v712 = vpack.c.b16 %v672, %v668
  %v713 = vpack.c.b16 %v673, %v669
  %v714 = vpack.c.b16 %v678, %v674
  %v715 = vpack.c.b16 %v679, %v675
  %v716 = vpack.c.b16 %v680, %v676
  %v717 = vpack.c.b16 %v681, %v677
  %v718 = vpack.c.b16 %v686, %v682
  %v719 = vpack.c.b16 %v687, %v683
  %v720 = vpack.c.b16 %v688, %v684
  %v721 = vpack.c.b16 %v689, %v685
  %754 = vmatpush.bf16.msra.mxu0 %v718
  %755 = vmatpush.bf16.msra.mxu0 %v714
  %756 = vmatpush.bf16.msra.mxu0 %v710
  %757 = vmatpush.bf16.msra.mxu0 %v706
  %758 = vmatpush.bf16.msra.mxu0 %v702
  %759 = vmatpush.bf16.msra.mxu0 %v698
  %760 = vmatpush.bf16.msra.mxu0 %v694
  %761 = vmatpush.bf16.msra.mxu0 %v690
  %762 = vmatmul.bf16.gmra.mxu0 %v586
  %v763 = vpop.f32.mrf.mxu0
  %v764 = vadd.f32 %v472, %v763
  %v765 = vpop.f32.mrf.mxu0
  %v766 = vadd.f32 %v474, %v765
  %767 = vmatmul.bf16.gmra.mxu0 %v587
  %v768 = vpop.f32.mrf.mxu0
  %v769 = vadd.f32 %v477, %v768
  %v770 = vpop.f32.mrf.mxu0
  %v771 = vadd.f32 %v479, %v770
  %772 = vmatmul.bf16.gmra.mxu0 %v588
  %v773 = vpop.f32.mrf.mxu0
  %v774 = vadd.f32 %v482, %v773
  %v775 = vpop.f32.mrf.mxu0
  %v776 = vadd.f32 %v484, %v775
  %777 = vmatmul.bf16.gmra.mxu0 %v589
  %v778 = vpop.f32.mrf.mxu0
  %v779 = vadd.f32 %v487, %v778
  %v780 = vpop.f32.mrf.mxu0
  %v781 = vadd.f32 %v489, %v780
  %782 = vdwg.mxu0
  %783 = vmatpush.bf16.msra.mxu0 %v719
  %784 = vmatpush.bf16.msra.mxu0 %v715
  %785 = vmatpush.bf16.msra.mxu0 %v711
  %786 = vmatpush.bf16.msra.mxu0 %v707
  %787 = vmatpush.bf16.msra.mxu0 %v703
  %788 = vmatpush.bf16.msra.mxu0 %v699
  %789 = vmatpush.bf16.msra.mxu0 %v695
  %790 = vmatpush.bf16.msra.mxu0 %v691
  %791 = vmatmul.bf16.gmra.mxu0 %v586
  %v792 = vpop.f32.mrf.mxu0
  %v793 = vadd.f32 %v501, %v792
  %v794 = vpop.f32.mrf.mxu0
  %v795 = vadd.f32 %v503, %v794
  %796 = vmatmul.bf16.gmra.mxu0 %v587
  %v797 = vpop.f32.mrf.mxu0
  %v798 = vadd.f32 %v506, %v797
  %v799 = vpop.f32.mrf.mxu0
  %v800 = vadd.f32 %v508, %v799
  %801 = vmatmul.bf16.gmra.mxu0 %v588
  %v802 = vpop.f32.mrf.mxu0
  %v803 = vadd.f32 %v511, %v802
  %v804 = vpop.f32.mrf.mxu0
  %v805 = vadd.f32 %v513, %v804
  %806 = vmatmul.bf16.gmra.mxu0 %v589
  %v807 = vpop.f32.mrf.mxu0
  %v808 = vadd.f32 %v516, %v807
  %v809 = vpop.f32.mrf.mxu0
  %v810 = vadd.f32 %v518, %v809
  %811 = vdwg.mxu0
  %812 = vmatpush.bf16.msra.mxu0 %v720
  %813 = vmatpush.bf16.msra.mxu0 %v716
  %814 = vmatpush.bf16.msra.mxu0 %v712
  %815 = vmatpush.bf16.msra.mxu0 %v708
  %816 = vmatpush.bf16.msra.mxu0 %v704
  %817 = vmatpush.bf16.msra.mxu0 %v700
  %818 = vmatpush.bf16.msra.mxu0 %v696
  %819 = vmatpush.bf16.msra.mxu0 %v692
  %820 = vmatmul.bf16.gmra.mxu0 %v586
  %v821 = vpop.f32.mrf.mxu0
  %v822 = vadd.f32 %v530, %v821
  %v823 = vpop.f32.mrf.mxu0
  %v824 = vadd.f32 %v532, %v823
  %825 = vmatmul.bf16.gmra.mxu0 %v587
  %v826 = vpop.f32.mrf.mxu0
  %v827 = vadd.f32 %v535, %v826
  %v828 = vpop.f32.mrf.mxu0
  %v829 = vadd.f32 %v537, %v828
  %830 = vmatmul.bf16.gmra.mxu0 %v588
  %v831 = vpop.f32.mrf.mxu0
  %v832 = vadd.f32 %v540, %v831
  %v833 = vpop.f32.mrf.mxu0
  %v834 = vadd.f32 %v542, %v833
  %835 = vmatmul.bf16.gmra.mxu0 %v589
  %v836 = vpop.f32.mrf.mxu0
  %v837 = vadd.f32 %v545, %v836
  %v838 = vpop.f32.mrf.mxu0
  %v839 = vadd.f32 %v547, %v838
  %840 = vdwg.mxu0
  %841 = vmatpush.bf16.msra.mxu0 %v721
  %842 = vmatpush.bf16.msra.mxu0 %v717
  %843 = vmatpush.bf16.msra.mxu0 %v713
  %844 = vmatpush.bf16.msra.mxu0 %v709
  %845 = vmatpush.bf16.msra.mxu0 %v705
  %846 = vmatpush.bf16.msra.mxu0 %v701
  %847 = vmatpush.bf16.msra.mxu0 %v697
  %848 = vmatpush.bf16.msra.mxu0 %v693
  %849 = vmatmul.bf16.gmra.mxu0 %v586
  %v850 = vpop.f32.mrf.mxu0
  %v851 = vadd.f32 %v559, %v850
  %v852 = vpop.f32.mrf.mxu0
  %v853 = vadd.f32 %v561, %v852
  %854 = vmatmul.bf16.gmra.mxu0 %v587
  %v855 = vpop.f32.mrf.mxu0
  %v856 = vadd.f32 %v564, %v855
  %v857 = vpop.f32.mrf.mxu0
  %v858 = vadd.f32 %v566, %v857
  %859 = vmatmul.bf16.gmra.mxu0 %v588
  %v860 = vpop.f32.mrf.mxu0
  %v861 = vadd.f32 %v569, %v860
  %v862 = vpop.f32.mrf.mxu0
  %v863 = vadd.f32 %v571, %v862
  %864 = vmatmul.bf16.gmra.mxu0 %v589
  %v865 = vpop.f32.mrf.mxu0
  %v866 = vadd.f32 %v574, %v865
  %v867 = vpop.f32.mrf.mxu0
  %v868 = vadd.f32 %v576, %v867
  %869 = vdwg.mxu0
  %v870 = vld [vmem:[%s0 + $0x4] sm:$0x3]
  %v871 = vld [vmem:[%s0 + $0xc] sm:$0x3]
  %v872 = vld [vmem:[%s0 + $0x14] sm:$0x3]
  %v873 = vld [vmem:[%s0 + $0x1c] sm:$0x3]
  %v874 = vld [vmem:[%s0 + $0x24] sm:$0x3]
  %v875 = vld [vmem:[%s0 + $0x2c] sm:$0x3]
  %v876 = vld [vmem:[%s0 + $0x34] sm:$0x3]
  %v877 = vld [vmem:[%s0 + $0x3c] sm:$0x3]
  %vm878 = vsmask.f32 2304
  %vm879 = vsmask.f32 6416
  %vm880 = vmor %vm878, %vm879
  %v882 = vshrl.u32 %v195, 16
  %v884 = vrot.slane %v882, 5
  %v885 = vshll.u32 %v195, 16
  %v887 = vrot.slane %v885, 6
  %v888 = vor.u32 %v884, %v887
  %v889 = vrot.slane %v888, 4
  %v891 = vshrl.u32 %v870, 16
  %v893 = vrot.slane %v891, 5
  %v894 = vshll.u32 %v870, 16
  %v896 = vrot.slane %v894, 6
  %v897 = vor.u32 %v893, %v896
  %v898 = vsel %vm880, %v889, %v897
  %v900 = vshrl.u32 %v196, 16
  %v902 = vrot.slane %v900, 5
  %v903 = vshll.u32 %v196, 16
  %v905 = vrot.slane %v903, 6
  %v906 = vor.u32 %v902, %v905
  %v907 = vrot.slane %v906, 4
  %v909 = vshrl.u32 %v871, 16
  %v911 = vrot.slane %v909, 5
  %v912 = vshll.u32 %v871, 16
  %v914 = vrot.slane %v912, 6
  %v915 = vor.u32 %v911, %v914
  %v916 = vsel %vm880, %v907, %v915
  %v918 = vshrl.u32 %v197, 16
  %v920 = vrot.slane %v918, 5
  %v921 = vshll.u32 %v197, 16
  %v923 = vrot.slane %v921, 6
  %v924 = vor.u32 %v920, %v923
  %v925 = vrot.slane %v924, 4
  %v927 = vshrl.u32 %v872, 16
  %v929 = vrot.slane %v927, 5
  %v930 = vshll.u32 %v872, 16
  %v932 = vrot.slane %v930, 6
  %v933 = vor.u32 %v929, %v932
  %v934 = vsel %vm880, %v925, %v933
  %v936 = vshrl.u32 %v198, 16
  %v938 = vrot.slane %v936, 5
  %v939 = vshll.u32 %v198, 16
  %v941 = vrot.slane %v939, 6
  %v942 = vor.u32 %v938, %v941
  %v943 = vrot.slane %v942, 4
  %v945 = vshrl.u32 %v873, 16
  %v947 = vrot.slane %v945, 5
  %v948 = vshll.u32 %v873, 16
  %v950 = vrot.slane %v948, 6
  %v951 = vor.u32 %v947, %v950
  %v952 = vsel %vm880, %v943, %v951
  %v954 = vshrl.u32 %v199, 16
  %v956 = vrot.slane %v954, 5
  %v957 = vshll.u32 %v199, 16
  %v959 = vrot.slane %v957, 6
  %v960 = vor.u32 %v956, %v959
  %v961 = vrot.slane %v960, 4
  %v963 = vshrl.u32 %v874, 16
  %v965 = vrot.slane %v963, 5
  %v966 = vshll.u32 %v874, 16
  %v968 = vrot.slane %v966, 6
  %v969 = vor.u32 %v965, %v968
  %v970 = vsel %vm880, %v961, %v969
  %v972 = vshrl.u32 %v200, 16
  %v974 = vrot.slane %v972, 5
  %v975 = vshll.u32 %v200, 16
  %v977 = vrot.slane %v975, 6
  %v978 = vor.u32 %v974, %v977
  %v979 = vrot.slane %v978, 4
  %v981 = vshrl.u32 %v875, 16
  %v983 = vrot.slane %v981, 5
  %v984 = vshll.u32 %v875, 16
  %v986 = vrot.slane %v984, 6
  %v987 = vor.u32 %v983, %v986
  %v988 = vsel %vm880, %v979, %v987
  %v990 = vshrl.u32 %v201, 16
  %v992 = vrot.slane %v990, 5
  %v993 = vshll.u32 %v201, 16
  %v995 = vrot.slane %v993, 6
  %v996 = vor.u32 %v992, %v995
  %v997 = vrot.slane %v996, 4
  %v999 = vshrl.u32 %v876, 16
  %v1001 = vrot.slane %v999, 5
  %v1002 = vshll.u32 %v876, 16
  %v1004 = vrot.slane %v1002, 6
  %v1005 = vor.u32 %v1001, %v1004
  %v1006 = vsel %vm880, %v997, %v1005
  %v1008 = vshrl.u32 %v202, 16
  %v1010 = vrot.slane %v1008, 5
  %v1011 = vshll.u32 %v202, 16
  %v1013 = vrot.slane %v1011, 6
  %v1014 = vor.u32 %v1010, %v1013
  %v1015 = vrot.slane %v1014, 4
  %v1017 = vshrl.u32 %v877, 16
  %v1019 = vrot.slane %v1017, 5
  %v1020 = vshll.u32 %v877, 16
  %v1022 = vrot.slane %v1020, 6
  %v1023 = vor.u32 %v1019, %v1022
  %v1024 = vsel %vm880, %v1015, %v1023
  %v1025 = vld [vmem:[%s2 + $0x200] sm:$0xff]
  %v1026 = vld [vmem:[%s2 + $0x208] sm:$0xff]
  %v1027 = vld [vmem:[%s2 + $0x210] sm:$0xff]
  %v1028 = vld [vmem:[%s2 + $0x218] sm:$0xff]
  %v1029 = vld [vmem:[%s2 + $0x220] sm:$0xff]
  %v1030 = vld [vmem:[%s2 + $0x228] sm:$0xff]
  %v1031 = vld [vmem:[%s2 + $0x230] sm:$0xff]
  %v1032 = vld [vmem:[%s2 + $0x238] sm:$0xff]
  %v1033 = vld [vmem:[%s2 + $0x240] sm:$0xff]
  %v1034 = vld [vmem:[%s2 + $0x248] sm:$0xff]
  %v1035 = vld [vmem:[%s2 + $0x250] sm:$0xff]
  %v1036 = vld [vmem:[%s2 + $0x258] sm:$0xff]
  %v1037 = vld [vmem:[%s2 + $0x260] sm:$0xff]
  %v1038 = vld [vmem:[%s2 + $0x268] sm:$0xff]
  %v1039 = vld [vmem:[%s2 + $0x270] sm:$0xff]
  %v1040 = vld [vmem:[%s2 + $0x278] sm:$0xff]
  %v1041 = vld [vmem:[%s2 + $0x280] sm:$0xff]
  %v1042 = vld [vmem:[%s2 + $0x288] sm:$0xff]
  %v1043 = vld [vmem:[%s2 + $0x290] sm:$0xff]
  %v1044 = vld [vmem:[%s2 + $0x298] sm:$0xff]
  %v1045 = vld [vmem:[%s2 + $0x2a0] sm:$0xff]
  %v1046 = vld [vmem:[%s2 + $0x2a8] sm:$0xff]
  %v1047 = vld [vmem:[%s2 + $0x2b0] sm:$0xff]
  %v1048 = vld [vmem:[%s2 + $0x2b8] sm:$0xff]
  %v1049 = vld [vmem:[%s2 + $0x2c0] sm:$0xff]
  %v1050 = vld [vmem:[%s2 + $0x2c8] sm:$0xff]
  %v1051 = vld [vmem:[%s2 + $0x2d0] sm:$0xff]
  %v1052 = vld [vmem:[%s2 + $0x2d8] sm:$0xff]
  %v1053 = vld [vmem:[%s2 + $0x2e0] sm:$0xff]
  %v1054 = vld [vmem:[%s2 + $0x2e8] sm:$0xff]
  %v1055 = vld [vmem:[%s2 + $0x2f0] sm:$0xff]
  %v1056 = vld [vmem:[%s2 + $0x2f8] sm:$0xff]
  %v1057 = vunpack.c.l.b16 %v898
  %v1058 = vunpack.c.l.b16 %v916
  %v1059 = vunpack.c.l.b16 %v934
  %v1060 = vunpack.c.l.b16 %v952
  %v1061 = vunpack.c.l.b16 %v970
  %v1062 = vunpack.c.l.b16 %v988
  %v1063 = vunpack.c.l.b16 %v1006
  %v1064 = vunpack.c.l.b16 %v1024
  %v1065 = vpack.c.b16 %v1058, %v1057
  %v1066 = vpack.c.b16 %v1060, %v1059
  %v1067 = vpack.c.b16 %v1062, %v1061
  %v1068 = vpack.c.b16 %v1064, %v1063
  %v1105 = vunpack.c.l.b16 %v1025
  %v1106 = vunpack.c.h.b16 %v1025
  %v1107 = vunpack.c.l.b16 %v1026
  %v1108 = vunpack.c.h.b16 %v1026
  %v1109 = vunpack.c.l.b16 %v1027
  %v1110 = vunpack.c.h.b16 %v1027
  %v1111 = vunpack.c.l.b16 %v1028
  %v1112 = vunpack.c.h.b16 %v1028
  %v1113 = vunpack.c.l.b16 %v1029
  %v1114 = vunpack.c.h.b16 %v1029
  %v1115 = vunpack.c.l.b16 %v1030
  %v1116 = vunpack.c.h.b16 %v1030
  %v1117 = vunpack.c.l.b16 %v1031
  %v1118 = vunpack.c.h.b16 %v1031
  %v1119 = vunpack.c.l.b16 %v1032
  %v1120 = vunpack.c.h.b16 %v1032
  %v1121 = vunpack.c.l.b16 %v1033
  %v1122 = vunpack.c.h.b16 %v1033
  %v1123 = vunpack.c.l.b16 %v1034
  %v1124 = vunpack.c.h.b16 %v1034
  %v1125 = vunpack.c.l.b16 %v1035
  %v1126 = vunpack.c.h.b16 %v1035
  %v1127 = vunpack.c.l.b16 %v1036
  %v1128 = vunpack.c.h.b16 %v1036
  %v1129 = vunpack.c.l.b16 %v1037
  %v1130 = vunpack.c.h.b16 %v1037
  %v1131 = vunpack.c.l.b16 %v1038
  %v1132 = vunpack.c.h.b16 %v1038
  %v1133 = vunpack.c.l.b16 %v1039
  %v1134 = vunpack.c.h.b16 %v1039
  %v1135 = vunpack.c.l.b16 %v1040
  %v1136 = vunpack.c.h.b16 %v1040
  %v1137 = vunpack.c.l.b16 %v1041
  %v1138 = vunpack.c.h.b16 %v1041
  %v1139 = vunpack.c.l.b16 %v1042
  %v1140 = vunpack.c.h.b16 %v1042
  %v1141 = vunpack.c.l.b16 %v1043
  %v1142 = vunpack.c.h.b16 %v1043
  %v1143 = vunpack.c.l.b16 %v1044
  %v1144 = vunpack.c.h.b16 %v1044
  %v1145 = vunpack.c.l.b16 %v1045
  %v1146 = vunpack.c.h.b16 %v1045
  %v1147 = vunpack.c.l.b16 %v1046
  %v1148 = vunpack.c.h.b16 %v1046
  %v1149 = vunpack.c.l.b16 %v1047
  %v1150 = vunpack.c.h.b16 %v1047
  %v1151 = vunpack.c.l.b16 %v1048
  %v1152 = vunpack.c.h.b16 %v1048
  %v1153 = vunpack.c.l.b16 %v1049
  %v1154 = vunpack.c.h.b16 %v1049
  %v1155 = vunpack.c.l.b16 %v1050
  %v1156 = vunpack.c.h.b16 %v1050
  %v1157 = vunpack.c.l.b16 %v1051
  %v1158 = vunpack.c.h.b16 %v1051
  %v1159 = vunpack.c.l.b16 %v1052
  %v1160 = vunpack.c.h.b16 %v1052
  %v1161 = vunpack.c.l.b16 %v1053
  %v1162 = vunpack.c.h.b16 %v1053
  %v1163 = vunpack.c.l.b16 %v1054
  %v1164 = vunpack.c.h.b16 %v1054
  %v1165 = vunpack.c.l.b16 %v1055
  %v1166 = vunpack.c.h.b16 %v1055
  %v1167 = vunpack.c.l.b16 %v1056
  %v1168 = vunpack.c.h.b16 %v1056
  %v1169 = vpack.c.b16 %v1109, %v1105
  %v1170 = vpack.c.b16 %v1110, %v1106
  %v1171 = vpack.c.b16 %v1111, %v1107
  %v1172 = vpack.c.b16 %v1112, %v1108
  %v1173 = vpack.c.b16 %v1117, %v1113
  %v1174 = vpack.c.b16 %v1118, %v1114
  %v1175 = vpack.c.b16 %v1119, %v1115
  %v1176 = vpack.c.b16 %v1120, %v1116
  %v1177 = vpack.c.b16 %v1125, %v1121
  %v1178 = vpack.c.b16 %v1126, %v1122
  %v1179 = vpack.c.b16 %v1127, %v1123
  %v1180 = vpack.c.b16 %v1128, %v1124
  %v1181 = vpack.c.b16 %v1133, %v1129
  %v1182 = vpack.c.b16 %v1134, %v1130
  %v1183 = vpack.c.b16 %v1135, %v1131
  %v1184 = vpack.c.b16 %v1136, %v1132
  %v1185 = vpack.c.b16 %v1141, %v1137
  %v1186 = vpack.c.b16 %v1142, %v1138
  %v1187 = vpack.c.b16 %v1143, %v1139
  %v1188 = vpack.c.b16 %v1144, %v1140
  %v1189 = vpack.c.b16 %v1149, %v1145
  %v1190 = vpack.c.b16 %v1150, %v1146
  %v1191 = vpack.c.b16 %v1151, %v1147
  %v1192 = vpack.c.b16 %v1152, %v1148
  %v1193 = vpack.c.b16 %v1157, %v1153
  %v1194 = vpack.c.b16 %v1158, %v1154
  %v1195 = vpack.c.b16 %v1159, %v1155
  %v1196 = vpack.c.b16 %v1160, %v1156
  %v1197 = vpack.c.b16 %v1165, %v1161
  %v1198 = vpack.c.b16 %v1166, %v1162
  %v1199 = vpack.c.b16 %v1167, %v1163
  %v1200 = vpack.c.b16 %v1168, %v1164
  %1233 = vmatpush.bf16.msra.mxu0 %v1197
  %1234 = vmatpush.bf16.msra.mxu0 %v1193
  %1235 = vmatpush.bf16.msra.mxu0 %v1189
  %1236 = vmatpush.bf16.msra.mxu0 %v1185
  %1237 = vmatpush.bf16.msra.mxu0 %v1181
  %1238 = vmatpush.bf16.msra.mxu0 %v1177
  %1239 = vmatpush.bf16.msra.mxu0 %v1173
  %1240 = vmatpush.bf16.msra.mxu0 %v1169
  %1241 = vmatmul.bf16.gmra.mxu0 %v1065
  %v1242 = vpop.f32.mrf.mxu0
  %v1243 = vadd.f32 0.0, %v1242
  %v1244 = vpop.f32.mrf.mxu0
  %v1245 = vadd.f32 0.0, %v1244
  %1246 = vmatmul.bf16.gmra.mxu0 %v1066
  %v1247 = vpop.f32.mrf.mxu0
  %v1248 = vadd.f32 0.0, %v1247
  %v1249 = vpop.f32.mrf.mxu0
  %v1250 = vadd.f32 0.0, %v1249
  %1251 = vmatmul.bf16.gmra.mxu0 %v1067
  %v1252 = vpop.f32.mrf.mxu0
  %v1253 = vadd.f32 0.0, %v1252
  %v1254 = vpop.f32.mrf.mxu0
  %v1255 = vadd.f32 0.0, %v1254
  %1256 = vmatmul.bf16.gmra.mxu0 %v1068
  %v1257 = vpop.f32.mrf.mxu0
  %v1258 = vadd.f32 0.0, %v1257
  %v1259 = vpop.f32.mrf.mxu0
  %v1260 = vadd.f32 0.0, %v1259
  %1261 = vdwg.mxu0
  %1262 = vmatpush.bf16.msra.mxu0 %v1198
  %1263 = vmatpush.bf16.msra.mxu0 %v1194
  %1264 = vmatpush.bf16.msra.mxu0 %v1190
  %1265 = vmatpush.bf16.msra.mxu0 %v1186
  %1266 = vmatpush.bf16.msra.mxu0 %v1182
  %1267 = vmatpush.bf16.msra.mxu0 %v1178
  %1268 = vmatpush.bf16.msra.mxu0 %v1174
  %1269 = vmatpush.bf16.msra.mxu0 %v1170
  %1270 = vmatmul.bf16.gmra.mxu0 %v1065
  %v1271 = vpop.f32.mrf.mxu0
  %v1272 = vadd.f32 0.0, %v1271
  %v1273 = vpop.f32.mrf.mxu0
  %v1274 = vadd.f32 0.0, %v1273
  %1275 = vmatmul.bf16.gmra.mxu0 %v1066
  %v1276 = vpop.f32.mrf.mxu0
  %v1277 = vadd.f32 0.0, %v1276
  %v1278 = vpop.f32.mrf.mxu0
  %v1279 = vadd.f32 0.0, %v1278
  %1280 = vmatmul.bf16.gmra.mxu0 %v1067
  %v1281 = vpop.f32.mrf.mxu0
  %v1282 = vadd.f32 0.0, %v1281
  %v1283 = vpop.f32.mrf.mxu0
  %v1284 = vadd.f32 0.0, %v1283
  %1285 = vmatmul.bf16.gmra.mxu0 %v1068
  %v1286 = vpop.f32.mrf.mxu0
  %v1287 = vadd.f32 0.0, %v1286
  %v1288 = vpop.f32.mrf.mxu0
  %v1289 = vadd.f32 0.0, %v1288
  %1290 = vdwg.mxu0
  %1291 = vmatpush.bf16.msra.mxu0 %v1199
  %1292 = vmatpush.bf16.msra.mxu0 %v1195
  %1293 = vmatpush.bf16.msra.mxu0 %v1191
  %1294 = vmatpush.bf16.msra.mxu0 %v1187
  %1295 = vmatpush.bf16.msra.mxu0 %v1183
  %1296 = vmatpush.bf16.msra.mxu0 %v1179
  %1297 = vmatpush.bf16.msra.mxu0 %v1175
  %1298 = vmatpush.bf16.msra.mxu0 %v1171
  %1299 = vmatmul.bf16.gmra.mxu0 %v1065
  %v1300 = vpop.f32.mrf.mxu0
  %v1301 = vadd.f32 0.0, %v1300
  %v1302 = vpop.f32.mrf.mxu0
  %v1303 = vadd.f32 0.0, %v1302
  %1304 = vmatmul.bf16.gmra.mxu0 %v1066
  %v1305 = vpop.f32.mrf.mxu0
  %v1306 = vadd.f32 0.0, %v1305
  %v1307 = vpop.f32.mrf.mxu0
  %v1308 = vadd.f32 0.0, %v1307
  %1309 = vmatmul.bf16.gmra.mxu0 %v1067
  %v1310 = vpop.f32.mrf.mxu0
  %v1311 = vadd.f32 0.0, %v1310
  %v1312 = vpop.f32.mrf.mxu0
  %v1313 = vadd.f32 0.0, %v1312
  %1314 = vmatmul.bf16.gmra.mxu0 %v1068
  %v1315 = vpop.f32.mrf.mxu0
  %v1316 = vadd.f32 0.0, %v1315
  %v1317 = vpop.f32.mrf.mxu0
  %v1318 = vadd.f32 0.0, %v1317
  %1319 = vdwg.mxu0
  %1320 = vmatpush.bf16.msra.mxu0 %v1200
  %1321 = vmatpush.bf16.msra.mxu0 %v1196
  %1322 = vmatpush.bf16.msra.mxu0 %v1192
  %1323 = vmatpush.bf16.msra.mxu0 %v1188
  %1324 = vmatpush.bf16.msra.mxu0 %v1184
  %1325 = vmatpush.bf16.msra.mxu0 %v1180
  %1326 = vmatpush.bf16.msra.mxu0 %v1176
  %1327 = vmatpush.bf16.msra.mxu0 %v1172
  %1328 = vmatmul.bf16.gmra.mxu0 %v1065
  %v1329 = vpop.f32.mrf.mxu0
  %v1330 = vadd.f32 0.0, %v1329
  %v1331 = vpop.f32.mrf.mxu0
  %v1332 = vadd.f32 0.0, %v1331
  %1333 = vmatmul.bf16.gmra.mxu0 %v1066
  %v1334 = vpop.f32.mrf.mxu0
  %v1335 = vadd.f32 0.0, %v1334
  %v1336 = vpop.f32.mrf.mxu0
  %v1337 = vadd.f32 0.0, %v1336
  %1338 = vmatmul.bf16.gmra.mxu0 %v1067
  %v1339 = vpop.f32.mrf.mxu0
  %v1340 = vadd.f32 0.0, %v1339
  %v1341 = vpop.f32.mrf.mxu0
  %v1342 = vadd.f32 0.0, %v1341
  %1343 = vmatmul.bf16.gmra.mxu0 %v1068
  %v1344 = vpop.f32.mrf.mxu0
  %v1345 = vadd.f32 0.0, %v1344
  %v1346 = vpop.f32.mrf.mxu0
  %v1347 = vadd.f32 0.0, %v1346
  %1348 = vdwg.mxu0
  %v1349 = vadd.f32 %v764, %v1243
  %v1350 = vadd.f32 %v793, %v1272
  %v1351 = vadd.f32 %v822, %v1301
  %v1352 = vadd.f32 %v851, %v1330
  %v1353 = vadd.f32 %v766, %v1245
  %v1354 = vadd.f32 %v795, %v1274
  %v1355 = vadd.f32 %v824, %v1303
  %v1356 = vadd.f32 %v853, %v1332
  %v1357 = vadd.f32 %v769, %v1248
  %v1358 = vadd.f32 %v798, %v1277
  %v1359 = vadd.f32 %v827, %v1306
  %v1360 = vadd.f32 %v856, %v1335
  %v1361 = vadd.f32 %v771, %v1250
  %v1362 = vadd.f32 %v800, %v1279
  %v1363 = vadd.f32 %v829, %v1308
  %v1364 = vadd.f32 %v858, %v1337
  %v1365 = vadd.f32 %v774, %v1253
  %v1366 = vadd.f32 %v803, %v1282
  %v1367 = vadd.f32 %v832, %v1311
  %v1368 = vadd.f32 %v861, %v1340
  %v1369 = vadd.f32 %v776, %v1255
  %v1370 = vadd.f32 %v805, %v1284
  %v1371 = vadd.f32 %v834, %v1313
  %v1372 = vadd.f32 %v863, %v1342
  %v1373 = vadd.f32 %v779, %v1258
  %v1374 = vadd.f32 %v808, %v1287
  %v1375 = vadd.f32 %v837, %v1316
  %v1376 = vadd.f32 %v866, %v1345
  %v1377 = vadd.f32 %v781, %v1260
  %v1378 = vadd.f32 %v810, %v1289
  %v1379 = vadd.f32 %v839, %v1318
  %v1380 = vadd.f32 %v868, %v1347
  %v1381 = vld [vmem:[%s0] sm:$0xf]
  %v1382 = vld [vmem:[%s0 + $0x8] sm:$0xf]
  %v1383 = vld [vmem:[%s0 + $0x10] sm:$0xf]
  %v1384 = vld [vmem:[%s0 + $0x18] sm:$0xf]
  %v1385 = vld [vmem:[%s0 + $0x20] sm:$0xf]
  %v1386 = vld [vmem:[%s0 + $0x28] sm:$0xf]
  %v1387 = vld [vmem:[%s0 + $0x30] sm:$0xf]
  %v1388 = vld [vmem:[%s0 + $0x38] sm:$0xf]
  %v1389 = vld [vmem:[%s3] sm:$0xff]
  %v1390 = vld [vmem:[%s3 + $0x8] sm:$0xff]
  %v1391 = vld [vmem:[%s3 + $0x10] sm:$0xff]
  %v1392 = vld [vmem:[%s3 + $0x18] sm:$0xff]
  %v1393 = vld [vmem:[%s3 + $0x20] sm:$0xff]
  %v1394 = vld [vmem:[%s3 + $0x28] sm:$0xff]
  %v1395 = vld [vmem:[%s3 + $0x30] sm:$0xff]
  %v1396 = vld [vmem:[%s3 + $0x38] sm:$0xff]
  %v1397 = vld [vmem:[%s3 + $0x40] sm:$0xff]
  %v1398 = vld [vmem:[%s3 + $0x48] sm:$0xff]
  %v1399 = vld [vmem:[%s3 + $0x50] sm:$0xff]
  %v1400 = vld [vmem:[%s3 + $0x58] sm:$0xff]
  %v1401 = vld [vmem:[%s3 + $0x60] sm:$0xff]
  %v1402 = vld [vmem:[%s3 + $0x68] sm:$0xff]
  %v1403 = vld [vmem:[%s3 + $0x70] sm:$0xff]
  %v1404 = vld [vmem:[%s3 + $0x78] sm:$0xff]
  %v1405 = vld [vmem:[%s0] sm:$0xc]
  %v1406 = vld [vmem:[%s0 + $0x8] sm:$0xc]
  %v1407 = vld [vmem:[%s0 + $0x10] sm:$0xc]
  %v1408 = vld [vmem:[%s0 + $0x18] sm:$0xc]
  %v1409 = vld [vmem:[%s0 + $0x20] sm:$0xc]
  %v1410 = vld [vmem:[%s0 + $0x28] sm:$0xc]
  %v1411 = vld [vmem:[%s0 + $0x30] sm:$0xc]
  %v1412 = vld [vmem:[%s0 + $0x38] sm:$0xc]
  %vm1429 = vcmask 1041408
  %vm1430 = vcmask 1045508
  %vm1431 = vmor %vm1429, %vm1430
  %v1432 = vrot.slane %v1405, 6
  %v1433 = vrot.slane %v1432, 4
  %v1434 = vrot.slane %v870, 6
  %v1435 = vsel %vm1431, %v1433, %v1434
  %v1436 = vrot.slane %v1406, 6
  %v1437 = vrot.slane %v1436, 4
  %v1438 = vrot.slane %v871, 6
  %v1439 = vsel %vm1431, %v1437, %v1438
  %v1440 = vrot.slane %v1407, 6
  %v1441 = vrot.slane %v1440, 4
  %v1442 = vrot.slane %v872, 6
  %v1443 = vsel %vm1431, %v1441, %v1442
  %v1444 = vrot.slane %v1408, 6
  %v1445 = vrot.slane %v1444, 4
  %v1446 = vrot.slane %v873, 6
  %v1447 = vsel %vm1431, %v1445, %v1446
  %v1448 = vrot.slane %v1409, 6
  %v1449 = vrot.slane %v1448, 4
  %v1450 = vrot.slane %v874, 6
  %v1451 = vsel %vm1431, %v1449, %v1450
  %v1452 = vrot.slane %v1410, 6
  %v1453 = vrot.slane %v1452, 4
  %v1454 = vrot.slane %v875, 6
  %v1455 = vsel %vm1431, %v1453, %v1454
  %v1456 = vrot.slane %v1411, 6
  %v1457 = vrot.slane %v1456, 4
  %v1458 = vrot.slane %v876, 6
  %v1459 = vsel %vm1431, %v1457, %v1458
  %v1460 = vrot.slane %v1412, 6
  %v1461 = vrot.slane %v1460, 4
  %v1462 = vrot.slane %v877, 6
  %v1463 = vsel %vm1431, %v1461, %v1462
  %v1464 = vld [vmem:[%s3 + $0x80] sm:$0xff]
  %v1465 = vld [vmem:[%s3 + $0x88] sm:$0xff]
  %v1466 = vld [vmem:[%s3 + $0x90] sm:$0xff]
  %v1467 = vld [vmem:[%s3 + $0x98] sm:$0xff]
  %v1468 = vld [vmem:[%s3 + $0xa0] sm:$0xff]
  %v1469 = vld [vmem:[%s3 + $0xa8] sm:$0xff]
  %v1470 = vld [vmem:[%s3 + $0xb0] sm:$0xff]
  %v1471 = vld [vmem:[%s3 + $0xb8] sm:$0xff]
  %v1472 = vld [vmem:[%s3 + $0xc0] sm:$0xff]
  %v1473 = vld [vmem:[%s3 + $0xc8] sm:$0xff]
  %v1474 = vld [vmem:[%s3 + $0xd0] sm:$0xff]
  %v1475 = vld [vmem:[%s3 + $0xd8] sm:$0xff]
  %v1476 = vld [vmem:[%s3 + $0xe0] sm:$0xff]
  %v1477 = vld [vmem:[%s3 + $0xe8] sm:$0xff]
  %v1478 = vld [vmem:[%s3 + $0xf0] sm:$0xff]
  %v1479 = vld [vmem:[%s3 + $0xf8] sm:$0xff]
  %v1480 = vunpack.c.l.b16 %v1435
  %v1481 = vunpack.c.l.b16 %v1439
  %v1482 = vunpack.c.l.b16 %v1443
  %v1483 = vunpack.c.l.b16 %v1447
  %v1484 = vunpack.c.l.b16 %v1451
  %v1485 = vunpack.c.l.b16 %v1455
  %v1486 = vunpack.c.l.b16 %v1459
  %v1487 = vunpack.c.l.b16 %v1463
  %v1488 = vpack.c.b16 %v1481, %v1480
  %v1489 = vpack.c.b16 %v1483, %v1482
  %v1490 = vpack.c.b16 %v1485, %v1484
  %v1491 = vpack.c.b16 %v1487, %v1486
  %v1512 = vunpack.c.l.b16 %v1464
  %v1513 = vunpack.c.h.b16 %v1464
  %v1514 = vunpack.c.l.b16 %v1465
  %v1515 = vunpack.c.h.b16 %v1465
  %v1516 = vunpack.c.l.b16 %v1466
  %v1517 = vunpack.c.h.b16 %v1466
  %v1518 = vunpack.c.l.b16 %v1467
  %v1519 = vunpack.c.h.b16 %v1467
  %v1520 = vunpack.c.l.b16 %v1468
  %v1521 = vunpack.c.h.b16 %v1468
  %v1522 = vunpack.c.l.b16 %v1469
  %v1523 = vunpack.c.h.b16 %v1469
  %v1524 = vunpack.c.l.b16 %v1470
  %v1525 = vunpack.c.h.b16 %v1470
  %v1526 = vunpack.c.l.b16 %v1471
  %v1527 = vunpack.c.h.b16 %v1471
  %v1528 = vunpack.c.l.b16 %v1472
  %v1529 = vunpack.c.h.b16 %v1472
  %v1530 = vunpack.c.l.b16 %v1473
  %v1531 = vunpack.c.h.b16 %v1473
  %v1532 = vunpack.c.l.b16 %v1474
  %v1533 = vunpack.c.h.b16 %v1474
  %v1534 = vunpack.c.l.b16 %v1475
  %v1535 = vunpack.c.h.b16 %v1475
  %v1536 = vunpack.c.l.b16 %v1476
  %v1537 = vunpack.c.h.b16 %v1476
  %v1538 = vunpack.c.l.b16 %v1477
  %v1539 = vunpack.c.h.b16 %v1477
  %v1540 = vunpack.c.l.b16 %v1478
  %v1541 = vunpack.c.h.b16 %v1478
  %v1542 = vunpack.c.l.b16 %v1479
  %v1543 = vunpack.c.h.b16 %v1479
  %v1544 = vpack.c.b16 %v1514, %v1512
  %v1545 = vpack.c.b16 %v1515, %v1513
  %v1546 = vpack.c.b16 %v1518, %v1516
  %v1547 = vpack.c.b16 %v1519, %v1517
  %v1548 = vpack.c.b16 %v1522, %v1520
  %v1549 = vpack.c.b16 %v1523, %v1521
  %v1550 = vpack.c.b16 %v1526, %v1524
  %v1551 = vpack.c.b16 %v1527, %v1525
  %v1552 = vpack.c.b16 %v1530, %v1528
  %v1553 = vpack.c.b16 %v1531, %v1529
  %v1554 = vpack.c.b16 %v1534, %v1532
  %v1555 = vpack.c.b16 %v1535, %v1533
  %v1556 = vpack.c.b16 %v1538, %v1536
  %v1557 = vpack.c.b16 %v1539, %v1537
  %v1558 = vpack.c.b16 %v1542, %v1540
  %v1559 = vpack.c.b16 %v1543, %v1541
  %1576 = vmatpush.bf16.msra.mxu0 %v1558
  %1577 = vmatpush.bf16.msra.mxu0 %v1556
  %1578 = vmatpush.bf16.msra.mxu0 %v1554
  %1579 = vmatpush.bf16.msra.mxu0 %v1552
  %1580 = vmatpush.bf16.msra.mxu0 %v1550
  %1581 = vmatpush.bf16.msra.mxu0 %v1548
  %1582 = vmatpush.bf16.msra.mxu0 %v1546
  %1583 = vmatpush.bf16.msra.mxu0 %v1544
  %1584 = vmatmul.bf16.gmra.mxu0 %v1488
  %v1585 = vpop.f32.mrf.mxu0
  %v1586 = vadd.f32 0.0, %v1585
  %v1587 = vpop.f32.mrf.mxu0
  %v1588 = vadd.f32 0.0, %v1587
  %1589 = vmatmul.bf16.gmra.mxu0 %v1489
  %v1590 = vpop.f32.mrf.mxu0
  %v1591 = vadd.f32 0.0, %v1590
  %v1592 = vpop.f32.mrf.mxu0
  %v1593 = vadd.f32 0.0, %v1592
  %1594 = vmatmul.bf16.gmra.mxu0 %v1490
  %v1595 = vpop.f32.mrf.mxu0
  %v1596 = vadd.f32 0.0, %v1595
  %v1597 = vpop.f32.mrf.mxu0
  %v1598 = vadd.f32 0.0, %v1597
  %1599 = vmatmul.bf16.gmra.mxu0 %v1491
  %v1600 = vpop.f32.mrf.mxu0
  %v1601 = vadd.f32 0.0, %v1600
  %v1602 = vpop.f32.mrf.mxu0
  %v1603 = vadd.f32 0.0, %v1602
  %1604 = vdwg.mxu0
  %1605 = vmatpush.bf16.msra.mxu0 %v1559
  %1606 = vmatpush.bf16.msra.mxu0 %v1557
  %1607 = vmatpush.bf16.msra.mxu0 %v1555
  %1608 = vmatpush.bf16.msra.mxu0 %v1553
  %1609 = vmatpush.bf16.msra.mxu0 %v1551
  %1610 = vmatpush.bf16.msra.mxu0 %v1549
  %1611 = vmatpush.bf16.msra.mxu0 %v1547
  %1612 = vmatpush.bf16.msra.mxu0 %v1545
  %1613 = vmatmul.bf16.gmra.mxu0 %v1488
  %v1614 = vpop.f32.mrf.mxu0
  %v1615 = vadd.f32 0.0, %v1614
  %v1616 = vpop.f32.mrf.mxu0
  %v1617 = vadd.f32 0.0, %v1616
  %1618 = vmatmul.bf16.gmra.mxu0 %v1489
  %v1619 = vpop.f32.mrf.mxu0
  %v1620 = vadd.f32 0.0, %v1619
  %v1621 = vpop.f32.mrf.mxu0
  %v1622 = vadd.f32 0.0, %v1621
  %1623 = vmatmul.bf16.gmra.mxu0 %v1490
  %v1624 = vpop.f32.mrf.mxu0
  %v1625 = vadd.f32 0.0, %v1624
  %v1626 = vpop.f32.mrf.mxu0
  %v1627 = vadd.f32 0.0, %v1626
  %1628 = vmatmul.bf16.gmra.mxu0 %v1491
  %v1629 = vpop.f32.mrf.mxu0
  %v1630 = vadd.f32 0.0, %v1629
  %v1631 = vpop.f32.mrf.mxu0
  %v1632 = vadd.f32 0.0, %v1631
  %1633 = vdwg.mxu0
  %v1642 = vunpack.c.l.b16 %v1381
  %v1643 = vunpack.c.l.b16 %v1382
  %v1644 = vunpack.c.l.b16 %v1383
  %v1645 = vunpack.c.l.b16 %v1384
  %v1646 = vunpack.c.l.b16 %v1385
  %v1647 = vunpack.c.l.b16 %v1386
  %v1648 = vunpack.c.l.b16 %v1387
  %v1649 = vunpack.c.l.b16 %v1388
  %v1650 = vpack.c.b16 %v1643, %v1642
  %v1651 = vpack.c.b16 %v1645, %v1644
  %v1652 = vpack.c.b16 %v1647, %v1646
  %v1653 = vpack.c.b16 %v1649, %v1648
  %v1674 = vunpack.c.l.b16 %v1389
  %v1675 = vunpack.c.h.b16 %v1389
  %v1676 = vunpack.c.l.b16 %v1390
  %v1677 = vunpack.c.h.b16 %v1390
  %v1678 = vunpack.c.l.b16 %v1391
  %v1679 = vunpack.c.h.b16 %v1391
  %v1680 = vunpack.c.l.b16 %v1392
  %v1681 = vunpack.c.h.b16 %v1392
  %v1682 = vunpack.c.l.b16 %v1393
  %v1683 = vunpack.c.h.b16 %v1393
  %v1684 = vunpack.c.l.b16 %v1394
  %v1685 = vunpack.c.h.b16 %v1394
  %v1686 = vunpack.c.l.b16 %v1395
  %v1687 = vunpack.c.h.b16 %v1395
  %v1688 = vunpack.c.l.b16 %v1396
  %v1689 = vunpack.c.h.b16 %v1396
  %v1690 = vunpack.c.l.b16 %v1397
  %v1691 = vunpack.c.h.b16 %v1397
  %v1692 = vunpack.c.l.b16 %v1398
  %v1693 = vunpack.c.h.b16 %v1398
  %v1694 = vunpack.c.l.b16 %v1399
  %v1695 = vunpack.c.h.b16 %v1399
  %v1696 = vunpack.c.l.b16 %v1400
  %v1697 = vunpack.c.h.b16 %v1400
  %v1698 = vunpack.c.l.b16 %v1401
  %v1699 = vunpack.c.h.b16 %v1401
  %v1700 = vunpack.c.l.b16 %v1402
  %v1701 = vunpack.c.h.b16 %v1402
  %v1702 = vunpack.c.l.b16 %v1403
  %v1703 = vunpack.c.h.b16 %v1403
  %v1704 = vunpack.c.l.b16 %v1404
  %v1705 = vunpack.c.h.b16 %v1404
  %v1706 = vpack.c.b16 %v1676, %v1674
  %v1707 = vpack.c.b16 %v1677, %v1675
  %v1708 = vpack.c.b16 %v1680, %v1678
  %v1709 = vpack.c.b16 %v1681, %v1679
  %v1710 = vpack.c.b16 %v1684, %v1682
  %v1711 = vpack.c.b16 %v1685, %v1683
  %v1712 = vpack.c.b16 %v1688, %v1686
  %v1713 = vpack.c.b16 %v1689, %v1687
  %v1714 = vpack.c.b16 %v1692, %v1690
  %v1715 = vpack.c.b16 %v1693, %v1691
  %v1716 = vpack.c.b16 %v1696, %v1694
  %v1717 = vpack.c.b16 %v1697, %v1695
  %v1718 = vpack.c.b16 %v1700, %v1698
  %v1719 = vpack.c.b16 %v1701, %v1699
  %v1720 = vpack.c.b16 %v1704, %v1702
  %v1721 = vpack.c.b16 %v1705, %v1703
  %1738 = vmatpush.bf16.msra.mxu0 %v1720
  %1739 = vmatpush.bf16.msra.mxu0 %v1718
  %1740 = vmatpush.bf16.msra.mxu0 %v1716
  %1741 = vmatpush.bf16.msra.mxu0 %v1714
  %1742 = vmatpush.bf16.msra.mxu0 %v1712
  %1743 = vmatpush.bf16.msra.mxu0 %v1710
  %1744 = vmatpush.bf16.msra.mxu0 %v1708
  %1745 = vmatpush.bf16.msra.mxu0 %v1706
  %1746 = vmatmul.bf16.gmra.mxu0 %v1650
  %v1747 = vpop.f32.mrf.mxu0
  %v1748 = vadd.f32 %v1586, %v1747
  %v1749 = vpop.f32.mrf.mxu0
  %v1750 = vadd.f32 %v1588, %v1749
  %1751 = vmatmul.bf16.gmra.mxu0 %v1651
  %v1752 = vpop.f32.mrf.mxu0
  %v1753 = vadd.f32 %v1591, %v1752
  %v1754 = vpop.f32.mrf.mxu0
  %v1755 = vadd.f32 %v1593, %v1754
  %1756 = vmatmul.bf16.gmra.mxu0 %v1652
  %v1757 = vpop.f32.mrf.mxu0
  %v1758 = vadd.f32 %v1596, %v1757
  %v1759 = vpop.f32.mrf.mxu0
  %v1760 = vadd.f32 %v1598, %v1759
  %1761 = vmatmul.bf16.gmra.mxu0 %v1653
  %v1762 = vpop.f32.mrf.mxu0
  %v1763 = vadd.f32 %v1601, %v1762
  %v1764 = vpop.f32.mrf.mxu0
  %v1765 = vadd.f32 %v1603, %v1764
  %1766 = vdwg.mxu0
  %1767 = vmatpush.bf16.msra.mxu0 %v1721
  %1768 = vmatpush.bf16.msra.mxu0 %v1719
  %1769 = vmatpush.bf16.msra.mxu0 %v1717
  %1770 = vmatpush.bf16.msra.mxu0 %v1715
  %1771 = vmatpush.bf16.msra.mxu0 %v1713
  %1772 = vmatpush.bf16.msra.mxu0 %v1711
  %1773 = vmatpush.bf16.msra.mxu0 %v1709
  %1774 = vmatpush.bf16.msra.mxu0 %v1707
  %1775 = vmatmul.bf16.gmra.mxu0 %v1650
  %v1776 = vpop.f32.mrf.mxu0
  %v1777 = vadd.f32 %v1615, %v1776
  %v1778 = vpop.f32.mrf.mxu0
  %v1779 = vadd.f32 %v1617, %v1778
  %1780 = vmatmul.bf16.gmra.mxu0 %v1651
  %v1781 = vpop.f32.mrf.mxu0
  %v1782 = vadd.f32 %v1620, %v1781
  %v1783 = vpop.f32.mrf.mxu0
  %v1784 = vadd.f32 %v1622, %v1783
  %1785 = vmatmul.bf16.gmra.mxu0 %v1652
  %v1786 = vpop.f32.mrf.mxu0
  %v1787 = vadd.f32 %v1625, %v1786
  %v1788 = vpop.f32.mrf.mxu0
  %v1789 = vadd.f32 %v1627, %v1788
  %1790 = vmatmul.bf16.gmra.mxu0 %v1653
  %v1791 = vpop.f32.mrf.mxu0
  %v1792 = vadd.f32 %v1630, %v1791
  %v1793 = vpop.f32.mrf.mxu0
  %v1794 = vadd.f32 %v1632, %v1793
  %1795 = vdwg.mxu0
  %v1796 = vld [vmem:[%s4] sm:$0xf]
  %v1798 = vperm.slane %v1796, 0
  %v1799 = vperm.slane %v1796, 1
  %v1800 = vperm.slane %v1796, 2
  %v1801 = vperm.slane %v1796, 3
  %v1806 = vadd.f32 %v1349, %v1798
  %v1807 = vadd.f32 %v1350, %v1799
  %v1808 = vadd.f32 %v1351, %v1800
  %v1809 = vadd.f32 %v1352, %v1801
  %v1810 = vadd.f32 %v1353, %v1798
  %v1811 = vadd.f32 %v1354, %v1799
  %v1812 = vadd.f32 %v1355, %v1800
  %v1813 = vadd.f32 %v1356, %v1801
  %v1814 = vadd.f32 %v1357, %v1798
  %v1815 = vadd.f32 %v1358, %v1799
  %v1816 = vadd.f32 %v1359, %v1800
  %v1817 = vadd.f32 %v1360, %v1801
  %v1818 = vadd.f32 %v1361, %v1798
  %v1819 = vadd.f32 %v1362, %v1799
  %v1820 = vadd.f32 %v1363, %v1800
  %v1821 = vadd.f32 %v1364, %v1801
  %v1822 = vadd.f32 %v1365, %v1798
  %v1823 = vadd.f32 %v1366, %v1799
  %v1824 = vadd.f32 %v1367, %v1800
  %v1825 = vadd.f32 %v1368, %v1801
  %v1826 = vadd.f32 %v1369, %v1798
  %v1827 = vadd.f32 %v1370, %v1799
  %v1828 = vadd.f32 %v1371, %v1800
  %v1829 = vadd.f32 %v1372, %v1801
  %v1830 = vadd.f32 %v1373, %v1798
  %v1831 = vadd.f32 %v1374, %v1799
  %v1832 = vadd.f32 %v1375, %v1800
  %v1833 = vadd.f32 %v1376, %v1801
  %v1834 = vadd.f32 %v1377, %v1798
  %v1835 = vadd.f32 %v1378, %v1799
  %v1836 = vadd.f32 %v1379, %v1800
  %v1837 = vadd.f32 %v1380, %v1801
  %v1838 = vadd.f32 %v1808, %v1748
  %v1839 = vadd.f32 %v1812, %v1750
  %v1840 = vadd.f32 %v1816, %v1753
  %v1841 = vadd.f32 %v1820, %v1755
  %v1842 = vadd.f32 %v1824, %v1758
  %v1843 = vadd.f32 %v1828, %v1760
  %v1844 = vadd.f32 %v1832, %v1763
  %v1845 = vadd.f32 %v1836, %v1765
  %v1846 = vadd.f32 %v1809, %v1777
  %v1847 = vadd.f32 %v1813, %v1779
  %v1848 = vadd.f32 %v1817, %v1782
  %v1849 = vadd.f32 %v1821, %v1784
  %v1850 = vadd.f32 %v1825, %v1787
  %v1851 = vadd.f32 %v1829, %v1789
  %v1852 = vadd.f32 %v1833, %v1792
  %v1853 = vadd.f32 %v1837, %v1794
  %v1854 = vxor.u32 %v1807, 2147483648
  %v1855 = vxor.u32 %v1811, 2147483648
  %v1856 = vxor.u32 %v1815, 2147483648
  %v1857 = vxor.u32 %v1819, 2147483648
  %v1858 = vxor.u32 %v1823, 2147483648
  %v1859 = vxor.u32 %v1827, 2147483648
  %v1860 = vxor.u32 %v1831, 2147483648
  %v1861 = vxor.u32 %v1835, 2147483648
  %v1862 = vmul.f32 %v1854, 1.442695
  %v1863 = vpow.pop %v1862
  %v1864 = vmul.f32 %v1855, 1.442695
  %v1865 = vpow.pop %v1864
  %v1866 = vmul.f32 %v1856, 1.442695
  %v1867 = vpow.pop %v1866
  %v1868 = vmul.f32 %v1857, 1.442695
  %v1869 = vpow.pop %v1868
  %v1870 = vmul.f32 %v1858, 1.442695
  %v1871 = vpow.pop %v1870
  %v1872 = vmul.f32 %v1859, 1.442695
  %v1873 = vpow.pop %v1872
  %v1874 = vmul.f32 %v1860, 1.442695
  %v1875 = vpow.pop %v1874
  %v1876 = vmul.f32 %v1861, 1.442695
  %v1877 = vpow.pop %v1876
  %v1878 = vadd.f32 %v1863, 1.0
  %v1879 = vadd.f32 %v1865, 1.0
  %v1880 = vadd.f32 %v1867, 1.0
  %v1881 = vadd.f32 %v1869, 1.0
  %v1882 = vadd.f32 %v1871, 1.0
  %v1883 = vadd.f32 %v1873, 1.0
  %v1884 = vadd.f32 %v1875, 1.0
  %v1885 = vadd.f32 %v1877, 1.0
  %v1886 = vrcp.pop %v1878
  %v1887 = vmul.f32 %v1878, %v1886
  %v1888 = vsub.f32 1.0, %v1887
  %v1889 = vmul.f32 %v1886, %v1888
  %v1890 = vadd.f32 %v1886, %v1889
  %vm1891 = vweird.f32 %v1878
  %vm1892 = vweird.f32 %v1886
  %vm1893 = vmor %vm1891, %vm1892
  %v1894 = vsel %vm1893, %v1886, %v1890
  %v1895 = vand.u32 2147483647, %v1878
  %vm1896 = vcmp.eq.f32.partialorder %v1895, 8.507059e+37
  %v1897 = vand.u32 %v1878, 2147483648
  %v1898 = vor.u32 1.1754944e-38, %v1897
  %v1899 = vsel %vm1896, %v1898, %v1894
  %v1900 = vmul.f32 1.0, %v1899
  %v1901 = vrcp.pop %v1879
  %v1902 = vmul.f32 %v1879, %v1901
  %v1903 = vsub.f32 1.0, %v1902
  %v1904 = vmul.f32 %v1901, %v1903
  %v1905 = vadd.f32 %v1901, %v1904
  %vm1906 = vweird.f32 %v1879
  %vm1907 = vweird.f32 %v1901
  %vm1908 = vmor %vm1906, %vm1907
  %v1909 = vsel %vm1908, %v1901, %v1905
  %v1910 = vand.u32 2147483647, %v1879
  %vm1911 = vcmp.eq.f32.partialorder %v1910, 8.507059e+37
  %v1912 = vand.u32 %v1879, 2147483648
  %v1913 = vor.u32 1.1754944e-38, %v1912
  %v1914 = vsel %vm1911, %v1913, %v1909
  %v1915 = vmul.f32 1.0, %v1914
  %v1916 = vrcp.pop %v1880
  %v1917 = vmul.f32 %v1880, %v1916
  %v1918 = vsub.f32 1.0, %v1917
  %v1919 = vmul.f32 %v1916, %v1918
  %v1920 = vadd.f32 %v1916, %v1919
  %vm1921 = vweird.f32 %v1880
  %vm1922 = vweird.f32 %v1916
  %vm1923 = vmor %vm1921, %vm1922
  %v1924 = vsel %vm1923, %v1916, %v1920
  %v1925 = vand.u32 2147483647, %v1880
  %vm1926 = vcmp.eq.f32.partialorder %v1925, 8.507059e+37
  %v1927 = vand.u32 %v1880, 2147483648
  %v1928 = vor.u32 1.1754944e-38, %v1927
  %v1929 = vsel %vm1926, %v1928, %v1924
  %v1930 = vmul.f32 1.0, %v1929
  %v1931 = vrcp.pop %v1881
  %v1932 = vmul.f32 %v1881, %v1931
  %v1933 = vsub.f32 1.0, %v1932
  %v1934 = vmul.f32 %v1931, %v1933
  %v1935 = vadd.f32 %v1931, %v1934
  %vm1936 = vweird.f32 %v1881
  %vm1937 = vweird.f32 %v1931
  %vm1938 = vmor %vm1936, %vm1937
  %v1939 = vsel %vm1938, %v1931, %v1935
  %v1940 = vand.u32 2147483647, %v1881
  %vm1941 = vcmp.eq.f32.partialorder %v1940, 8.507059e+37
  %v1942 = vand.u32 %v1881, 2147483648
  %v1943 = vor.u32 1.1754944e-38, %v1942
  %v1944 = vsel %vm1941, %v1943, %v1939
  %v1945 = vmul.f32 1.0, %v1944
  %v1946 = vrcp.pop %v1882
  %v1947 = vmul.f32 %v1882, %v1946
  %v1948 = vsub.f32 1.0, %v1947
  %v1949 = vmul.f32 %v1946, %v1948
  %v1950 = vadd.f32 %v1946, %v1949
  %vm1951 = vweird.f32 %v1882
  %vm1952 = vweird.f32 %v1946
  %vm1953 = vmor %vm1951, %vm1952
  %v1954 = vsel %vm1953, %v1946, %v1950
  %v1955 = vand.u32 2147483647, %v1882
  %vm1956 = vcmp.eq.f32.partialorder %v1955, 8.507059e+37
  %v1957 = vand.u32 %v1882, 2147483648
  %v1958 = vor.u32 1.1754944e-38, %v1957
  %v1959 = vsel %vm1956, %v1958, %v1954
  %v1960 = vmul.f32 1.0, %v1959
  %v1961 = vrcp.pop %v1883
  %v1962 = vmul.f32 %v1883, %v1961
  %v1963 = vsub.f32 1.0, %v1962
  %v1964 = vmul.f32 %v1961, %v1963
  %v1965 = vadd.f32 %v1961, %v1964
  %vm1966 = vweird.f32 %v1883
  %vm1967 = vweird.f32 %v1961
  %vm1968 = vmor %vm1966, %vm1967
  %v1969 = vsel %vm1968, %v1961, %v1965
  %v1970 = vand.u32 2147483647, %v1883
  %vm1971 = vcmp.eq.f32.partialorder %v1970, 8.507059e+37
  %v1972 = vand.u32 %v1883, 2147483648
  %v1973 = vor.u32 1.1754944e-38, %v1972
  %v1974 = vsel %vm1971, %v1973, %v1969
  %v1975 = vmul.f32 1.0, %v1974
  %v1976 = vrcp.pop %v1884
  %v1977 = vmul.f32 %v1884, %v1976
  %v1978 = vsub.f32 1.0, %v1977
  %v1979 = vmul.f32 %v1976, %v1978
  %v1980 = vadd.f32 %v1976, %v1979
  %vm1981 = vweird.f32 %v1884
  %vm1982 = vweird.f32 %v1976
  %vm1983 = vmor %vm1981, %vm1982
  %v1984 = vsel %vm1983, %v1976, %v1980
  %v1985 = vand.u32 2147483647, %v1884
  %vm1986 = vcmp.eq.f32.partialorder %v1985, 8.507059e+37
  %v1987 = vand.u32 %v1884, 2147483648
  %v1988 = vor.u32 1.1754944e-38, %v1987
  %v1989 = vsel %vm1986, %v1988, %v1984
  %v1990 = vmul.f32 1.0, %v1989
  %v1991 = vrcp.pop %v1885
  %v1992 = vmul.f32 %v1885, %v1991
  %v1993 = vsub.f32 1.0, %v1992
  %v1994 = vmul.f32 %v1991, %v1993
  %v1995 = vadd.f32 %v1991, %v1994
  %vm1996 = vweird.f32 %v1885
  %vm1997 = vweird.f32 %v1991
  %vm1998 = vmor %vm1996, %vm1997
  %v1999 = vsel %vm1998, %v1991, %v1995
  %v2000 = vand.u32 2147483647, %v1885
  %vm2001 = vcmp.eq.f32.partialorder %v2000, 8.507059e+37
  %v2002 = vand.u32 %v1885, 2147483648
  %v2003 = vor.u32 1.1754944e-38, %v2002
  %v2004 = vsel %vm2001, %v2003, %v1999
  %v2005 = vmul.f32 1.0, %v2004
  %v2006 = vmul.f32 %v1806, %v1900
  %v2007 = vmul.f32 %v1810, %v1915
  %v2008 = vmul.f32 %v1814, %v1930
  %v2009 = vmul.f32 %v1818, %v1945
  %v2010 = vmul.f32 %v1822, %v1960
  %v2011 = vmul.f32 %v1826, %v1975
  %v2012 = vmul.f32 %v1830, %v1990
  %v2013 = vmul.f32 %v1834, %v2005
  %v2014 = vxor.u32 %v1846, 2147483648
  %v2015 = vxor.u32 %v1847, 2147483648
  %v2016 = vxor.u32 %v1848, 2147483648
  %v2017 = vxor.u32 %v1849, 2147483648
  %v2018 = vxor.u32 %v1850, 2147483648
  %v2019 = vxor.u32 %v1851, 2147483648
  %v2020 = vxor.u32 %v1852, 2147483648
  %v2021 = vxor.u32 %v1853, 2147483648
  %v2022 = vmul.f32 %v2014, 1.442695
  %v2023 = vpow.pop %v2022
  %v2024 = vmul.f32 %v2015, 1.442695
  %v2025 = vpow.pop %v2024
  %v2026 = vmul.f32 %v2016, 1.442695
  %v2027 = vpow.pop %v2026
  %v2028 = vmul.f32 %v2017, 1.442695
  %v2029 = vpow.pop %v2028
  %v2030 = vmul.f32 %v2018, 1.442695
  %v2031 = vpow.pop %v2030
  %v2032 = vmul.f32 %v2019, 1.442695
  %v2033 = vpow.pop %v2032
  %v2034 = vmul.f32 %v2020, 1.442695
  %v2035 = vpow.pop %v2034
  %v2036 = vmul.f32 %v2021, 1.442695
  %v2037 = vpow.pop %v2036
  %v2038 = vadd.f32 %v2023, 1.0
  %v2039 = vadd.f32 %v2025, 1.0
  %v2040 = vadd.f32 %v2027, 1.0
  %v2041 = vadd.f32 %v2029, 1.0
  %v2042 = vadd.f32 %v2031, 1.0
  %v2043 = vadd.f32 %v2033, 1.0
  %v2044 = vadd.f32 %v2035, 1.0
  %v2045 = vadd.f32 %v2037, 1.0
  %v2046 = vrcp.pop %v2038
  %v2047 = vmul.f32 %v2038, %v2046
  %v2048 = vsub.f32 1.0, %v2047
  %v2049 = vmul.f32 %v2046, %v2048
  %v2050 = vadd.f32 %v2046, %v2049
  %vm2051 = vweird.f32 %v2038
  %vm2052 = vweird.f32 %v2046
  %vm2053 = vmor %vm2051, %vm2052
  %v2054 = vsel %vm2053, %v2046, %v2050
  %v2055 = vand.u32 2147483647, %v2038
  %vm2056 = vcmp.eq.f32.partialorder %v2055, 8.507059e+37
  %v2057 = vand.u32 %v2038, 2147483648
  %v2058 = vor.u32 1.1754944e-38, %v2057
  %v2059 = vsel %vm2056, %v2058, %v2054
  %v2060 = vmul.f32 1.0, %v2059
  %v2061 = vrcp.pop %v2039
  %v2062 = vmul.f32 %v2039, %v2061
  %v2063 = vsub.f32 1.0, %v2062
  %v2064 = vmul.f32 %v2061, %v2063
  %v2065 = vadd.f32 %v2061, %v2064
  %vm2066 = vweird.f32 %v2039
  %vm2067 = vweird.f32 %v2061
  %vm2068 = vmor %vm2066, %vm2067
  %v2069 = vsel %vm2068, %v2061, %v2065
  %v2070 = vand.u32 2147483647, %v2039
  %vm2071 = vcmp.eq.f32.partialorder %v2070, 8.507059e+37
  %v2072 = vand.u32 %v2039, 2147483648
  %v2073 = vor.u32 1.1754944e-38, %v2072
  %v2074 = vsel %vm2071, %v2073, %v2069
  %v2075 = vmul.f32 1.0, %v2074
  %v2076 = vrcp.pop %v2040
  %v2077 = vmul.f32 %v2040, %v2076
  %v2078 = vsub.f32 1.0, %v2077
  %v2079 = vmul.f32 %v2076, %v2078
  %v2080 = vadd.f32 %v2076, %v2079
  %vm2081 = vweird.f32 %v2040
  %vm2082 = vweird.f32 %v2076
  %vm2083 = vmor %vm2081, %vm2082
  %v2084 = vsel %vm2083, %v2076, %v2080
  %v2085 = vand.u32 2147483647, %v2040
  %vm2086 = vcmp.eq.f32.partialorder %v2085, 8.507059e+37
  %v2087 = vand.u32 %v2040, 2147483648
  %v2088 = vor.u32 1.1754944e-38, %v2087
  %v2089 = vsel %vm2086, %v2088, %v2084
  %v2090 = vmul.f32 1.0, %v2089
  %v2091 = vrcp.pop %v2041
  %v2092 = vmul.f32 %v2041, %v2091
  %v2093 = vsub.f32 1.0, %v2092
  %v2094 = vmul.f32 %v2091, %v2093
  %v2095 = vadd.f32 %v2091, %v2094
  %vm2096 = vweird.f32 %v2041
  %vm2097 = vweird.f32 %v2091
  %vm2098 = vmor %vm2096, %vm2097
  %v2099 = vsel %vm2098, %v2091, %v2095
  %v2100 = vand.u32 2147483647, %v2041
  %vm2101 = vcmp.eq.f32.partialorder %v2100, 8.507059e+37
  %v2102 = vand.u32 %v2041, 2147483648
  %v2103 = vor.u32 1.1754944e-38, %v2102
  %v2104 = vsel %vm2101, %v2103, %v2099
  %v2105 = vmul.f32 1.0, %v2104
  %v2106 = vrcp.pop %v2042
  %v2107 = vmul.f32 %v2042, %v2106
  %v2108 = vsub.f32 1.0, %v2107
  %v2109 = vmul.f32 %v2106, %v2108
  %v2110 = vadd.f32 %v2106, %v2109
  %vm2111 = vweird.f32 %v2042
  %vm2112 = vweird.f32 %v2106
  %vm2113 = vmor %vm2111, %vm2112
  %v2114 = vsel %vm2113, %v2106, %v2110
  %v2115 = vand.u32 2147483647, %v2042
  %vm2116 = vcmp.eq.f32.partialorder %v2115, 8.507059e+37
  %v2117 = vand.u32 %v2042, 2147483648
  %v2118 = vor.u32 1.1754944e-38, %v2117
  %v2119 = vsel %vm2116, %v2118, %v2114
  %v2120 = vmul.f32 1.0, %v2119
  %v2121 = vrcp.pop %v2043
  %v2122 = vmul.f32 %v2043, %v2121
  %v2123 = vsub.f32 1.0, %v2122
  %v2124 = vmul.f32 %v2121, %v2123
  %v2125 = vadd.f32 %v2121, %v2124
  %vm2126 = vweird.f32 %v2043
  %vm2127 = vweird.f32 %v2121
  %vm2128 = vmor %vm2126, %vm2127
  %v2129 = vsel %vm2128, %v2121, %v2125
  %v2130 = vand.u32 2147483647, %v2043
  %vm2131 = vcmp.eq.f32.partialorder %v2130, 8.507059e+37
  %v2132 = vand.u32 %v2043, 2147483648
  %v2133 = vor.u32 1.1754944e-38, %v2132
  %v2134 = vsel %vm2131, %v2133, %v2129
  %v2135 = vmul.f32 1.0, %v2134
  %v2136 = vrcp.pop %v2044
  %v2137 = vmul.f32 %v2044, %v2136
  %v2138 = vsub.f32 1.0, %v2137
  %v2139 = vmul.f32 %v2136, %v2138
  %v2140 = vadd.f32 %v2136, %v2139
  %vm2141 = vweird.f32 %v2044
  %vm2142 = vweird.f32 %v2136
  %vm2143 = vmor %vm2141, %vm2142
  %v2144 = vsel %vm2143, %v2136, %v2140
  %v2145 = vand.u32 2147483647, %v2044
  %vm2146 = vcmp.eq.f32.partialorder %v2145, 8.507059e+37
  %v2147 = vand.u32 %v2044, 2147483648
  %v2148 = vor.u32 1.1754944e-38, %v2147
  %v2149 = vsel %vm2146, %v2148, %v2144
  %v2150 = vmul.f32 1.0, %v2149
  %v2151 = vrcp.pop %v2045
  %v2152 = vmul.f32 %v2045, %v2151
  %v2153 = vsub.f32 1.0, %v2152
  %v2154 = vmul.f32 %v2151, %v2153
  %v2155 = vadd.f32 %v2151, %v2154
  %vm2156 = vweird.f32 %v2045
  %vm2157 = vweird.f32 %v2151
  %vm2158 = vmor %vm2156, %vm2157
  %v2159 = vsel %vm2158, %v2151, %v2155
  %v2160 = vand.u32 2147483647, %v2045
  %vm2161 = vcmp.eq.f32.partialorder %v2160, 8.507059e+37
  %v2162 = vand.u32 %v2045, 2147483648
  %v2163 = vor.u32 1.1754944e-38, %v2162
  %v2164 = vsel %vm2161, %v2163, %v2159
  %v2165 = vmul.f32 1.0, %v2164
  %v2166 = vmul.f32 %v1838, %v2060
  %v2167 = vmul.f32 %v1839, %v2075
  %v2168 = vmul.f32 %v1840, %v2090
  %v2169 = vmul.f32 %v1841, %v2105
  %v2170 = vmul.f32 %v1842, %v2120
  %v2171 = vmul.f32 %v1843, %v2135
  %v2172 = vmul.f32 %v1844, %v2150
  %v2173 = vmul.f32 %v1845, %v2165
  %v2174 = vrot.slane %v2006, 4
  %v2175 = vmax.f32 %v2006, %v2174
  %v2176 = vrot.slane %v2175, 2
  %v2177 = vmax.f32 %v2175, %v2176
  %v2178 = vrot.slane %v2177, 1
  %v2179 = vmax.f32 %v2177, %v2178
  %v2180 = vrot.slane %v2166, 4
  %v2181 = vmax.f32 %v2166, %v2180
  %v2182 = vrot.slane %v2181, 2
  %v2183 = vmax.f32 %v2181, %v2182
  %v2184 = vrot.slane %v2183, 1
  %v2185 = vmax.f32 %v2183, %v2184
  %v2186 = vrot.slane %v2007, 4
  %v2187 = vmax.f32 %v2007, %v2186
  %v2188 = vrot.slane %v2187, 2
  %v2189 = vmax.f32 %v2187, %v2188
  %v2190 = vrot.slane %v2189, 1
  %v2191 = vmax.f32 %v2189, %v2190
  %v2192 = vrot.slane %v2167, 4
  %v2193 = vmax.f32 %v2167, %v2192
  %v2194 = vrot.slane %v2193, 2
  %v2195 = vmax.f32 %v2193, %v2194
  %v2196 = vrot.slane %v2195, 1
  %v2197 = vmax.f32 %v2195, %v2196
  %v2198 = vrot.slane %v2008, 4
  %v2199 = vmax.f32 %v2008, %v2198
  %v2200 = vrot.slane %v2199, 2
  %v2201 = vmax.f32 %v2199, %v2200
  %v2202 = vrot.slane %v2201, 1
  %v2203 = vmax.f32 %v2201, %v2202
  %v2204 = vrot.slane %v2168, 4
  %v2205 = vmax.f32 %v2168, %v2204
  %v2206 = vrot.slane %v2205, 2
  %v2207 = vmax.f32 %v2205, %v2206
  %v2208 = vrot.slane %v2207, 1
  %v2209 = vmax.f32 %v2207, %v2208
  %v2210 = vrot.slane %v2009, 4
  %v2211 = vmax.f32 %v2009, %v2210
  %v2212 = vrot.slane %v2211, 2
  %v2213 = vmax.f32 %v2211, %v2212
  %v2214 = vrot.slane %v2213, 1
  %v2215 = vmax.f32 %v2213, %v2214
  %v2216 = vrot.slane %v2169, 4
  %v2217 = vmax.f32 %v2169, %v2216
  %v2218 = vrot.slane %v2217, 2
  %v2219 = vmax.f32 %v2217, %v2218
  %v2220 = vrot.slane %v2219, 1
  %v2221 = vmax.f32 %v2219, %v2220
  %v2222 = vrot.slane %v2010, 4
  %v2223 = vmax.f32 %v2010, %v2222
  %v2224 = vrot.slane %v2223, 2
  %v2225 = vmax.f32 %v2223, %v2224
  %v2226 = vrot.slane %v2225, 1
  %v2227 = vmax.f32 %v2225, %v2226
  %v2228 = vrot.slane %v2170, 4
  %v2229 = vmax.f32 %v2170, %v2228
  %v2230 = vrot.slane %v2229, 2
  %v2231 = vmax.f32 %v2229, %v2230
  %v2232 = vrot.slane %v2231, 1
  %v2233 = vmax.f32 %v2231, %v2232
  %v2234 = vrot.slane %v2011, 4
  %v2235 = vmax.f32 %v2011, %v2234
  %v2236 = vrot.slane %v2235, 2
  %v2237 = vmax.f32 %v2235, %v2236
  %v2238 = vrot.slane %v2237, 1
  %v2239 = vmax.f32 %v2237, %v2238
  %v2240 = vrot.slane %v2171, 4
  %v2241 = vmax.f32 %v2171, %v2240
  %v2242 = vrot.slane %v2241, 2
  %v2243 = vmax.f32 %v2241, %v2242
  %v2244 = vrot.slane %v2243, 1
  %v2245 = vmax.f32 %v2243, %v2244
  %v2246 = vrot.slane %v2012, 4
  %v2247 = vmax.f32 %v2012, %v2246
  %v2248 = vrot.slane %v2247, 2
  %v2249 = vmax.f32 %v2247, %v2248
  %v2250 = vrot.slane %v2249, 1
  %v2251 = vmax.f32 %v2249, %v2250
  %v2252 = vrot.slane %v2172, 4
  %v2253 = vmax.f32 %v2172, %v2252
  %v2254 = vrot.slane %v2253, 2
  %v2255 = vmax.f32 %v2253, %v2254
  %v2256 = vrot.slane %v2255, 1
  %v2257 = vmax.f32 %v2255, %v2256
  %v2258 = vrot.slane %v2013, 4
  %v2259 = vmax.f32 %v2013, %v2258
  %v2260 = vrot.slane %v2259, 2
  %v2261 = vmax.f32 %v2259, %v2260
  %v2262 = vrot.slane %v2261, 1
  %v2263 = vmax.f32 %v2261, %v2262
  %v2264 = vrot.slane %v2173, 4
  %v2265 = vmax.f32 %v2173, %v2264
  %v2266 = vrot.slane %v2265, 2
  %v2267 = vmax.f32 %v2265, %v2266
  %v2268 = vrot.slane %v2267, 1
  %v2269 = vmax.f32 %v2267, %v2268
  %v2270 = vld [vmem:[%s1] sm:$0xf]
  %v2271 = vld [vmem:[%s1 + $0x4] sm:$0xf]
  %v2272 = vld [vmem:[%s1 + $0x8] sm:$0x1]
  %v2273 = vld [vmem:[%s1 + $0xc] sm:$0xf]
  %v2274 = vld [vmem:[%s1 + $0x10] sm:$0xf]
  %v2275 = vld [vmem:[%s1 + $0x14] sm:$0x1]
  %v2276 = vld [vmem:[%s1 + $0x18] sm:$0xf]
  %v2277 = vld [vmem:[%s1 + $0x1c] sm:$0xf]
  %v2278 = vld [vmem:[%s1 + $0x20] sm:$0x1]
  %v2279 = vld [vmem:[%s1 + $0x24] sm:$0xf]
  %v2280 = vld [vmem:[%s1 + $0x28] sm:$0xf]
  %v2281 = vld [vmem:[%s1 + $0x2c] sm:$0x1]
  %v2282 = vld [vmem:[%s1 + $0x30] sm:$0xf]
  %v2283 = vld [vmem:[%s1 + $0x34] sm:$0xf]
  %v2284 = vld [vmem:[%s1 + $0x38] sm:$0x1]
  %v2285 = vld [vmem:[%s1 + $0x3c] sm:$0xf]
  %v2286 = vld [vmem:[%s1 + $0x40] sm:$0xf]
  %v2287 = vld [vmem:[%s1 + $0x44] sm:$0x1]
  %v2288 = vld [vmem:[%s1 + $0x48] sm:$0xf]
  %v2289 = vld [vmem:[%s1 + $0x4c] sm:$0xf]
  %v2290 = vld [vmem:[%s1 + $0x50] sm:$0x1]
  %v2291 = vld [vmem:[%s1 + $0x54] sm:$0xf]
  %v2292 = vld [vmem:[%s1 + $0x58] sm:$0xf]
  %v2293 = vld [vmem:[%s1 + $0x5c] sm:$0x1]
  %v2295 = vshrl.u32 %v2270, 16
  %v2297 = vrot.slane %v2295, 4
  %v2298 = vshll.u32 %v2270, 16
  %v2300 = vrot.slane %v2298, 5
  %v2301 = vor.u32 %v2297, %v2300
  %v2302 = vrot.slane %v2301, 4
  %v2304 = vshll.u32 %v2271, 16
  %v2306 = vrot.slane %v2304, 5
  %v2307 = vsel %vm50, %v2302, %v2306
  %v2308 = vshrl.u32 %v2271, 16
  %v2310 = vrot.slane %v2308, 4
  %v2311 = vor.u32 %v2310, %v2306
  %v2312 = vrot.slane %v2311, 4
  %v2314 = vshll.u32 %v2272, 16
  %v2316 = vrot.slane %v2314, 5
  %v2317 = vsel %vm50, %v2312, %v2316
  %v2319 = vshrl.u32 %v2273, 16
  %v2321 = vrot.slane %v2319, 4
  %v2322 = vshll.u32 %v2273, 16
  %v2324 = vrot.slane %v2322, 5
  %v2325 = vor.u32 %v2321, %v2324
  %v2326 = vrot.slane %v2325, 4
  %v2328 = vshll.u32 %v2274, 16
  %v2330 = vrot.slane %v2328, 5
  %v2331 = vsel %vm50, %v2326, %v2330
  %v2332 = vshrl.u32 %v2274, 16
  %v2334 = vrot.slane %v2332, 4
  %v2335 = vor.u32 %v2334, %v2330
  %v2336 = vrot.slane %v2335, 4
  %v2338 = vshll.u32 %v2275, 16
  %v2340 = vrot.slane %v2338, 5
  %v2341 = vsel %vm50, %v2336, %v2340
  %v2343 = vshrl.u32 %v2276, 16
  %v2345 = vrot.slane %v2343, 4
  %v2346 = vshll.u32 %v2276, 16
  %v2348 = vrot.slane %v2346, 5
  %v2349 = vor.u32 %v2345, %v2348
  %v2350 = vrot.slane %v2349, 4
  %v2352 = vshll.u32 %v2277, 16
  %v2354 = vrot.slane %v2352, 5
  %v2355 = vsel %vm50, %v2350, %v2354
  %v2356 = vshrl.u32 %v2277, 16
  %v2358 = vrot.slane %v2356, 4
  %v2359 = vor.u32 %v2358, %v2354
  %v2360 = vrot.slane %v2359, 4
  %v2362 = vshll.u32 %v2278, 16
  %v2364 = vrot.slane %v2362, 5
  %v2365 = vsel %vm50, %v2360, %v2364
  %v2367 = vshrl.u32 %v2279, 16
  %v2369 = vrot.slane %v2367, 4
  %v2370 = vshll.u32 %v2279, 16
  %v2372 = vrot.slane %v2370, 5
  %v2373 = vor.u32 %v2369, %v2372
  %v2374 = vrot.slane %v2373, 4
  %v2376 = vshll.u32 %v2280, 16
  %v2378 = vrot.slane %v2376, 5
  %v2379 = vsel %vm50, %v2374, %v2378
  %v2380 = vshrl.u32 %v2280, 16
  %v2382 = vrot.slane %v2380, 4
  %v2383 = vor.u32 %v2382, %v2378
  %v2384 = vrot.slane %v2383, 4
  %v2386 = vshll.u32 %v2281, 16
  %v2388 = vrot.slane %v2386, 5
  %v2389 = vsel %vm50, %v2384, %v2388
  %v2391 = vshrl.u32 %v2282, 16
  %v2393 = vrot.slane %v2391, 4
  %v2394 = vshll.u32 %v2282, 16
  %v2396 = vrot.slane %v2394, 5
  %v2397 = vor.u32 %v2393, %v2396
  %v2398 = vrot.slane %v2397, 4
  %v2400 = vshll.u32 %v2283, 16
  %v2402 = vrot.slane %v2400, 5
  %v2403 = vsel %vm50, %v2398, %v2402
  %v2404 = vshrl.u32 %v2283, 16
  %v2406 = vrot.slane %v2404, 4
  %v2407 = vor.u32 %v2406, %v2402
  %v2408 = vrot.slane %v2407, 4
  %v2410 = vshll.u32 %v2284, 16
  %v2412 = vrot.slane %v2410, 5
  %v2413 = vsel %vm50, %v2408, %v2412
  %v2415 = vshrl.u32 %v2285, 16
  %v2417 = vrot.slane %v2415, 4
  %v2418 = vshll.u32 %v2285, 16
  %v2420 = vrot.slane %v2418, 5
  %v2421 = vor.u32 %v2417, %v2420
  %v2422 = vrot.slane %v2421, 4
  %v2424 = vshll.u32 %v2286, 16
  %v2426 = vrot.slane %v2424, 5
  %v2427 = vsel %vm50, %v2422, %v2426
  %v2428 = vshrl.u32 %v2286, 16
  %v2430 = vrot.slane %v2428, 4
  %v2431 = vor.u32 %v2430, %v2426
  %v2432 = vrot.slane %v2431, 4
  %v2434 = vshll.u32 %v2287, 16
  %v2436 = vrot.slane %v2434, 5
  %v2437 = vsel %vm50, %v2432, %v2436
  %v2439 = vshrl.u32 %v2288, 16
  %v2441 = vrot.slane %v2439, 4
  %v2442 = vshll.u32 %v2288, 16
  %v2444 = vrot.slane %v2442, 5
  %v2445 = vor.u32 %v2441, %v2444
  %v2446 = vrot.slane %v2445, 4
  %v2448 = vshll.u32 %v2289, 16
  %v2450 = vrot.slane %v2448, 5
  %v2451 = vsel %vm50, %v2446, %v2450
  %v2452 = vshrl.u32 %v2289, 16
  %v2454 = vrot.slane %v2452, 4
  %v2455 = vor.u32 %v2454, %v2450
  %v2456 = vrot.slane %v2455, 4
  %v2458 = vshll.u32 %v2290, 16
  %v2460 = vrot.slane %v2458, 5
  %v2461 = vsel %vm50, %v2456, %v2460
  %v2463 = vshrl.u32 %v2291, 16
  %v2465 = vrot.slane %v2463, 4
  %v2466 = vshll.u32 %v2291, 16
  %v2468 = vrot.slane %v2466, 5
  %v2469 = vor.u32 %v2465, %v2468
  %v2470 = vrot.slane %v2469, 4
  %v2472 = vshll.u32 %v2292, 16
  %v2474 = vrot.slane %v2472, 5
  %v2475 = vsel %vm50, %v2470, %v2474
  %v2476 = vshrl.u32 %v2292, 16
  %v2478 = vrot.slane %v2476, 4
  %v2479 = vor.u32 %v2478, %v2474
  %v2480 = vrot.slane %v2479, 4
  %v2482 = vshll.u32 %v2293, 16
  %v2484 = vrot.slane %v2482, 5
  %v2485 = vsel %vm50, %v2480, %v2484
  %v2486 = vld [vmem:[%s1] sm:$0xe]
  %v2487 = vld [vmem:[%s1 + $0xc] sm:$0xe]
  %v2488 = vld [vmem:[%s1 + $0x18] sm:$0xe]
  %v2489 = vld [vmem:[%s1 + $0x24] sm:$0xe]
  %v2490 = vld [vmem:[%s1 + $0x30] sm:$0xe]
  %v2491 = vld [vmem:[%s1 + $0x3c] sm:$0xe]
  %v2492 = vld [vmem:[%s1 + $0x48] sm:$0xe]
  %v2493 = vld [vmem:[%s1 + $0x54] sm:$0xe]
  %v2518 = vrot.slane %v2486, 5
  %v2519 = vrot.slane %v2518, 4
  %v2520 = vrot.slane %v2271, 5
  %v2521 = vsel %vm221, %v2519, %v2520
  %v2522 = vrot.slane %v2520, 4
  %v2523 = vrot.slane %v2272, 5
  %v2524 = vsel %vm221, %v2522, %v2523
  %v2525 = vrot.slane %v2487, 5
  %v2526 = vrot.slane %v2525, 4
  %v2527 = vrot.slane %v2274, 5
  %v2528 = vsel %vm221, %v2526, %v2527
  %v2529 = vrot.slane %v2527, 4
  %v2530 = vrot.slane %v2275, 5
  %v2531 = vsel %vm221, %v2529, %v2530
  %v2532 = vrot.slane %v2488, 5
  %v2533 = vrot.slane %v2532, 4
  %v2534 = vrot.slane %v2277, 5
  %v2535 = vsel %vm221, %v2533, %v2534
  %v2536 = vrot.slane %v2534, 4
  %v2537 = vrot.slane %v2278, 5
  %v2538 = vsel %vm221, %v2536, %v2537
  %v2539 = vrot.slane %v2489, 5
  %v2540 = vrot.slane %v2539, 4
  %v2541 = vrot.slane %v2280, 5
  %v2542 = vsel %vm221, %v2540, %v2541
  %v2543 = vrot.slane %v2541, 4
  %v2544 = vrot.slane %v2281, 5
  %v2545 = vsel %vm221, %v2543, %v2544
  %v2546 = vrot.slane %v2490, 5
  %v2547 = vrot.slane %v2546, 4
  %v2548 = vrot.slane %v2283, 5
  %v2549 = vsel %vm221, %v2547, %v2548
  %v2550 = vrot.slane %v2548, 4
  %v2551 = vrot.slane %v2284, 5
  %v2552 = vsel %vm221, %v2550, %v2551
  %v2553 = vrot.slane %v2491, 5
  %v2554 = vrot.slane %v2553, 4
  %v2555 = vrot.slane %v2286, 5
  %v2556 = vsel %vm221, %v2554, %v2555
  %v2557 = vrot.slane %v2555, 4
  %v2558 = vrot.slane %v2287, 5
  %v2559 = vsel %vm221, %v2557, %v2558
  %v2560 = vrot.slane %v2492, 5
  %v2561 = vrot.slane %v2560, 4
  %v2562 = vrot.slane %v2289, 5
  %v2563 = vsel %vm221, %v2561, %v2562
  %v2564 = vrot.slane %v2562, 4
  %v2565 = vrot.slane %v2290, 5
  %v2566 = vsel %vm221, %v2564, %v2565
  %v2567 = vrot.slane %v2493, 5
  %v2568 = vrot.slane %v2567, 4
  %v2569 = vrot.slane %v2292, 5
  %v2570 = vsel %vm221, %v2568, %v2569
  %v2571 = vrot.slane %v2569, 4
  %v2572 = vrot.slane %v2293, 5
  %v2573 = vsel %vm221, %v2571, %v2572
  %v2574 = vunpack.c.l.b16 %v2521
  %v2575 = vunpack.c.l.b16 %v2524
  %v2576 = vunpack.c.l.b16 %v2528
  %v2577 = vunpack.c.l.b16 %v2531
  %v2578 = vunpack.c.l.b16 %v2535
  %v2579 = vunpack.c.l.b16 %v2538
  %v2580 = vunpack.c.l.b16 %v2542
  %v2581 = vunpack.c.l.b16 %v2545
  %v2582 = vunpack.c.l.b16 %v2549
  %v2583 = vunpack.c.l.b16 %v2552
  %v2584 = vunpack.c.l.b16 %v2556
  %v2585 = vunpack.c.l.b16 %v2559
  %v2586 = vunpack.c.l.b16 %v2563
  %v2587 = vunpack.c.l.b16 %v2566
  %v2588 = vunpack.c.l.b16 %v2570
  %v2589 = vunpack.c.l.b16 %v2573
  %v2590 = vpack.c.b16 %v2575, %v2574
  %v2591 = vpack.c.b16 %v2577, %v2576
  %v2592 = vpack.c.b16 %v2579, %v2578
  %v2593 = vpack.c.b16 %v2581, %v2580
  %v2594 = vpack.c.b16 %v2583, %v2582
  %v2595 = vpack.c.b16 %v2585, %v2584
  %v2596 = vpack.c.b16 %v2587, %v2586
  %v2597 = vpack.c.b16 %v2589, %v2588
  %2606 = vmatpush.bf16.msra.mxu0 %v426
  %2607 = vmatpush.bf16.msra.mxu0 %v422
  %2608 = vmatpush.bf16.msra.mxu0 %v418
  %2609 = vmatpush.bf16.msra.mxu0 %v414
  %2610 = vmatpush.bf16.msra.mxu0 %v410
  %2611 = vmatpush.bf16.msra.mxu0 %v406
  %2612 = vmatpush.bf16.msra.mxu0 %v402
  %2613 = vmatpush.bf16.msra.mxu0 %v398
  %2614 = vmatmul.bf16.gmra.mxu0 %v2590
  %v2615 = vpop.f32.mrf.mxu0
  %v2616 = vadd.f32 0.0, %v2615
  %v2617 = vpop.f32.mrf.mxu0
  %v2618 = vadd.f32 0.0, %v2617
  %2619 = vmatmul.bf16.gmra.mxu0 %v2591
  %v2620 = vpop.f32.mrf.mxu0
  %v2621 = vadd.f32 0.0, %v2620
  %v2622 = vpop.f32.mrf.mxu0
  %v2623 = vadd.f32 0.0, %v2622
  %2624 = vmatmul.bf16.gmra.mxu0 %v2592
  %v2625 = vpop.f32.mrf.mxu0
  %v2626 = vadd.f32 0.0, %v2625
  %v2627 = vpop.f32.mrf.mxu0
  %v2628 = vadd.f32 0.0, %v2627
  %2629 = vmatmul.bf16.gmra.mxu0 %v2593
  %v2630 = vpop.f32.mrf.mxu0
  %v2631 = vadd.f32 0.0, %v2630
  %v2632 = vpop.f32.mrf.mxu0
  %v2633 = vadd.f32 0.0, %v2632
  %2634 = vmatmul.bf16.gmra.mxu0 %v2594
  %v2635 = vpop.f32.mrf.mxu0
  %v2636 = vadd.f32 0.0, %v2635
  %v2637 = vpop.f32.mrf.mxu0
  %v2638 = vadd.f32 0.0, %v2637
  %2639 = vmatmul.bf16.gmra.mxu0 %v2595
  %v2640 = vpop.f32.mrf.mxu0
  %v2641 = vadd.f32 0.0, %v2640
  %v2642 = vpop.f32.mrf.mxu0
  %v2643 = vadd.f32 0.0, %v2642
  %2644 = vmatmul.bf16.gmra.mxu0 %v2596
  %v2645 = vpop.f32.mrf.mxu0
  %v2646 = vadd.f32 0.0, %v2645
  %v2647 = vpop.f32.mrf.mxu0
  %v2648 = vadd.f32 0.0, %v2647
  %2649 = vmatmul.bf16.gmra.mxu0 %v2597
  %v2650 = vpop.f32.mrf.mxu0
  %v2651 = vadd.f32 0.0, %v2650
  %v2652 = vpop.f32.mrf.mxu0
  %v2653 = vadd.f32 0.0, %v2652
  %2654 = vdwg.mxu0
  %2655 = vmatpush.bf16.msra.mxu0 %v427
  %2656 = vmatpush.bf16.msra.mxu0 %v423
  %2657 = vmatpush.bf16.msra.mxu0 %v419
  %2658 = vmatpush.bf16.msra.mxu0 %v415
  %2659 = vmatpush.bf16.msra.mxu0 %v411
  %2660 = vmatpush.bf16.msra.mxu0 %v407
  %2661 = vmatpush.bf16.msra.mxu0 %v403
  %2662 = vmatpush.bf16.msra.mxu0 %v399
  %2663 = vmatmul.bf16.gmra.mxu0 %v2590
  %v2664 = vpop.f32.mrf.mxu0
  %v2665 = vadd.f32 0.0, %v2664
  %v2666 = vpop.f32.mrf.mxu0
  %v2667 = vadd.f32 0.0, %v2666
  %2668 = vmatmul.bf16.gmra.mxu0 %v2591
  %v2669 = vpop.f32.mrf.mxu0
  %v2670 = vadd.f32 0.0, %v2669
  %v2671 = vpop.f32.mrf.mxu0
  %v2672 = vadd.f32 0.0, %v2671
  %2673 = vmatmul.bf16.gmra.mxu0 %v2592
  %v2674 = vpop.f32.mrf.mxu0
  %v2675 = vadd.f32 0.0, %v2674
  %v2676 = vpop.f32.mrf.mxu0
  %v2677 = vadd.f32 0.0, %v2676
  %2678 = vmatmul.bf16.gmra.mxu0 %v2593
  %v2679 = vpop.f32.mrf.mxu0
  %v2680 = vadd.f32 0.0, %v2679
  %v2681 = vpop.f32.mrf.mxu0
  %v2682 = vadd.f32 0.0, %v2681
  %2683 = vmatmul.bf16.gmra.mxu0 %v2594
  %v2684 = vpop.f32.mrf.mxu0
  %v2685 = vadd.f32 0.0, %v2684
  %v2686 = vpop.f32.mrf.mxu0
  %v2687 = vadd.f32 0.0, %v2686
  %2688 = vmatmul.bf16.gmra.mxu0 %v2595
  %v2689 = vpop.f32.mrf.mxu0
  %v2690 = vadd.f32 0.0, %v2689
  %v2691 = vpop.f32.mrf.mxu0
  %v2692 = vadd.f32 0.0, %v2691
  %2693 = vmatmul.bf16.gmra.mxu0 %v2596
  %v2694 = vpop.f32.mrf.mxu0
  %v2695 = vadd.f32 0.0, %v2694
  %v2696 = vpop.f32.mrf.mxu0
  %v2697 = vadd.f32 0.0, %v2696
  %2698 = vmatmul.bf16.gmra.mxu0 %v2597
  %v2699 = vpop.f32.mrf.mxu0
  %v2700 = vadd.f32 0.0, %v2699
  %v2701 = vpop.f32.mrf.mxu0
  %v2702 = vadd.f32 0.0, %v2701
  %2703 = vdwg.mxu0
  %2704 = vmatpush.bf16.msra.mxu0 %v428
  %2705 = vmatpush.bf16.msra.mxu0 %v424
  %2706 = vmatpush.bf16.msra.mxu0 %v420
  %2707 = vmatpush.bf16.msra.mxu0 %v416
  %2708 = vmatpush.bf16.msra.mxu0 %v412
  %2709 = vmatpush.bf16.msra.mxu0 %v408
  %2710 = vmatpush.bf16.msra.mxu0 %v404
  %2711 = vmatpush.bf16.msra.mxu0 %v400
  %2712 = vmatmul.bf16.gmra.mxu0 %v2590
  %v2713 = vpop.f32.mrf.mxu0
  %v2714 = vadd.f32 0.0, %v2713
  %v2715 = vpop.f32.mrf.mxu0
  %v2716 = vadd.f32 0.0, %v2715
  %2717 = vmatmul.bf16.gmra.mxu0 %v2591
  %v2718 = vpop.f32.mrf.mxu0
  %v2719 = vadd.f32 0.0, %v2718
  %v2720 = vpop.f32.mrf.mxu0
  %v2721 = vadd.f32 0.0, %v2720
  %2722 = vmatmul.bf16.gmra.mxu0 %v2592
  %v2723 = vpop.f32.mrf.mxu0
  %v2724 = vadd.f32 0.0, %v2723
  %v2725 = vpop.f32.mrf.mxu0
  %v2726 = vadd.f32 0.0, %v2725
  %2727 = vmatmul.bf16.gmra.mxu0 %v2593
  %v2728 = vpop.f32.mrf.mxu0
  %v2729 = vadd.f32 0.0, %v2728
  %v2730 = vpop.f32.mrf.mxu0
  %v2731 = vadd.f32 0.0, %v2730
  %2732 = vmatmul.bf16.gmra.mxu0 %v2594
  %v2733 = vpop.f32.mrf.mxu0
  %v2734 = vadd.f32 0.0, %v2733
  %v2735 = vpop.f32.mrf.mxu0
  %v2736 = vadd.f32 0.0, %v2735
  %2737 = vmatmul.bf16.gmra.mxu0 %v2595
  %v2738 = vpop.f32.mrf.mxu0
  %v2739 = vadd.f32 0.0, %v2738
  %v2740 = vpop.f32.mrf.mxu0
  %v2741 = vadd.f32 0.0, %v2740
  %2742 = vmatmul.bf16.gmra.mxu0 %v2596
  %v2743 = vpop.f32.mrf.mxu0
  %v2744 = vadd.f32 0.0, %v2743
  %v2745 = vpop.f32.mrf.mxu0
  %v2746 = vadd.f32 0.0, %v2745
  %2747 = vmatmul.bf16.gmra.mxu0 %v2597
  %v2748 = vpop.f32.mrf.mxu0
  %v2749 = vadd.f32 0.0, %v2748
  %v2750 = vpop.f32.mrf.mxu0
  %v2751 = vadd.f32 0.0, %v2750
  %2752 = vdwg.mxu0
  %2753 = vmatpush.bf16.msra.mxu0 %v429
  %2754 = vmatpush.bf16.msra.mxu0 %v425
  %2755 = vmatpush.bf16.msra.mxu0 %v421
  %2756 = vmatpush.bf16.msra.mxu0 %v417
  %2757 = vmatpush.bf16.msra.mxu0 %v413
  %2758 = vmatpush.bf16.msra.mxu0 %v409
  %2759 = vmatpush.bf16.msra.mxu0 %v405
  %2760 = vmatpush.bf16.msra.mxu0 %v401
  %2761 = vmatmul.bf16.gmra.mxu0 %v2590
  %v2762 = vpop.f32.mrf.mxu0
  %v2763 = vadd.f32 0.0, %v2762
  %v2764 = vpop.f32.mrf.mxu0
  %v2765 = vadd.f32 0.0, %v2764
  %2766 = vmatmul.bf16.gmra.mxu0 %v2591
  %v2767 = vpop.f32.mrf.mxu0
  %v2768 = vadd.f32 0.0, %v2767
  %v2769 = vpop.f32.mrf.mxu0
  %v2770 = vadd.f32 0.0, %v2769
  %2771 = vmatmul.bf16.gmra.mxu0 %v2592
  %v2772 = vpop.f32.mrf.mxu0
  %v2773 = vadd.f32 0.0, %v2772
  %v2774 = vpop.f32.mrf.mxu0
  %v2775 = vadd.f32 0.0, %v2774
  %2776 = vmatmul.bf16.gmra.mxu0 %v2593
  %v2777 = vpop.f32.mrf.mxu0
  %v2778 = vadd.f32 0.0, %v2777
  %v2779 = vpop.f32.mrf.mxu0
  %v2780 = vadd.f32 0.0, %v2779
  %2781 = vmatmul.bf16.gmra.mxu0 %v2594
  %v2782 = vpop.f32.mrf.mxu0
  %v2783 = vadd.f32 0.0, %v2782
  %v2784 = vpop.f32.mrf.mxu0
  %v2785 = vadd.f32 0.0, %v2784
  %2786 = vmatmul.bf16.gmra.mxu0 %v2595
  %v2787 = vpop.f32.mrf.mxu0
  %v2788 = vadd.f32 0.0, %v2787
  %v2789 = vpop.f32.mrf.mxu0
  %v2790 = vadd.f32 0.0, %v2789
  %2791 = vmatmul.bf16.gmra.mxu0 %v2596
  %v2792 = vpop.f32.mrf.mxu0
  %v2793 = vadd.f32 0.0, %v2792
  %v2794 = vpop.f32.mrf.mxu0
  %v2795 = vadd.f32 0.0, %v2794
  %2796 = vmatmul.bf16.gmra.mxu0 %v2597
  %v2797 = vpop.f32.mrf.mxu0
  %v2798 = vadd.f32 0.0, %v2797
  %v2799 = vpop.f32.mrf.mxu0
  %v2800 = vadd.f32 0.0, %v2799
  %2801 = vdwg.mxu0
  %v2802 = vunpack.c.l.b16 %v2307
  %v2803 = vunpack.c.l.b16 %v2317
  %v2804 = vunpack.c.l.b16 %v2331
  %v2805 = vunpack.c.l.b16 %v2341
  %v2806 = vunpack.c.l.b16 %v2355
  %v2807 = vunpack.c.l.b16 %v2365
  %v2808 = vunpack.c.l.b16 %v2379
  %v2809 = vunpack.c.l.b16 %v2389
  %v2810 = vunpack.c.l.b16 %v2403
  %v2811 = vunpack.c.l.b16 %v2413
  %v2812 = vunpack.c.l.b16 %v2427
  %v2813 = vunpack.c.l.b16 %v2437
  %v2814 = vunpack.c.l.b16 %v2451
  %v2815 = vunpack.c.l.b16 %v2461
  %v2816 = vunpack.c.l.b16 %v2475
  %v2817 = vunpack.c.l.b16 %v2485
  %v2818 = vpack.c.b16 %v2803, %v2802
  %v2819 = vpack.c.b16 %v2805, %v2804
  %v2820 = vpack.c.b16 %v2807, %v2806
  %v2821 = vpack.c.b16 %v2809, %v2808
  %v2822 = vpack.c.b16 %v2811, %v2810
  %v2823 = vpack.c.b16 %v2813, %v2812
  %v2824 = vpack.c.b16 %v2815, %v2814
  %v2825 = vpack.c.b16 %v2817, %v2816
  %2834 = vmatpush.bf16.msra.mxu0 %v718
  %2835 = vmatpush.bf16.msra.mxu0 %v714
  %2836 = vmatpush.bf16.msra.mxu0 %v710
  %2837 = vmatpush.bf16.msra.mxu0 %v706
  %2838 = vmatpush.bf16.msra.mxu0 %v702
  %2839 = vmatpush.bf16.msra.mxu0 %v698
  %2840 = vmatpush.bf16.msra.mxu0 %v694
  %2841 = vmatpush.bf16.msra.mxu0 %v690
  %2842 = vmatmul.bf16.gmra.mxu0 %v2818
  %v2843 = vpop.f32.mrf.mxu0
  %v2844 = vadd.f32 %v2616, %v2843
  %v2845 = vpop.f32.mrf.mxu0
  %v2846 = vadd.f32 %v2618, %v2845
  %2847 = vmatmul.bf16.gmra.mxu0 %v2819
  %v2848 = vpop.f32.mrf.mxu0
  %v2849 = vadd.f32 %v2621, %v2848
  %v2850 = vpop.f32.mrf.mxu0
  %v2851 = vadd.f32 %v2623, %v2850
  %2852 = vmatmul.bf16.gmra.mxu0 %v2820
  %v2853 = vpop.f32.mrf.mxu0
  %v2854 = vadd.f32 %v2626, %v2853
  %v2855 = vpop.f32.mrf.mxu0
  %v2856 = vadd.f32 %v2628, %v2855
  %2857 = vmatmul.bf16.gmra.mxu0 %v2821
  %v2858 = vpop.f32.mrf.mxu0
  %v2859 = vadd.f32 %v2631, %v2858
  %v2860 = vpop.f32.mrf.mxu0
  %v2861 = vadd.f32 %v2633, %v2860
  %2862 = vmatmul.bf16.gmra.mxu0 %v2822
  %v2863 = vpop.f32.mrf.mxu0
  %v2864 = vadd.f32 %v2636, %v2863
  %v2865 = vpop.f32.mrf.mxu0
  %v2866 = vadd.f32 %v2638, %v2865
  %2867 = vmatmul.bf16.gmra.mxu0 %v2823
  %v2868 = vpop.f32.mrf.mxu0
  %v2869 = vadd.f32 %v2641, %v2868
  %v2870 = vpop.f32.mrf.mxu0
  %v2871 = vadd.f32 %v2643, %v2870
  %2872 = vmatmul.bf16.gmra.mxu0 %v2824
  %v2873 = vpop.f32.mrf.mxu0
  %v2874 = vadd.f32 %v2646, %v2873
  %v2875 = vpop.f32.mrf.mxu0
  %v2876 = vadd.f32 %v2648, %v2875
  %2877 = vmatmul.bf16.gmra.mxu0 %v2825
  %v2878 = vpop.f32.mrf.mxu0
  %v2879 = vadd.f32 %v2651, %v2878
  %v2880 = vpop.f32.mrf.mxu0
  %v2881 = vadd.f32 %v2653, %v2880
  %2882 = vdwg.mxu0
  %2883 = vmatpush.bf16.msra.mxu0 %v719
  %2884 = vmatpush.bf16.msra.mxu0 %v715
  %2885 = vmatpush.bf16.msra.mxu0 %v711
  %2886 = vmatpush.bf16.msra.mxu0 %v707
  %2887 = vmatpush.bf16.msra.mxu0 %v703
  %2888 = vmatpush.bf16.msra.mxu0 %v699
  %2889 = vmatpush.bf16.msra.mxu0 %v695
  %2890 = vmatpush.bf16.msra.mxu0 %v691
  %2891 = vmatmul.bf16.gmra.mxu0 %v2818
  %v2892 = vpop.f32.mrf.mxu0
  %v2893 = vadd.f32 %v2665, %v2892
  %v2894 = vpop.f32.mrf.mxu0
  %v2895 = vadd.f32 %v2667, %v2894
  %2896 = vmatmul.bf16.gmra.mxu0 %v2819
  %v2897 = vpop.f32.mrf.mxu0
  %v2898 = vadd.f32 %v2670, %v2897
  %v2899 = vpop.f32.mrf.mxu0
  %v2900 = vadd.f32 %v2672, %v2899
  %2901 = vmatmul.bf16.gmra.mxu0 %v2820
  %v2902 = vpop.f32.mrf.mxu0
  %v2903 = vadd.f32 %v2675, %v2902
  %v2904 = vpop.f32.mrf.mxu0
  %v2905 = vadd.f32 %v2677, %v2904
  %2906 = vmatmul.bf16.gmra.mxu0 %v2821
  %v2907 = vpop.f32.mrf.mxu0
  %v2908 = vadd.f32 %v2680, %v2907
  %v2909 = vpop.f32.mrf.mxu0
  %v2910 = vadd.f32 %v2682, %v2909
  %2911 = vmatmul.bf16.gmra.mxu0 %v2822
  %v2912 = vpop.f32.mrf.mxu0
  %v2913 = vadd.f32 %v2685, %v2912
  %v2914 = vpop.f32.mrf.mxu0
  %v2915 = vadd.f32 %v2687, %v2914
  %2916 = vmatmul.bf16.gmra.mxu0 %v2823
  %v2917 = vpop.f32.mrf.mxu0
  %v2918 = vadd.f32 %v2690, %v2917
  %v2919 = vpop.f32.mrf.mxu0
  %v2920 = vadd.f32 %v2692, %v2919
  %2921 = vmatmul.bf16.gmra.mxu0 %v2824
  %v2922 = vpop.f32.mrf.mxu0
  %v2923 = vadd.f32 %v2695, %v2922
  %v2924 = vpop.f32.mrf.mxu0
  %v2925 = vadd.f32 %v2697, %v2924
  %2926 = vmatmul.bf16.gmra.mxu0 %v2825
  %v2927 = vpop.f32.mrf.mxu0
  %v2928 = vadd.f32 %v2700, %v2927
  %v2929 = vpop.f32.mrf.mxu0
  %v2930 = vadd.f32 %v2702, %v2929
  %2931 = vdwg.mxu0
  %2932 = vmatpush.bf16.msra.mxu0 %v720
  %2933 = vmatpush.bf16.msra.mxu0 %v716
  %2934 = vmatpush.bf16.msra.mxu0 %v712
  %2935 = vmatpush.bf16.msra.mxu0 %v708
  %2936 = vmatpush.bf16.msra.mxu0 %v704
  %2937 = vmatpush.bf16.msra.mxu0 %v700
  %2938 = vmatpush.bf16.msra.mxu0 %v696
  %2939 = vmatpush.bf16.msra.mxu0 %v692
  %2940 = vmatmul.bf16.gmra.mxu0 %v2818
  %v2941 = vpop.f32.mrf.mxu0
  %v2942 = vadd.f32 %v2714, %v2941
  %v2943 = vpop.f32.mrf.mxu0
  %v2944 = vadd.f32 %v2716, %v2943
  %2945 = vmatmul.bf16.gmra.mxu0 %v2819
  %v2946 = vpop.f32.mrf.mxu0
  %v2947 = vadd.f32 %v2719, %v2946
  %v2948 = vpop.f32.mrf.mxu0
  %v2949 = vadd.f32 %v2721, %v2948
  %2950 = vmatmul.bf16.gmra.mxu0 %v2820
  %v2951 = vpop.f32.mrf.mxu0
  %v2952 = vadd.f32 %v2724, %v2951
  %v2953 = vpop.f32.mrf.mxu0
  %v2954 = vadd.f32 %v2726, %v2953
  %2955 = vmatmul.bf16.gmra.mxu0 %v2821
  %v2956 = vpop.f32.mrf.mxu0
  %v2957 = vadd.f32 %v2729, %v2956
  %v2958 = vpop.f32.mrf.mxu0
  %v2959 = vadd.f32 %v2731, %v2958
  %2960 = vmatmul.bf16.gmra.mxu0 %v2822
  %v2961 = vpop.f32.mrf.mxu0
  %v2962 = vadd.f32 %v2734, %v2961
  %v2963 = vpop.f32.mrf.mxu0
  %v2964 = vadd.f32 %v2736, %v2963
  %2965 = vmatmul.bf16.gmra.mxu0 %v2823
  %v2966 = vpop.f32.mrf.mxu0
  %v2967 = vadd.f32 %v2739, %v2966
  %v2968 = vpop.f32.mrf.mxu0
  %v2969 = vadd.f32 %v2741, %v2968
  %2970 = vmatmul.bf16.gmra.mxu0 %v2824
  %v2971 = vpop.f32.mrf.mxu0
  %v2972 = vadd.f32 %v2744, %v2971
  %v2973 = vpop.f32.mrf.mxu0
  %v2974 = vadd.f32 %v2746, %v2973
  %2975 = vmatmul.bf16.gmra.mxu0 %v2825
  %v2976 = vpop.f32.mrf.mxu0
  %v2977 = vadd.f32 %v2749, %v2976
  %v2978 = vpop.f32.mrf.mxu0
  %v2979 = vadd.f32 %v2751, %v2978
  %2980 = vdwg.mxu0
  %2981 = vmatpush.bf16.msra.mxu0 %v721
  %2982 = vmatpush.bf16.msra.mxu0 %v717
  %2983 = vmatpush.bf16.msra.mxu0 %v713
  %2984 = vmatpush.bf16.msra.mxu0 %v709
  %2985 = vmatpush.bf16.msra.mxu0 %v705
  %2986 = vmatpush.bf16.msra.mxu0 %v701
  %2987 = vmatpush.bf16.msra.mxu0 %v697
  %2988 = vmatpush.bf16.msra.mxu0 %v693
  %2989 = vmatmul.bf16.gmra.mxu0 %v2818
  %v2990 = vpop.f32.mrf.mxu0
  %v2991 = vadd.f32 %v2763, %v2990
  %v2992 = vpop.f32.mrf.mxu0
  %v2993 = vadd.f32 %v2765, %v2992
  %2994 = vmatmul.bf16.gmra.mxu0 %v2819
  %v2995 = vpop.f32.mrf.mxu0
  %v2996 = vadd.f32 %v2768, %v2995
  %v2997 = vpop.f32.mrf.mxu0
  %v2998 = vadd.f32 %v2770, %v2997
  %2999 = vmatmul.bf16.gmra.mxu0 %v2820
  %v3000 = vpop.f32.mrf.mxu0
  %v3001 = vadd.f32 %v2773, %v3000
  %v3002 = vpop.f32.mrf.mxu0
  %v3003 = vadd.f32 %v2775, %v3002
  %3004 = vmatmul.bf16.gmra.mxu0 %v2821
  %v3005 = vpop.f32.mrf.mxu0
  %v3006 = vadd.f32 %v2778, %v3005
  %v3007 = vpop.f32.mrf.mxu0
  %v3008 = vadd.f32 %v2780, %v3007
  %3009 = vmatmul.bf16.gmra.mxu0 %v2822
  %v3010 = vpop.f32.mrf.mxu0
  %v3011 = vadd.f32 %v2783, %v3010
  %v3012 = vpop.f32.mrf.mxu0
  %v3013 = vadd.f32 %v2785, %v3012
  %3014 = vmatmul.bf16.gmra.mxu0 %v2823
  %v3015 = vpop.f32.mrf.mxu0
  %v3016 = vadd.f32 %v2788, %v3015
  %v3017 = vpop.f32.mrf.mxu0
  %v3018 = vadd.f32 %v2790, %v3017
  %3019 = vmatmul.bf16.gmra.mxu0 %v2824
  %v3020 = vpop.f32.mrf.mxu0
  %v3021 = vadd.f32 %v2793, %v3020
  %v3022 = vpop.f32.mrf.mxu0
  %v3023 = vadd.f32 %v2795, %v3022
  %3024 = vmatmul.bf16.gmra.mxu0 %v2825
  %v3025 = vpop.f32.mrf.mxu0
  %v3026 = vadd.f32 %v2798, %v3025
  %v3027 = vpop.f32.mrf.mxu0
  %v3028 = vadd.f32 %v2800, %v3027
  %3029 = vdwg.mxu0
  %v3030 = vld [vmem:[%s1 + $0x8] sm:$0x3]
  %v3031 = vld [vmem:[%s1 + $0x14] sm:$0x3]
  %v3032 = vld [vmem:[%s1 + $0x20] sm:$0x3]
  %v3033 = vld [vmem:[%s1 + $0x2c] sm:$0x3]
  %v3034 = vld [vmem:[%s1 + $0x38] sm:$0x3]
  %v3035 = vld [vmem:[%s1 + $0x44] sm:$0x3]
  %v3036 = vld [vmem:[%s1 + $0x50] sm:$0x3]
  %v3037 = vld [vmem:[%s1 + $0x5c] sm:$0x3]
  %v3039 = vshrl.u32 %v2486, 16
  %v3041 = vrot.slane %v3039, 5
  %v3042 = vshll.u32 %v2486, 16
  %v3044 = vrot.slane %v3042, 6
  %v3045 = vor.u32 %v3041, %v3044
  %v3046 = vrot.slane %v3045, 4
  %v3047 = vrot.slane %v2308, 5
  %v3048 = vrot.slane %v2304, 6
  %v3049 = vor.u32 %v3047, %v3048
  %v3050 = vsel %vm880, %v3046, %v3049
  %v3051 = vrot.slane %v3049, 4
  %v3053 = vshrl.u32 %v3030, 16
  %v3055 = vrot.slane %v3053, 5
  %v3056 = vshll.u32 %v3030, 16
  %v3058 = vrot.slane %v3056, 6
  %v3059 = vor.u32 %v3055, %v3058
  %v3060 = vsel %vm880, %v3051, %v3059
  %v3062 = vshrl.u32 %v2487, 16
  %v3064 = vrot.slane %v3062, 5
  %v3065 = vshll.u32 %v2487, 16
  %v3067 = vrot.slane %v3065, 6
  %v3068 = vor.u32 %v3064, %v3067
  %v3069 = vrot.slane %v3068, 4
  %v3070 = vrot.slane %v2332, 5
  %v3071 = vrot.slane %v2328, 6
  %v3072 = vor.u32 %v3070, %v3071
  %v3073 = vsel %vm880, %v3069, %v3072
  %v3074 = vrot.slane %v3072, 4
  %v3076 = vshrl.u32 %v3031, 16
  %v3078 = vrot.slane %v3076, 5
  %v3079 = vshll.u32 %v3031, 16
  %v3081 = vrot.slane %v3079, 6
  %v3082 = vor.u32 %v3078, %v3081
  %v3083 = vsel %vm880, %v3074, %v3082
  %v3085 = vshrl.u32 %v2488, 16
  %v3087 = vrot.slane %v3085, 5
  %v3088 = vshll.u32 %v2488, 16
  %v3090 = vrot.slane %v3088, 6
  %v3091 = vor.u32 %v3087, %v3090
  %v3092 = vrot.slane %v3091, 4
  %v3093 = vrot.slane %v2356, 5
  %v3094 = vrot.slane %v2352, 6
  %v3095 = vor.u32 %v3093, %v3094
  %v3096 = vsel %vm880, %v3092, %v3095
  %v3097 = vrot.slane %v3095, 4
  %v3099 = vshrl.u32 %v3032, 16
  %v3101 = vrot.slane %v3099, 5
  %v3102 = vshll.u32 %v3032, 16
  %v3104 = vrot.slane %v3102, 6
  %v3105 = vor.u32 %v3101, %v3104
  %v3106 = vsel %vm880, %v3097, %v3105
  %v3108 = vshrl.u32 %v2489, 16
  %v3110 = vrot.slane %v3108, 5
  %v3111 = vshll.u32 %v2489, 16
  %v3113 = vrot.slane %v3111, 6
  %v3114 = vor.u32 %v3110, %v3113
  %v3115 = vrot.slane %v3114, 4
  %v3116 = vrot.slane %v2380, 5
  %v3117 = vrot.slane %v2376, 6
  %v3118 = vor.u32 %v3116, %v3117
  %v3119 = vsel %vm880, %v3115, %v3118
  %v3120 = vrot.slane %v3118, 4
  %v3122 = vshrl.u32 %v3033, 16
  %v3124 = vrot.slane %v3122, 5
  %v3125 = vshll.u32 %v3033, 16
  %v3127 = vrot.slane %v3125, 6
  %v3128 = vor.u32 %v3124, %v3127
  %v3129 = vsel %vm880, %v3120, %v3128
  %v3131 = vshrl.u32 %v2490, 16
  %v3133 = vrot.slane %v3131, 5
  %v3134 = vshll.u32 %v2490, 16
  %v3136 = vrot.slane %v3134, 6
  %v3137 = vor.u32 %v3133, %v3136
  %v3138 = vrot.slane %v3137, 4
  %v3139 = vrot.slane %v2404, 5
  %v3140 = vrot.slane %v2400, 6
  %v3141 = vor.u32 %v3139, %v3140
  %v3142 = vsel %vm880, %v3138, %v3141
  %v3143 = vrot.slane %v3141, 4
  %v3145 = vshrl.u32 %v3034, 16
  %v3147 = vrot.slane %v3145, 5
  %v3148 = vshll.u32 %v3034, 16
  %v3150 = vrot.slane %v3148, 6
  %v3151 = vor.u32 %v3147, %v3150
  %v3152 = vsel %vm880, %v3143, %v3151
  %v3154 = vshrl.u32 %v2491, 16
  %v3156 = vrot.slane %v3154, 5
  %v3157 = vshll.u32 %v2491, 16
  %v3159 = vrot.slane %v3157, 6
  %v3160 = vor.u32 %v3156, %v3159
  %v3161 = vrot.slane %v3160, 4
  %v3162 = vrot.slane %v2428, 5
  %v3163 = vrot.slane %v2424, 6
  %v3164 = vor.u32 %v3162, %v3163
  %v3165 = vsel %vm880, %v3161, %v3164
  %v3166 = vrot.slane %v3164, 4
  %v3168 = vshrl.u32 %v3035, 16
  %v3170 = vrot.slane %v3168, 5
  %v3171 = vshll.u32 %v3035, 16
  %v3173 = vrot.slane %v3171, 6
  %v3174 = vor.u32 %v3170, %v3173
  %v3175 = vsel %vm880, %v3166, %v3174
  %v3177 = vshrl.u32 %v2492, 16
  %v3179 = vrot.slane %v3177, 5
  %v3180 = vshll.u32 %v2492, 16
  %v3182 = vrot.slane %v3180, 6
  %v3183 = vor.u32 %v3179, %v3182
  %v3184 = vrot.slane %v3183, 4
  %v3185 = vrot.slane %v2452, 5
  %v3186 = vrot.slane %v2448, 6
  %v3187 = vor.u32 %v3185, %v3186
  %v3188 = vsel %vm880, %v3184, %v3187
  %v3189 = vrot.slane %v3187, 4
  %v3191 = vshrl.u32 %v3036, 16
  %v3193 = vrot.slane %v3191, 5
  %v3194 = vshll.u32 %v3036, 16
  %v3196 = vrot.slane %v3194, 6
  %v3197 = vor.u32 %v3193, %v3196
  %v3198 = vsel %vm880, %v3189, %v3197
  %v3200 = vshrl.u32 %v2493, 16
  %v3202 = vrot.slane %v3200, 5
  %v3203 = vshll.u32 %v2493, 16
  %v3205 = vrot.slane %v3203, 6
  %v3206 = vor.u32 %v3202, %v3205
  %v3207 = vrot.slane %v3206, 4
  %v3208 = vrot.slane %v2476, 5
  %v3209 = vrot.slane %v2472, 6
  %v3210 = vor.u32 %v3208, %v3209
  %v3211 = vsel %vm880, %v3207, %v3210
  %v3212 = vrot.slane %v3210, 4
  %v3214 = vshrl.u32 %v3037, 16
  %v3216 = vrot.slane %v3214, 5
  %v3217 = vshll.u32 %v3037, 16
  %v3219 = vrot.slane %v3217, 6
  %v3220 = vor.u32 %v3216, %v3219
  %v3221 = vsel %vm880, %v3212, %v3220
  %v3222 = vunpack.c.l.b16 %v3050
  %v3223 = vunpack.c.l.b16 %v3060
  %v3224 = vunpack.c.l.b16 %v3073
  %v3225 = vunpack.c.l.b16 %v3083
  %v3226 = vunpack.c.l.b16 %v3096
  %v3227 = vunpack.c.l.b16 %v3106
  %v3228 = vunpack.c.l.b16 %v3119
  %v3229 = vunpack.c.l.b16 %v3129
  %v3230 = vunpack.c.l.b16 %v3142
  %v3231 = vunpack.c.l.b16 %v3152
  %v3232 = vunpack.c.l.b16 %v3165
  %v3233 = vunpack.c.l.b16 %v3175
  %v3234 = vunpack.c.l.b16 %v3188
  %v3235 = vunpack.c.l.b16 %v3198
  %v3236 = vunpack.c.l.b16 %v3211
  %v3237 = vunpack.c.l.b16 %v3221
  %v3238 = vpack.c.b16 %v3223, %v3222
  %v3239 = vpack.c.b16 %v3225, %v3224
  %v3240 = vpack.c.b16 %v3227, %v3226
  %v3241 = vpack.c.b16 %v3229, %v3228
  %v3242 = vpack.c.b16 %v3231, %v3230
  %v3243 = vpack.c.b16 %v3233, %v3232
  %v3244 = vpack.c.b16 %v3235, %v3234
  %v3245 = vpack.c.b16 %v3237, %v3236
  %3254 = vmatpush.bf16.msra.mxu0 %v1197
  %3255 = vmatpush.bf16.msra.mxu0 %v1193
  %3256 = vmatpush.bf16.msra.mxu0 %v1189
  %3257 = vmatpush.bf16.msra.mxu0 %v1185
  %3258 = vmatpush.bf16.msra.mxu0 %v1181
  %3259 = vmatpush.bf16.msra.mxu0 %v1177
  %3260 = vmatpush.bf16.msra.mxu0 %v1173
  %3261 = vmatpush.bf16.msra.mxu0 %v1169
  %3262 = vmatmul.bf16.gmra.mxu0 %v3238
  %v3263 = vpop.f32.mrf.mxu0
  %v3264 = vadd.f32 0.0, %v3263
  %v3265 = vpop.f32.mrf.mxu0
  %v3266 = vadd.f32 0.0, %v3265
  %3267 = vmatmul.bf16.gmra.mxu0 %v3239
  %v3268 = vpop.f32.mrf.mxu0
  %v3269 = vadd.f32 0.0, %v3268
  %v3270 = vpop.f32.mrf.mxu0
  %v3271 = vadd.f32 0.0, %v3270
  %3272 = vmatmul.bf16.gmra.mxu0 %v3240
  %v3273 = vpop.f32.mrf.mxu0
  %v3274 = vadd.f32 0.0, %v3273
  %v3275 = vpop.f32.mrf.mxu0
  %v3276 = vadd.f32 0.0, %v3275
  %3277 = vmatmul.bf16.gmra.mxu0 %v3241
  %v3278 = vpop.f32.mrf.mxu0
  %v3279 = vadd.f32 0.0, %v3278
  %v3280 = vpop.f32.mrf.mxu0
  %v3281 = vadd.f32 0.0, %v3280
  %3282 = vmatmul.bf16.gmra.mxu0 %v3242
  %v3283 = vpop.f32.mrf.mxu0
  %v3284 = vadd.f32 0.0, %v3283
  %v3285 = vpop.f32.mrf.mxu0
  %v3286 = vadd.f32 0.0, %v3285
  %3287 = vmatmul.bf16.gmra.mxu0 %v3243
  %v3288 = vpop.f32.mrf.mxu0
  %v3289 = vadd.f32 0.0, %v3288
  %v3290 = vpop.f32.mrf.mxu0
  %v3291 = vadd.f32 0.0, %v3290
  %3292 = vmatmul.bf16.gmra.mxu0 %v3244
  %v3293 = vpop.f32.mrf.mxu0
  %v3294 = vadd.f32 0.0, %v3293
  %v3295 = vpop.f32.mrf.mxu0
  %v3296 = vadd.f32 0.0, %v3295
  %3297 = vmatmul.bf16.gmra.mxu0 %v3245
  %v3298 = vpop.f32.mrf.mxu0
  %v3299 = vadd.f32 0.0, %v3298
  %v3300 = vpop.f32.mrf.mxu0
  %v3301 = vadd.f32 0.0, %v3300
  %3302 = vdwg.mxu0
  %3303 = vmatpush.bf16.msra.mxu0 %v1198
  %3304 = vmatpush.bf16.msra.mxu0 %v1194
  %3305 = vmatpush.bf16.msra.mxu0 %v1190
  %3306 = vmatpush.bf16.msra.mxu0 %v1186
  %3307 = vmatpush.bf16.msra.mxu0 %v1182
  %3308 = vmatpush.bf16.msra.mxu0 %v1178
  %3309 = vmatpush.bf16.msra.mxu0 %v1174
  %3310 = vmatpush.bf16.msra.mxu0 %v1170
  %3311 = vmatmul.bf16.gmra.mxu0 %v3238
  %v3312 = vpop.f32.mrf.mxu0
  %v3313 = vadd.f32 0.0, %v3312
  %v3314 = vpop.f32.mrf.mxu0
  %v3315 = vadd.f32 0.0, %v3314
  %3316 = vmatmul.bf16.gmra.mxu0 %v3239
  %v3317 = vpop.f32.mrf.mxu0
  %v3318 = vadd.f32 0.0, %v3317
  %v3319 = vpop.f32.mrf.mxu0
  %v3320 = vadd.f32 0.0, %v3319
  %3321 = vmatmul.bf16.gmra.mxu0 %v3240
  %v3322 = vpop.f32.mrf.mxu0
  %v3323 = vadd.f32 0.0, %v3322
  %v3324 = vpop.f32.mrf.mxu0
  %v3325 = vadd.f32 0.0, %v3324
  %3326 = vmatmul.bf16.gmra.mxu0 %v3241
  %v3327 = vpop.f32.mrf.mxu0
  %v3328 = vadd.f32 0.0, %v3327
  %v3329 = vpop.f32.mrf.mxu0
  %v3330 = vadd.f32 0.0, %v3329
  %3331 = vmatmul.bf16.gmra.mxu0 %v3242
  %v3332 = vpop.f32.mrf.mxu0
  %v3333 = vadd.f32 0.0, %v3332
  %v3334 = vpop.f32.mrf.mxu0
  %v3335 = vadd.f32 0.0, %v3334
  %3336 = vmatmul.bf16.gmra.mxu0 %v3243
  %v3337 = vpop.f32.mrf.mxu0
  %v3338 = vadd.f32 0.0, %v3337
  %v3339 = vpop.f32.mrf.mxu0
  %v3340 = vadd.f32 0.0, %v3339
  %3341 = vmatmul.bf16.gmra.mxu0 %v3244
  %v3342 = vpop.f32.mrf.mxu0
  %v3343 = vadd.f32 0.0, %v3342
  %v3344 = vpop.f32.mrf.mxu0
  %v3345 = vadd.f32 0.0, %v3344
  %3346 = vmatmul.bf16.gmra.mxu0 %v3245
  %v3347 = vpop.f32.mrf.mxu0
  %v3348 = vadd.f32 0.0, %v3347
  %v3349 = vpop.f32.mrf.mxu0
  %v3350 = vadd.f32 0.0, %v3349
  %3351 = vdwg.mxu0
  %3352 = vmatpush.bf16.msra.mxu0 %v1199
  %3353 = vmatpush.bf16.msra.mxu0 %v1195
  %3354 = vmatpush.bf16.msra.mxu0 %v1191
  %3355 = vmatpush.bf16.msra.mxu0 %v1187
  %3356 = vmatpush.bf16.msra.mxu0 %v1183
  %3357 = vmatpush.bf16.msra.mxu0 %v1179
  %3358 = vmatpush.bf16.msra.mxu0 %v1175
  %3359 = vmatpush.bf16.msra.mxu0 %v1171
  %3360 = vmatmul.bf16.gmra.mxu0 %v3238
  %v3361 = vpop.f32.mrf.mxu0
  %v3362 = vadd.f32 0.0, %v3361
  %v3363 = vpop.f32.mrf.mxu0
  %v3364 = vadd.f32 0.0, %v3363
  %3365 = vmatmul.bf16.gmra.mxu0 %v3239
  %v3366 = vpop.f32.mrf.mxu0
  %v3367 = vadd.f32 0.0, %v3366
  %v3368 = vpop.f32.mrf.mxu0
  %v3369 = vadd.f32 0.0, %v3368
  %3370 = vmatmul.bf16.gmra.mxu0 %v3240
  %v3371 = vpop.f32.mrf.mxu0
  %v3372 = vadd.f32 0.0, %v3371
  %v3373 = vpop.f32.mrf.mxu0
  %v3374 = vadd.f32 0.0, %v3373
  %3375 = vmatmul.bf16.gmra.mxu0 %v3241
  %v3376 = vpop.f32.mrf.mxu0
  %v3377 = vadd.f32 0.0, %v3376
  %v3378 = vpop.f32.mrf.mxu0
  %v3379 = vadd.f32 0.0, %v3378
  %3380 = vmatmul.bf16.gmra.mxu0 %v3242
  %v3381 = vpop.f32.mrf.mxu0
  %v3382 = vadd.f32 0.0, %v3381
  %v3383 = vpop.f32.mrf.mxu0
  %v3384 = vadd.f32 0.0, %v3383
  %3385 = vmatmul.bf16.gmra.mxu0 %v3243
  %v3386 = vpop.f32.mrf.mxu0
  %v3387 = vadd.f32 0.0, %v3386
  %v3388 = vpop.f32.mrf.mxu0
  %v3389 = vadd.f32 0.0, %v3388
  %3390 = vmatmul.bf16.gmra.mxu0 %v3244
  %v3391 = vpop.f32.mrf.mxu0
  %v3392 = vadd.f32 0.0, %v3391
  %v3393 = vpop.f32.mrf.mxu0
  %v3394 = vadd.f32 0.0, %v3393
  %3395 = vmatmul.bf16.gmra.mxu0 %v3245
  %v3396 = vpop.f32.mrf.mxu0
  %v3397 = vadd.f32 0.0, %v3396
  %v3398 = vpop.f32.mrf.mxu0
  %v3399 = vadd.f32 0.0, %v3398
  %3400 = vdwg.mxu0
  %3401 = vmatpush.bf16.msra.mxu0 %v1200
  %3402 = vmatpush.bf16.msra.mxu0 %v1196
  %3403 = vmatpush.bf16.msra.mxu0 %v1192
  %3404 = vmatpush.bf16.msra.mxu0 %v1188
  %3405 = vmatpush.bf16.msra.mxu0 %v1184
  %3406 = vmatpush.bf16.msra.mxu0 %v1180
  %3407 = vmatpush.bf16.msra.mxu0 %v1176
  %3408 = vmatpush.bf16.msra.mxu0 %v1172
  %3409 = vmatmul.bf16.gmra.mxu0 %v3238
  %v3410 = vpop.f32.mrf.mxu0
  %v3411 = vadd.f32 0.0, %v3410
  %v3412 = vpop.f32.mrf.mxu0
  %v3413 = vadd.f32 0.0, %v3412
  %3414 = vmatmul.bf16.gmra.mxu0 %v3239
  %v3415 = vpop.f32.mrf.mxu0
  %v3416 = vadd.f32 0.0, %v3415
  %v3417 = vpop.f32.mrf.mxu0
  %v3418 = vadd.f32 0.0, %v3417
  %3419 = vmatmul.bf16.gmra.mxu0 %v3240
  %v3420 = vpop.f32.mrf.mxu0
  %v3421 = vadd.f32 0.0, %v3420
  %v3422 = vpop.f32.mrf.mxu0
  %v3423 = vadd.f32 0.0, %v3422
  %3424 = vmatmul.bf16.gmra.mxu0 %v3241
  %v3425 = vpop.f32.mrf.mxu0
  %v3426 = vadd.f32 0.0, %v3425
  %v3427 = vpop.f32.mrf.mxu0
  %v3428 = vadd.f32 0.0, %v3427
  %3429 = vmatmul.bf16.gmra.mxu0 %v3242
  %v3430 = vpop.f32.mrf.mxu0
  %v3431 = vadd.f32 0.0, %v3430
  %v3432 = vpop.f32.mrf.mxu0
  %v3433 = vadd.f32 0.0, %v3432
  %3434 = vmatmul.bf16.gmra.mxu0 %v3243
  %v3435 = vpop.f32.mrf.mxu0
  %v3436 = vadd.f32 0.0, %v3435
  %v3437 = vpop.f32.mrf.mxu0
  %v3438 = vadd.f32 0.0, %v3437
  %3439 = vmatmul.bf16.gmra.mxu0 %v3244
  %v3440 = vpop.f32.mrf.mxu0
  %v3441 = vadd.f32 0.0, %v3440
  %v3442 = vpop.f32.mrf.mxu0
  %v3443 = vadd.f32 0.0, %v3442
  %3444 = vmatmul.bf16.gmra.mxu0 %v3245
  %v3445 = vpop.f32.mrf.mxu0
  %v3446 = vadd.f32 0.0, %v3445
  %v3447 = vpop.f32.mrf.mxu0
  %v3448 = vadd.f32 0.0, %v3447
  %3449 = vdwg.mxu0
  %v3450 = vadd.f32 %v2844, %v3264
  %v3451 = vadd.f32 %v2893, %v3313
  %v3452 = vadd.f32 %v2942, %v3362
  %v3453 = vadd.f32 %v2991, %v3411
  %v3454 = vadd.f32 %v2846, %v3266
  %v3455 = vadd.f32 %v2895, %v3315
  %v3456 = vadd.f32 %v2944, %v3364
  %v3457 = vadd.f32 %v2993, %v3413
  %v3458 = vadd.f32 %v2849, %v3269
  %v3459 = vadd.f32 %v2898, %v3318
  %v3460 = vadd.f32 %v2947, %v3367
  %v3461 = vadd.f32 %v2996, %v3416
  %v3462 = vadd.f32 %v2851, %v3271
  %v3463 = vadd.f32 %v2900, %v3320
  %v3464 = vadd.f32 %v2949, %v3369
  %v3465 = vadd.f32 %v2998, %v3418
  %v3466 = vadd.f32 %v2854, %v3274
  %v3467 = vadd.f32 %v2903, %v3323
  %v3468 = vadd.f32 %v2952, %v3372
  %v3469 = vadd.f32 %v3001, %v3421
  %v3470 = vadd.f32 %v2856, %v3276
  %v3471 = vadd.f32 %v2905, %v3325
  %v3472 = vadd.f32 %v2954, %v3374
  %v3473 = vadd.f32 %v3003, %v3423
  %v3474 = vadd.f32 %v2859, %v3279
  %v3475 = vadd.f32 %v2908, %v3328
  %v3476 = vadd.f32 %v2957, %v3377
  %v3477 = vadd.f32 %v3006, %v3426
  %v3478 = vadd.f32 %v2861, %v3281
  %v3479 = vadd.f32 %v2910, %v3330
  %v3480 = vadd.f32 %v2959, %v3379
  %v3481 = vadd.f32 %v3008, %v3428
  %v3482 = vadd.f32 %v2864, %v3284
  %v3483 = vadd.f32 %v2913, %v3333
  %v3484 = vadd.f32 %v2962, %v3382
  %v3485 = vadd.f32 %v3011, %v3431
  %v3486 = vadd.f32 %v2866, %v3286
  %v3487 = vadd.f32 %v2915, %v3335
  %v3488 = vadd.f32 %v2964, %v3384
  %v3489 = vadd.f32 %v3013, %v3433
  %v3490 = vadd.f32 %v2869, %v3289
  %v3491 = vadd.f32 %v2918, %v3338
  %v3492 = vadd.f32 %v2967, %v3387
  %v3493 = vadd.f32 %v3016, %v3436
  %v3494 = vadd.f32 %v2871, %v3291
  %v3495 = vadd.f32 %v2920, %v3340
  %v3496 = vadd.f32 %v2969, %v3389
  %v3497 = vadd.f32 %v3018, %v3438
  %v3498 = vadd.f32 %v2874, %v3294
  %v3499 = vadd.f32 %v2923, %v3343
  %v3500 = vadd.f32 %v2972, %v3392
  %v3501 = vadd.f32 %v3021, %v3441
  %v3502 = vadd.f32 %v2876, %v3296
  %v3503 = vadd.f32 %v2925, %v3345
  %v3504 = vadd.f32 %v2974, %v3394
  %v3505 = vadd.f32 %v3023, %v3443
  %v3506 = vadd.f32 %v2879, %v3299
  %v3507 = vadd.f32 %v2928, %v3348
  %v3508 = vadd.f32 %v2977, %v3397
  %v3509 = vadd.f32 %v3026, %v3446
  %v3510 = vadd.f32 %v2881, %v3301
  %v3511 = vadd.f32 %v2930, %v3350
  %v3512 = vadd.f32 %v2979, %v3399
  %v3513 = vadd.f32 %v3028, %v3448
  %v3514 = vld [vmem:[%s1] sm:$0xf]
  %v3515 = vld [vmem:[%s1 + $0x4] sm:$0xf]
  %v3516 = vld [vmem:[%s1 + $0xc] sm:$0xf]
  %v3517 = vld [vmem:[%s1 + $0x10] sm:$0xf]
  %v3518 = vld [vmem:[%s1 + $0x18] sm:$0xf]
  %v3519 = vld [vmem:[%s1 + $0x1c] sm:$0xf]
  %v3520 = vld [vmem:[%s1 + $0x24] sm:$0xf]
  %v3521 = vld [vmem:[%s1 + $0x28] sm:$0xf]
  %v3522 = vld [vmem:[%s1 + $0x30] sm:$0xf]
  %v3523 = vld [vmem:[%s1 + $0x34] sm:$0xf]
  %v3524 = vld [vmem:[%s1 + $0x3c] sm:$0xf]
  %v3525 = vld [vmem:[%s1 + $0x40] sm:$0xf]
  %v3526 = vld [vmem:[%s1 + $0x48] sm:$0xf]
  %v3527 = vld [vmem:[%s1 + $0x4c] sm:$0xf]
  %v3528 = vld [vmem:[%s1 + $0x54] sm:$0xf]
  %v3529 = vld [vmem:[%s1 + $0x58] sm:$0xf]
  %v3530 = vld [vmem:[%s1] sm:$0xc]
  %v3531 = vld [vmem:[%s1 + $0xc] sm:$0xc]
  %v3532 = vld [vmem:[%s1 + $0x18] sm:$0xc]
  %v3533 = vld [vmem:[%s1 + $0x24] sm:$0xc]
  %v3534 = vld [vmem:[%s1 + $0x30] sm:$0xc]
  %v3535 = vld [vmem:[%s1 + $0x3c] sm:$0xc]
  %v3536 = vld [vmem:[%s1 + $0x48] sm:$0xc]
  %v3537 = vld [vmem:[%s1 + $0x54] sm:$0xc]
  %v3554 = vrot.slane %v3530, 6
  %v3555 = vrot.slane %v3554, 4
  %v3556 = vrot.slane %v2271, 6
  %v3557 = vsel %vm1431, %v3555, %v3556
  %v3558 = vrot.slane %v3556, 4
  %v3559 = vrot.slane %v3030, 6
  %v3560 = vsel %vm1431, %v3558, %v3559
  %v3561 = vrot.slane %v3531, 6
  %v3562 = vrot.slane %v3561, 4
  %v3563 = vrot.slane %v2274, 6
  %v3564 = vsel %vm1431, %v3562, %v3563
  %v3565 = vrot.slane %v3563, 4
  %v3566 = vrot.slane %v3031, 6
  %v3567 = vsel %vm1431, %v3565, %v3566
  %v3568 = vrot.slane %v3532, 6
  %v3569 = vrot.slane %v3568, 4
  %v3570 = vrot.slane %v2277, 6
  %v3571 = vsel %vm1431, %v3569, %v3570
  %v3572 = vrot.slane %v3570, 4
  %v3573 = vrot.slane %v3032, 6
  %v3574 = vsel %vm1431, %v3572, %v3573
  %v3575 = vrot.slane %v3533, 6
  %v3576 = vrot.slane %v3575, 4
  %v3577 = vrot.slane %v2280, 6
  %v3578 = vsel %vm1431, %v3576, %v3577
  %v3579 = vrot.slane %v3577, 4
  %v3580 = vrot.slane %v3033, 6
  %v3581 = vsel %vm1431, %v3579, %v3580
  %v3582 = vrot.slane %v3534, 6
  %v3583 = vrot.slane %v3582, 4
  %v3584 = vrot.slane %v2283, 6
  %v3585 = vsel %vm1431, %v3583, %v3584
  %v3586 = vrot.slane %v3584, 4
  %v3587 = vrot.slane %v3034, 6
  %v3588 = vsel %vm1431, %v3586, %v3587
  %v3589 = vrot.slane %v3535, 6
  %v3590 = vrot.slane %v3589, 4
  %v3591 = vrot.slane %v2286, 6
  %v3592 = vsel %vm1431, %v3590, %v3591
  %v3593 = vrot.slane %v3591, 4
  %v3594 = vrot.slane %v3035, 6
  %v3595 = vsel %vm1431, %v3593, %v3594
  %v3596 = vrot.slane %v3536, 6
  %v3597 = vrot.slane %v3596, 4
  %v3598 = vrot.slane %v2289, 6
  %v3599 = vsel %vm1431, %v3597, %v3598
  %v3600 = vrot.slane %v3598, 4
  %v3601 = vrot.slane %v3036, 6
  %v3602 = vsel %vm1431, %v3600, %v3601
  %v3603 = vrot.slane %v3537, 6
  %v3604 = vrot.slane %v3603, 4
  %v3605 = vrot.slane %v2292, 6
  %v3606 = vsel %vm1431, %v3604, %v3605
  %v3607 = vrot.slane %v3605, 4
  %v3608 = vrot.slane %v3037, 6
  %v3609 = vsel %vm1431, %v3607, %v3608
  %v3610 = vunpack.c.l.b16 %v3557
  %v3611 = vunpack.c.l.b16 %v3560
  %v3612 = vunpack.c.l.b16 %v3564
  %v3613 = vunpack.c.l.b16 %v3567
  %v3614 = vunpack.c.l.b16 %v3571
  %v3615 = vunpack.c.l.b16 %v3574
  %v3616 = vunpack.c.l.b16 %v3578
  %v3617 = vunpack.c.l.b16 %v3581
  %v3618 = vunpack.c.l.b16 %v3585
  %v3619 = vunpack.c.l.b16 %v3588
  %v3620 = vunpack.c.l.b16 %v3592
  %v3621 = vunpack.c.l.b16 %v3595
  %v3622 = vunpack.c.l.b16 %v3599
  %v3623 = vunpack.c.l.b16 %v3602
  %v3624 = vunpack.c.l.b16 %v3606
  %v3625 = vunpack.c.l.b16 %v3609
  %v3626 = vpack.c.b16 %v3611, %v3610
  %v3627 = vpack.c.b16 %v3613, %v3612
  %v3628 = vpack.c.b16 %v3615, %v3614
  %v3629 = vpack.c.b16 %v3617, %v3616
  %v3630 = vpack.c.b16 %v3619, %v3618
  %v3631 = vpack.c.b16 %v3621, %v3620
  %v3632 = vpack.c.b16 %v3623, %v3622
  %v3633 = vpack.c.b16 %v3625, %v3624
  %3642 = vmatpush.bf16.msra.mxu0 %v1558
  %3643 = vmatpush.bf16.msra.mxu0 %v1556
  %3644 = vmatpush.bf16.msra.mxu0 %v1554
  %3645 = vmatpush.bf16.msra.mxu0 %v1552
  %3646 = vmatpush.bf16.msra.mxu0 %v1550
  %3647 = vmatpush.bf16.msra.mxu0 %v1548
  %3648 = vmatpush.bf16.msra.mxu0 %v1546
  %3649 = vmatpush.bf16.msra.mxu0 %v1544
  %3650 = vmatmul.bf16.gmra.mxu0 %v3626
  %v3651 = vpop.f32.mrf.mxu0
  %v3652 = vadd.f32 0.0, %v3651
  %v3653 = vpop.f32.mrf.mxu0
  %v3654 = vadd.f32 0.0, %v3653
  %3655 = vmatmul.bf16.gmra.mxu0 %v3627
  %v3656 = vpop.f32.mrf.mxu0
  %v3657 = vadd.f32 0.0, %v3656
  %v3658 = vpop.f32.mrf.mxu0
  %v3659 = vadd.f32 0.0, %v3658
  %3660 = vmatmul.bf16.gmra.mxu0 %v3628
  %v3661 = vpop.f32.mrf.mxu0
  %v3662 = vadd.f32 0.0, %v3661
  %v3663 = vpop.f32.mrf.mxu0
  %v3664 = vadd.f32 0.0, %v3663
  %3665 = vmatmul.bf16.gmra.mxu0 %v3629
  %v3666 = vpop.f32.mrf.mxu0
  %v3667 = vadd.f32 0.0, %v3666
  %v3668 = vpop.f32.mrf.mxu0
  %v3669 = vadd.f32 0.0, %v3668
  %3670 = vmatmul.bf16.gmra.mxu0 %v3630
  %v3671 = vpop.f32.mrf.mxu0
  %v3672 = vadd.f32 0.0, %v3671
  %v3673 = vpop.f32.mrf.mxu0
  %v3674 = vadd.f32 0.0, %v3673
  %3675 = vmatmul.bf16.gmra.mxu0 %v3631
  %v3676 = vpop.f32.mrf.mxu0
  %v3677 = vadd.f32 0.0, %v3676
  %v3678 = vpop.f32.mrf.mxu0
  %v3679 = vadd.f32 0.0, %v3678
  %3680 = vmatmul.bf16.gmra.mxu0 %v3632
  %v3681 = vpop.f32.mrf.mxu0
  %v3682 = vadd.f32 0.0, %v3681
  %v3683 = vpop.f32.mrf.mxu0
  %v3684 = vadd.f32 0.0, %v3683
  %3685 = vmatmul.bf16.gmra.mxu0 %v3633
  %v3686 = vpop.f32.mrf.mxu0
  %v3687 = vadd.f32 0.0, %v3686
  %v3688 = vpop.f32.mrf.mxu0
  %v3689 = vadd.f32 0.0, %v3688
  %3690 = vdwg.mxu0
  %3691 = vmatpush.bf16.msra.mxu0 %v1559
  %3692 = vmatpush.bf16.msra.mxu0 %v1557
  %3693 = vmatpush.bf16.msra.mxu0 %v1555
  %3694 = vmatpush.bf16.msra.mxu0 %v1553
  %3695 = vmatpush.bf16.msra.mxu0 %v1551
  %3696 = vmatpush.bf16.msra.mxu0 %v1549
  %3697 = vmatpush.bf16.msra.mxu0 %v1547
  %3698 = vmatpush.bf16.msra.mxu0 %v1545
  %3699 = vmatmul.bf16.gmra.mxu0 %v3626
  %v3700 = vpop.f32.mrf.mxu0
  %v3701 = vadd.f32 0.0, %v3700
  %v3702 = vpop.f32.mrf.mxu0
  %v3703 = vadd.f32 0.0, %v3702
  %3704 = vmatmul.bf16.gmra.mxu0 %v3627
  %v3705 = vpop.f32.mrf.mxu0
  %v3706 = vadd.f32 0.0, %v3705
  %v3707 = vpop.f32.mrf.mxu0
  %v3708 = vadd.f32 0.0, %v3707
  %3709 = vmatmul.bf16.gmra.mxu0 %v3628
  %v3710 = vpop.f32.mrf.mxu0
  %v3711 = vadd.f32 0.0, %v3710
  %v3712 = vpop.f32.mrf.mxu0
  %v3713 = vadd.f32 0.0, %v3712
  %3714 = vmatmul.bf16.gmra.mxu0 %v3629
  %v3715 = vpop.f32.mrf.mxu0
  %v3716 = vadd.f32 0.0, %v3715
  %v3717 = vpop.f32.mrf.mxu0
  %v3718 = vadd.f32 0.0, %v3717
  %3719 = vmatmul.bf16.gmra.mxu0 %v3630
  %v3720 = vpop.f32.mrf.mxu0
  %v3721 = vadd.f32 0.0, %v3720
  %v3722 = vpop.f32.mrf.mxu0
  %v3723 = vadd.f32 0.0, %v3722
  %3724 = vmatmul.bf16.gmra.mxu0 %v3631
  %v3725 = vpop.f32.mrf.mxu0
  %v3726 = vadd.f32 0.0, %v3725
  %v3727 = vpop.f32.mrf.mxu0
  %v3728 = vadd.f32 0.0, %v3727
  %3729 = vmatmul.bf16.gmra.mxu0 %v3632
  %v3730 = vpop.f32.mrf.mxu0
  %v3731 = vadd.f32 0.0, %v3730
  %v3732 = vpop.f32.mrf.mxu0
  %v3733 = vadd.f32 0.0, %v3732
  %3734 = vmatmul.bf16.gmra.mxu0 %v3633
  %v3735 = vpop.f32.mrf.mxu0
  %v3736 = vadd.f32 0.0, %v3735
  %v3737 = vpop.f32.mrf.mxu0
  %v3738 = vadd.f32 0.0, %v3737
  %3739 = vdwg.mxu0
  %v3756 = vunpack.c.l.b16 %v3514
  %v3757 = vunpack.c.l.b16 %v3515
  %v3758 = vunpack.c.l.b16 %v3516
  %v3759 = vunpack.c.l.b16 %v3517
  %v3760 = vunpack.c.l.b16 %v3518
  %v3761 = vunpack.c.l.b16 %v3519
  %v3762 = vunpack.c.l.b16 %v3520
  %v3763 = vunpack.c.l.b16 %v3521
  %v3764 = vunpack.c.l.b16 %v3522
  %v3765 = vunpack.c.l.b16 %v3523
  %v3766 = vunpack.c.l.b16 %v3524
  %v3767 = vunpack.c.l.b16 %v3525
  %v3768 = vunpack.c.l.b16 %v3526
  %v3769 = vunpack.c.l.b16 %v3527
  %v3770 = vunpack.c.l.b16 %v3528
  %v3771 = vunpack.c.l.b16 %v3529
  %v3772 = vpack.c.b16 %v3757, %v3756
  %v3773 = vpack.c.b16 %v3759, %v3758
  %v3774 = vpack.c.b16 %v3761, %v3760
  %v3775 = vpack.c.b16 %v3763, %v3762
  %v3776 = vpack.c.b16 %v3765, %v3764
  %v3777 = vpack.c.b16 %v3767, %v3766
  %v3778 = vpack.c.b16 %v3769, %v3768
  %v3779 = vpack.c.b16 %v3771, %v3770
  %3788 = vmatpush.bf16.msra.mxu0 %v1720
  %3789 = vmatpush.bf16.msra.mxu0 %v1718
  %3790 = vmatpush.bf16.msra.mxu0 %v1716
  %3791 = vmatpush.bf16.msra.mxu0 %v1714
  %3792 = vmatpush.bf16.msra.mxu0 %v1712
  %3793 = vmatpush.bf16.msra.mxu0 %v1710
  %3794 = vmatpush.bf16.msra.mxu0 %v1708
  %3795 = vmatpush.bf16.msra.mxu0 %v1706
  %3796 = vmatmul.bf16.gmra.mxu0 %v3772
  %v3797 = vpop.f32.mrf.mxu0
  %v3798 = vadd.f32 %v3652, %v3797
  %v3799 = vpop.f32.mrf.mxu0
  %v3800 = vadd.f32 %v3654, %v3799
  %3801 = vmatmul.bf16.gmra.mxu0 %v3773
  %v3802 = vpop.f32.mrf.mxu0
  %v3803 = vadd.f32 %v3657, %v3802
  %v3804 = vpop.f32.mrf.mxu0
  %v3805 = vadd.f32 %v3659, %v3804
  %3806 = vmatmul.bf16.gmra.mxu0 %v3774
  %v3807 = vpop.f32.mrf.mxu0
  %v3808 = vadd.f32 %v3662, %v3807
  %v3809 = vpop.f32.mrf.mxu0
  %v3810 = vadd.f32 %v3664, %v3809
  %3811 = vmatmul.bf16.gmra.mxu0 %v3775
  %v3812 = vpop.f32.mrf.mxu0
  %v3813 = vadd.f32 %v3667, %v3812
  %v3814 = vpop.f32.mrf.mxu0
  %v3815 = vadd.f32 %v3669, %v3814
  %3816 = vmatmul.bf16.gmra.mxu0 %v3776
  %v3817 = vpop.f32.mrf.mxu0
  %v3818 = vadd.f32 %v3672, %v3817
  %v3819 = vpop.f32.mrf.mxu0
  %v3820 = vadd.f32 %v3674, %v3819
  %3821 = vmatmul.bf16.gmra.mxu0 %v3777
  %v3822 = vpop.f32.mrf.mxu0
  %v3823 = vadd.f32 %v3677, %v3822
  %v3824 = vpop.f32.mrf.mxu0
  %v3825 = vadd.f32 %v3679, %v3824
  %3826 = vmatmul.bf16.gmra.mxu0 %v3778
  %v3827 = vpop.f32.mrf.mxu0
  %v3828 = vadd.f32 %v3682, %v3827
  %v3829 = vpop.f32.mrf.mxu0
  %v3830 = vadd.f32 %v3684, %v3829
  %3831 = vmatmul.bf16.gmra.mxu0 %v3779
  %v3832 = vpop.f32.mrf.mxu0
  %v3833 = vadd.f32 %v3687, %v3832
  %v3834 = vpop.f32.mrf.mxu0
  %v3835 = vadd.f32 %v3689, %v3834
  %3836 = vdwg.mxu0
  %3837 = vmatpush.bf16.msra.mxu0 %v1721
  %3838 = vmatpush.bf16.msra.mxu0 %v1719
  %3839 = vmatpush.bf16.msra.mxu0 %v1717
  %3840 = vmatpush.bf16.msra.mxu0 %v1715
  %3841 = vmatpush.bf16.msra.mxu0 %v1713
  %3842 = vmatpush.bf16.msra.mxu0 %v1711
  %3843 = vmatpush.bf16.msra.mxu0 %v1709
  %3844 = vmatpush.bf16.msra.mxu0 %v1707
  %3845 = vmatmul.bf16.gmra.mxu0 %v3772
  %v3846 = vpop.f32.mrf.mxu0
  %v3847 = vadd.f32 %v3701, %v3846
  %v3848 = vpop.f32.mrf.mxu0
  %v3849 = vadd.f32 %v3703, %v3848
  %3850 = vmatmul.bf16.gmra.mxu0 %v3773
  %v3851 = vpop.f32.mrf.mxu0
  %v3852 = vadd.f32 %v3706, %v3851
  %v3853 = vpop.f32.mrf.mxu0
  %v3854 = vadd.f32 %v3708, %v3853
  %3855 = vmatmul.bf16.gmra.mxu0 %v3774
  %v3856 = vpop.f32.mrf.mxu0
  %v3857 = vadd.f32 %v3711, %v3856
  %v3858 = vpop.f32.mrf.mxu0
  %v3859 = vadd.f32 %v3713, %v3858
  %3860 = vmatmul.bf16.gmra.mxu0 %v3775
  %v3861 = vpop.f32.mrf.mxu0
  %v3862 = vadd.f32 %v3716, %v3861
  %v3863 = vpop.f32.mrf.mxu0
  %v3864 = vadd.f32 %v3718, %v3863
  %3865 = vmatmul.bf16.gmra.mxu0 %v3776
  %v3866 = vpop.f32.mrf.mxu0
  %v3867 = vadd.f32 %v3721, %v3866
  %v3868 = vpop.f32.mrf.mxu0
  %v3869 = vadd.f32 %v3723, %v3868
  %3870 = vmatmul.bf16.gmra.mxu0 %v3777
  %v3871 = vpop.f32.mrf.mxu0
  %v3872 = vadd.f32 %v3726, %v3871
  %v3873 = vpop.f32.mrf.mxu0
  %v3874 = vadd.f32 %v3728, %v3873
  %3875 = vmatmul.bf16.gmra.mxu0 %v3778
  %v3876 = vpop.f32.mrf.mxu0
  %v3877 = vadd.f32 %v3731, %v3876
  %v3878 = vpop.f32.mrf.mxu0
  %v3879 = vadd.f32 %v3733, %v3878
  %3880 = vmatmul.bf16.gmra.mxu0 %v3779
  %v3881 = vpop.f32.mrf.mxu0
  %v3882 = vadd.f32 %v3736, %v3881
  %v3883 = vpop.f32.mrf.mxu0
  %v3884 = vadd.f32 %v3738, %v3883
  %3885 = vdwg.mxu0
  %v3886 = vadd.f32 %v3450, %v1798
  %v3887 = vadd.f32 %v3451, %v1799
  %v3888 = vadd.f32 %v3452, %v1800
  %v3889 = vadd.f32 %v3453, %v1801
  %v3890 = vadd.f32 %v3454, %v1798
  %v3891 = vadd.f32 %v3455, %v1799
  %v3892 = vadd.f32 %v3456, %v1800
  %v3893 = vadd.f32 %v3457, %v1801
  %v3894 = vadd.f32 %v3458, %v1798
  %v3895 = vadd.f32 %v3459, %v1799
  %v3896 = vadd.f32 %v3460, %v1800
  %v3897 = vadd.f32 %v3461, %v1801
  %v3898 = vadd.f32 %v3462, %v1798
  %v3899 = vadd.f32 %v3463, %v1799
  %v3900 = vadd.f32 %v3464, %v1800
  %v3901 = vadd.f32 %v3465, %v1801
  %v3902 = vadd.f32 %v3466, %v1798
  %v3903 = vadd.f32 %v3467, %v1799
  %v3904 = vadd.f32 %v3468, %v1800
  %v3905 = vadd.f32 %v3469, %v1801
  %v3906 = vadd.f32 %v3470, %v1798
  %v3907 = vadd.f32 %v3471, %v1799
  %v3908 = vadd.f32 %v3472, %v1800
  %v3909 = vadd.f32 %v3473, %v1801
  %v3910 = vadd.f32 %v3474, %v1798
  %v3911 = vadd.f32 %v3475, %v1799
  %v3912 = vadd.f32 %v3476, %v1800
  %v3913 = vadd.f32 %v3477, %v1801
  %v3914 = vadd.f32 %v3478, %v1798
  %v3915 = vadd.f32 %v3479, %v1799
  %v3916 = vadd.f32 %v3480, %v1800
  %v3917 = vadd.f32 %v3481, %v1801
  %v3918 = vadd.f32 %v3482, %v1798
  %v3919 = vadd.f32 %v3483, %v1799
  %v3920 = vadd.f32 %v3484, %v1800
  %v3921 = vadd.f32 %v3485, %v1801
  %v3922 = vadd.f32 %v3486, %v1798
  %v3923 = vadd.f32 %v3487, %v1799
  %v3924 = vadd.f32 %v3488, %v1800
  %v3925 = vadd.f32 %v3489, %v1801
  %v3926 = vadd.f32 %v3490, %v1798
  %v3927 = vadd.f32 %v3491, %v1799
  %v3928 = vadd.f32 %v3492, %v1800
  %v3929 = vadd.f32 %v3493, %v1801
  %v3930 = vadd.f32 %v3494, %v1798
  %v3931 = vadd.f32 %v3495, %v1799
  %v3932 = vadd.f32 %v3496, %v1800
  %v3933 = vadd.f32 %v3497, %v1801
  %v3934 = vadd.f32 %v3498, %v1798
  %v3935 = vadd.f32 %v3499, %v1799
  %v3936 = vadd.f32 %v3500, %v1800
  %v3937 = vadd.f32 %v3501, %v1801
  %v3938 = vadd.f32 %v3502, %v1798
  %v3939 = vadd.f32 %v3503, %v1799
  %v3940 = vadd.f32 %v3504, %v1800
  %v3941 = vadd.f32 %v3505, %v1801
  %v3942 = vadd.f32 %v3506, %v1798
  %v3943 = vadd.f32 %v3507, %v1799
  %v3944 = vadd.f32 %v3508, %v1800
  %v3945 = vadd.f32 %v3509, %v1801
  %v3946 = vadd.f32 %v3510, %v1798
  %v3947 = vadd.f32 %v3511, %v1799
  %v3948 = vadd.f32 %v3512, %v1800
  %v3949 = vadd.f32 %v3513, %v1801
  %v3950 = vadd.f32 %v3888, %v3798
  %v3951 = vadd.f32 %v3892, %v3800
  %v3952 = vadd.f32 %v3896, %v3803
  %v3953 = vadd.f32 %v3900, %v3805
  %v3954 = vadd.f32 %v3904, %v3808
  %v3955 = vadd.f32 %v3908, %v3810
  %v3956 = vadd.f32 %v3912, %v3813
  %v3957 = vadd.f32 %v3916, %v3815
  %v3958 = vadd.f32 %v3920, %v3818
  %v3959 = vadd.f32 %v3924, %v3820
  %v3960 = vadd.f32 %v3928, %v3823
  %v3961 = vadd.f32 %v3932, %v3825
  %v3962 = vadd.f32 %v3936, %v3828
  %v3963 = vadd.f32 %v3940, %v3830
  %v3964 = vadd.f32 %v3944, %v3833
  %v3965 = vadd.f32 %v3948, %v3835
  %v3966 = vadd.f32 %v3889, %v3847
  %v3967 = vadd.f32 %v3893, %v3849
  %v3968 = vadd.f32 %v3897, %v3852
  %v3969 = vadd.f32 %v3901, %v3854
  %v3970 = vadd.f32 %v3905, %v3857
  %v3971 = vadd.f32 %v3909, %v3859
  %v3972 = vadd.f32 %v3913, %v3862
  %v3973 = vadd.f32 %v3917, %v3864
  %v3974 = vadd.f32 %v3921, %v3867
  %v3975 = vadd.f32 %v3925, %v3869
  %v3976 = vadd.f32 %v3929, %v3872
  %v3977 = vadd.f32 %v3933, %v3874
  %v3978 = vadd.f32 %v3937, %v3877
  %v3979 = vadd.f32 %v3941, %v3879
  %v3980 = vadd.f32 %v3945, %v3882
  %v3981 = vadd.f32 %v3949, %v3884
  %v3982 = vxor.u32 %v3887, 2147483648
  %v3983 = vxor.u32 %v3891, 2147483648
  %v3984 = vxor.u32 %v3895, 2147483648
  %v3985 = vxor.u32 %v3899, 2147483648
  %v3986 = vxor.u32 %v3903, 2147483648
  %v3987 = vxor.u32 %v3907, 2147483648
  %v3988 = vxor.u32 %v3911, 2147483648
  %v3989 = vxor.u32 %v3915, 2147483648
  %v3990 = vxor.u32 %v3919, 2147483648
  %v3991 = vxor.u32 %v3923, 2147483648
  %v3992 = vxor.u32 %v3927, 2147483648
  %v3993 = vxor.u32 %v3931, 2147483648
  %v3994 = vxor.u32 %v3935, 2147483648
  %v3995 = vxor.u32 %v3939, 2147483648
  %v3996 = vxor.u32 %v3943, 2147483648
  %v3997 = vxor.u32 %v3947, 2147483648
  %v3998 = vmul.f32 %v3982, 1.442695
  %v3999 = vpow.pop %v3998
  %v4000 = vmul.f32 %v3983, 1.442695
  %v4001 = vpow.pop %v4000
  %v4002 = vmul.f32 %v3984, 1.442695
  %v4003 = vpow.pop %v4002
  %v4004 = vmul.f32 %v3985, 1.442695
  %v4005 = vpow.pop %v4004
  %v4006 = vmul.f32 %v3986, 1.442695
  %v4007 = vpow.pop %v4006
  %v4008 = vmul.f32 %v3987, 1.442695
  %v4009 = vpow.pop %v4008
  %v4010 = vmul.f32 %v3988, 1.442695
  %v4011 = vpow.pop %v4010
  %v4012 = vmul.f32 %v3989, 1.442695
  %v4013 = vpow.pop %v4012
  %v4014 = vmul.f32 %v3990, 1.442695
  %v4015 = vpow.pop %v4014
  %v4016 = vmul.f32 %v3991, 1.442695
  %v4017 = vpow.pop %v4016
  %v4018 = vmul.f32 %v3992, 1.442695
  %v4019 = vpow.pop %v4018
  %v4020 = vmul.f32 %v3993, 1.442695
  %v4021 = vpow.pop %v4020
  %v4022 = vmul.f32 %v3994, 1.442695
  %v4023 = vpow.pop %v4022
  %v4024 = vmul.f32 %v3995, 1.442695
  %v4025 = vpow.pop %v4024
  %v4026 = vmul.f32 %v3996, 1.442695
  %v4027 = vpow.pop %v4026
  %v4028 = vmul.f32 %v3997, 1.442695
  %v4029 = vpow.pop %v4028
  %v4030 = vadd.f32 %v3999, 1.0
  %v4031 = vadd.f32 %v4001, 1.0
  %v4032 = vadd.f32 %v4003, 1.0
  %v4033 = vadd.f32 %v4005, 1.0
  %v4034 = vadd.f32 %v4007, 1.0
  %v4035 = vadd.f32 %v4009, 1.0
  %v4036 = vadd.f32 %v4011, 1.0
  %v4037 = vadd.f32 %v4013, 1.0
  %v4038 = vadd.f32 %v4015, 1.0
  %v4039 = vadd.f32 %v4017, 1.0
  %v4040 = vadd.f32 %v4019, 1.0
  %v4041 = vadd.f32 %v4021, 1.0
  %v4042 = vadd.f32 %v4023, 1.0
  %v4043 = vadd.f32 %v4025, 1.0
  %v4044 = vadd.f32 %v4027, 1.0
  %v4045 = vadd.f32 %v4029, 1.0
  %v4046 = vrcp.pop %v4030
  %v4047 = vmul.f32 %v4030, %v4046
  %v4048 = vsub.f32 1.0, %v4047
  %v4049 = vmul.f32 %v4046, %v4048
  %v4050 = vadd.f32 %v4046, %v4049
  %vm4051 = vweird.f32 %v4030
  %vm4052 = vweird.f32 %v4046
  %vm4053 = vmor %vm4051, %vm4052
  %v4054 = vsel %vm4053, %v4046, %v4050
  %v4055 = vand.u32 2147483647, %v4030
  %vm4056 = vcmp.eq.f32.partialorder %v4055, 8.507059e+37
  %v4057 = vand.u32 %v4030, 2147483648
  %v4058 = vor.u32 1.1754944e-38, %v4057
  %v4059 = vsel %vm4056, %v4058, %v4054
  %v4060 = vmul.f32 1.0, %v4059
  %v4061 = vrcp.pop %v4031
  %v4062 = vmul.f32 %v4031, %v4061
  %v4063 = vsub.f32 1.0, %v4062
  %v4064 = vmul.f32 %v4061, %v4063
  %v4065 = vadd.f32 %v4061, %v4064
  %vm4066 = vweird.f32 %v4031
  %vm4067 = vweird.f32 %v4061
  %vm4068 = vmor %vm4066, %vm4067
  %v4069 = vsel %vm4068, %v4061, %v4065
  %v4070 = vand.u32 2147483647, %v4031
  %vm4071 = vcmp.eq.f32.partialorder %v4070, 8.507059e+37
  %v4072 = vand.u32 %v4031, 2147483648
  %v4073 = vor.u32 1.1754944e-38, %v4072
  %v4074 = vsel %vm4071, %v4073, %v4069
  %v4075 = vmul.f32 1.0, %v4074
  %v4076 = vrcp.pop %v4032
  %v4077 = vmul.f32 %v4032, %v4076
  %v4078 = vsub.f32 1.0, %v4077
  %v4079 = vmul.f32 %v4076, %v4078
  %v4080 = vadd.f32 %v4076, %v4079
  %vm4081 = vweird.f32 %v4032
  %vm4082 = vweird.f32 %v4076
  %vm4083 = vmor %vm4081, %vm4082
  %v4084 = vsel %vm4083, %v4076, %v4080
  %v4085 = vand.u32 2147483647, %v4032
  %vm4086 = vcmp.eq.f32.partialorder %v4085, 8.507059e+37
  %v4087 = vand.u32 %v4032, 2147483648
  %v4088 = vor.u32 1.1754944e-38, %v4087
  %v4089 = vsel %vm4086, %v4088, %v4084
  %v4090 = vmul.f32 1.0, %v4089
  %v4091 = vrcp.pop %v4033
  %v4092 = vmul.f32 %v4033, %v4091
  %v4093 = vsub.f32 1.0, %v4092
  %v4094 = vmul.f32 %v4091, %v4093
  %v4095 = vadd.f32 %v4091, %v4094
  %vm4096 = vweird.f32 %v4033
  %vm4097 = vweird.f32 %v4091
  %vm4098 = vmor %vm4096, %vm4097
  %v4099 = vsel %vm4098, %v4091, %v4095
  %v4100 = vand.u32 2147483647, %v4033
  %vm4101 = vcmp.eq.f32.partialorder %v4100, 8.507059e+37
  %v4102 = vand.u32 %v4033, 2147483648
  %v4103 = vor.u32 1.1754944e-38, %v4102
  %v4104 = vsel %vm4101, %v4103, %v4099
  %v4105 = vmul.f32 1.0, %v4104
  %v4106 = vrcp.pop %v4034
  %v4107 = vmul.f32 %v4034, %v4106
  %v4108 = vsub.f32 1.0, %v4107
  %v4109 = vmul.f32 %v4106, %v4108
  %v4110 = vadd.f32 %v4106, %v4109
  %vm4111 = vweird.f32 %v4034
  %vm4112 = vweird.f32 %v4106
  %vm4113 = vmor %vm4111, %vm4112
  %v4114 = vsel %vm4113, %v4106, %v4110
  %v4115 = vand.u32 2147483647, %v4034
  %vm4116 = vcmp.eq.f32.partialorder %v4115, 8.507059e+37
  %v4117 = vand.u32 %v4034, 2147483648
  %v4118 = vor.u32 1.1754944e-38, %v4117
  %v4119 = vsel %vm4116, %v4118, %v4114
  %v4120 = vmul.f32 1.0, %v4119
  %v4121 = vrcp.pop %v4035
  %v4122 = vmul.f32 %v4035, %v4121
  %v4123 = vsub.f32 1.0, %v4122
  %v4124 = vmul.f32 %v4121, %v4123
  %v4125 = vadd.f32 %v4121, %v4124
  %vm4126 = vweird.f32 %v4035
  %vm4127 = vweird.f32 %v4121
  %vm4128 = vmor %vm4126, %vm4127
  %v4129 = vsel %vm4128, %v4121, %v4125
  %v4130 = vand.u32 2147483647, %v4035
  %vm4131 = vcmp.eq.f32.partialorder %v4130, 8.507059e+37
  %v4132 = vand.u32 %v4035, 2147483648
  %v4133 = vor.u32 1.1754944e-38, %v4132
  %v4134 = vsel %vm4131, %v4133, %v4129
  %v4135 = vmul.f32 1.0, %v4134
  %v4136 = vrcp.pop %v4036
  %v4137 = vmul.f32 %v4036, %v4136
  %v4138 = vsub.f32 1.0, %v4137
  %v4139 = vmul.f32 %v4136, %v4138
  %v4140 = vadd.f32 %v4136, %v4139
  %vm4141 = vweird.f32 %v4036
  %vm4142 = vweird.f32 %v4136
  %vm4143 = vmor %vm4141, %vm4142
  %v4144 = vsel %vm4143, %v4136, %v4140
  %v4145 = vand.u32 2147483647, %v4036
  %vm4146 = vcmp.eq.f32.partialorder %v4145, 8.507059e+37
  %v4147 = vand.u32 %v4036, 2147483648
  %v4148 = vor.u32 1.1754944e-38, %v4147
  %v4149 = vsel %vm4146, %v4148, %v4144
  %v4150 = vmul.f32 1.0, %v4149
  %v4151 = vrcp.pop %v4037
  %v4152 = vmul.f32 %v4037, %v4151
  %v4153 = vsub.f32 1.0, %v4152
  %v4154 = vmul.f32 %v4151, %v4153
  %v4155 = vadd.f32 %v4151, %v4154
  %vm4156 = vweird.f32 %v4037
  %vm4157 = vweird.f32 %v4151
  %vm4158 = vmor %vm4156, %vm4157
  %v4159 = vsel %vm4158, %v4151, %v4155
  %v4160 = vand.u32 2147483647, %v4037
  %vm4161 = vcmp.eq.f32.partialorder %v4160, 8.507059e+37
  %v4162 = vand.u32 %v4037, 2147483648
  %v4163 = vor.u32 1.1754944e-38, %v4162
  %v4164 = vsel %vm4161, %v4163, %v4159
  %v4165 = vmul.f32 1.0, %v4164
  %v4166 = vrcp.pop %v4038
  %v4167 = vmul.f32 %v4038, %v4166
  %v4168 = vsub.f32 1.0, %v4167
  %v4169 = vmul.f32 %v4166, %v4168
  %v4170 = vadd.f32 %v4166, %v4169
  %vm4171 = vweird.f32 %v4038
  %vm4172 = vweird.f32 %v4166
  %vm4173 = vmor %vm4171, %vm4172
  %v4174 = vsel %vm4173, %v4166, %v4170
  %v4175 = vand.u32 2147483647, %v4038
  %vm4176 = vcmp.eq.f32.partialorder %v4175, 8.507059e+37
  %v4177 = vand.u32 %v4038, 2147483648
  %v4178 = vor.u32 1.1754944e-38, %v4177
  %v4179 = vsel %vm4176, %v4178, %v4174
  %v4180 = vmul.f32 1.0, %v4179
  %v4181 = vrcp.pop %v4039
  %v4182 = vmul.f32 %v4039, %v4181
  %v4183 = vsub.f32 1.0, %v4182
  %v4184 = vmul.f32 %v4181, %v4183
  %v4185 = vadd.f32 %v4181, %v4184
  %vm4186 = vweird.f32 %v4039
  %vm4187 = vweird.f32 %v4181
  %vm4188 = vmor %vm4186, %vm4187
  %v4189 = vsel %vm4188, %v4181, %v4185
  %v4190 = vand.u32 2147483647, %v4039
  %vm4191 = vcmp.eq.f32.partialorder %v4190, 8.507059e+37
  %v4192 = vand.u32 %v4039, 2147483648
  %v4193 = vor.u32 1.1754944e-38, %v4192
  %v4194 = vsel %vm4191, %v4193, %v4189
  %v4195 = vmul.f32 1.0, %v4194
  %v4196 = vrcp.pop %v4040
  %v4197 = vmul.f32 %v4040, %v4196
  %v4198 = vsub.f32 1.0, %v4197
  %v4199 = vmul.f32 %v4196, %v4198
  %v4200 = vadd.f32 %v4196, %v4199
  %vm4201 = vweird.f32 %v4040
  %vm4202 = vweird.f32 %v4196
  %vm4203 = vmor %vm4201, %vm4202
  %v4204 = vsel %vm4203, %v4196, %v4200
  %v4205 = vand.u32 2147483647, %v4040
  %vm4206 = vcmp.eq.f32.partialorder %v4205, 8.507059e+37
  %v4207 = vand.u32 %v4040, 2147483648
  %v4208 = vor.u32 1.1754944e-38, %v4207
  %v4209 = vsel %vm4206, %v4208, %v4204
  %v4210 = vmul.f32 1.0, %v4209
  %v4211 = vrcp.pop %v4041
  %v4212 = vmul.f32 %v4041, %v4211
  %v4213 = vsub.f32 1.0, %v4212
  %v4214 = vmul.f32 %v4211, %v4213
  %v4215 = vadd.f32 %v4211, %v4214
  %vm4216 = vweird.f32 %v4041
  %vm4217 = vweird.f32 %v4211
  %vm4218 = vmor %vm4216, %vm4217
  %v4219 = vsel %vm4218, %v4211, %v4215
  %v4220 = vand.u32 2147483647, %v4041
  %vm4221 = vcmp.eq.f32.partialorder %v4220, 8.507059e+37
  %v4222 = vand.u32 %v4041, 2147483648
  %v4223 = vor.u32 1.1754944e-38, %v4222
  %v4224 = vsel %vm4221, %v4223, %v4219
  %v4225 = vmul.f32 1.0, %v4224
  %v4226 = vrcp.pop %v4042
  %v4227 = vmul.f32 %v4042, %v4226
  %v4228 = vsub.f32 1.0, %v4227
  %v4229 = vmul.f32 %v4226, %v4228
  %v4230 = vadd.f32 %v4226, %v4229
  %vm4231 = vweird.f32 %v4042
  %vm4232 = vweird.f32 %v4226
  %vm4233 = vmor %vm4231, %vm4232
  %v4234 = vsel %vm4233, %v4226, %v4230
  %v4235 = vand.u32 2147483647, %v4042
  %vm4236 = vcmp.eq.f32.partialorder %v4235, 8.507059e+37
  %v4237 = vand.u32 %v4042, 2147483648
  %v4238 = vor.u32 1.1754944e-38, %v4237
  %v4239 = vsel %vm4236, %v4238, %v4234
  %v4240 = vmul.f32 1.0, %v4239
  %v4241 = vrcp.pop %v4043
  %v4242 = vmul.f32 %v4043, %v4241
  %v4243 = vsub.f32 1.0, %v4242
  %v4244 = vmul.f32 %v4241, %v4243
  %v4245 = vadd.f32 %v4241, %v4244
  %vm4246 = vweird.f32 %v4043
  %vm4247 = vweird.f32 %v4241
  %vm4248 = vmor %vm4246, %vm4247
  %v4249 = vsel %vm4248, %v4241, %v4245
  %v4250 = vand.u32 2147483647, %v4043
  %vm4251 = vcmp.eq.f32.partialorder %v4250, 8.507059e+37
  %v4252 = vand.u32 %v4043, 2147483648
  %v4253 = vor.u32 1.1754944e-38, %v4252
  %v4254 = vsel %vm4251, %v4253, %v4249
  %v4255 = vmul.f32 1.0, %v4254
  %v4256 = vrcp.pop %v4044
  %v4257 = vmul.f32 %v4044, %v4256
  %v4258 = vsub.f32 1.0, %v4257
  %v4259 = vmul.f32 %v4256, %v4258
  %v4260 = vadd.f32 %v4256, %v4259
  %vm4261 = vweird.f32 %v4044
  %vm4262 = vweird.f32 %v4256
  %vm4263 = vmor %vm4261, %vm4262
  %v4264 = vsel %vm4263, %v4256, %v4260
  %v4265 = vand.u32 2147483647, %v4044
  %vm4266 = vcmp.eq.f32.partialorder %v4265, 8.507059e+37
  %v4267 = vand.u32 %v4044, 2147483648
  %v4268 = vor.u32 1.1754944e-38, %v4267
  %v4269 = vsel %vm4266, %v4268, %v4264
  %v4270 = vmul.f32 1.0, %v4269
  %v4271 = vrcp.pop %v4045
  %v4272 = vmul.f32 %v4045, %v4271
  %v4273 = vsub.f32 1.0, %v4272
  %v4274 = vmul.f32 %v4271, %v4273
  %v4275 = vadd.f32 %v4271, %v4274
  %vm4276 = vweird.f32 %v4045
  %vm4277 = vweird.f32 %v4271
  %vm4278 = vmor %vm4276, %vm4277
  %v4279 = vsel %vm4278, %v4271, %v4275
  %v4280 = vand.u32 2147483647, %v4045
  %vm4281 = vcmp.eq.f32.partialorder %v4280, 8.507059e+37
  %v4282 = vand.u32 %v4045, 2147483648
  %v4283 = vor.u32 1.1754944e-38, %v4282
  %v4284 = vsel %vm4281, %v4283, %v4279
  %v4285 = vmul.f32 1.0, %v4284
  %v4286 = vmul.f32 %v3886, %v4060
  %v4287 = vmul.f32 %v3890, %v4075
  %v4288 = vmul.f32 %v3894, %v4090
  %v4289 = vmul.f32 %v3898, %v4105
  %v4290 = vmul.f32 %v3902, %v4120
  %v4291 = vmul.f32 %v3906, %v4135
  %v4292 = vmul.f32 %v3910, %v4150
  %v4293 = vmul.f32 %v3914, %v4165
  %v4294 = vmul.f32 %v3918, %v4180
  %v4295 = vmul.f32 %v3922, %v4195
  %v4296 = vmul.f32 %v3926, %v4210
  %v4297 = vmul.f32 %v3930, %v4225
  %v4298 = vmul.f32 %v3934, %v4240
  %v4299 = vmul.f32 %v3938, %v4255
  %v4300 = vmul.f32 %v3942, %v4270
  %v4301 = vmul.f32 %v3946, %v4285
  %v4302 = vxor.u32 %v3966, 2147483648
  %v4303 = vxor.u32 %v3967, 2147483648
  %v4304 = vxor.u32 %v3968, 2147483648
  %v4305 = vxor.u32 %v3969, 2147483648
  %v4306 = vxor.u32 %v3970, 2147483648
  %v4307 = vxor.u32 %v3971, 2147483648
  %v4308 = vxor.u32 %v3972, 2147483648
  %v4309 = vxor.u32 %v3973, 2147483648
  %v4310 = vxor.u32 %v3974, 2147483648
  %v4311 = vxor.u32 %v3975, 2147483648
  %v4312 = vxor.u32 %v3976, 2147483648
  %v4313 = vxor.u32 %v3977, 2147483648
  %v4314 = vxor.u32 %v3978, 2147483648
  %v4315 = vxor.u32 %v3979, 2147483648
  %v4316 = vxor.u32 %v3980, 2147483648
  %v4317 = vxor.u32 %v3981, 2147483648
  %v4318 = vmul.f32 %v4302, 1.442695
  %v4319 = vpow.pop %v4318
  %v4320 = vmul.f32 %v4303, 1.442695
  %v4321 = vpow.pop %v4320
  %v4322 = vmul.f32 %v4304, 1.442695
  %v4323 = vpow.pop %v4322
  %v4324 = vmul.f32 %v4305, 1.442695
  %v4325 = vpow.pop %v4324
  %v4326 = vmul.f32 %v4306, 1.442695
  %v4327 = vpow.pop %v4326
  %v4328 = vmul.f32 %v4307, 1.442695
  %v4329 = vpow.pop %v4328
  %v4330 = vmul.f32 %v4308, 1.442695
  %v4331 = vpow.pop %v4330
  %v4332 = vmul.f32 %v4309, 1.442695
  %v4333 = vpow.pop %v4332
  %v4334 = vmul.f32 %v4310, 1.442695
  %v4335 = vpow.pop %v4334
  %v4336 = vmul.f32 %v4311, 1.442695
  %v4337 = vpow.pop %v4336
  %v4338 = vmul.f32 %v4312, 1.442695
  %v4339 = vpow.pop %v4338
  %v4340 = vmul.f32 %v4313, 1.442695
  %v4341 = vpow.pop %v4340
  %v4342 = vmul.f32 %v4314, 1.442695
  %v4343 = vpow.pop %v4342
  %v4344 = vmul.f32 %v4315, 1.442695
  %v4345 = vpow.pop %v4344
  %v4346 = vmul.f32 %v4316, 1.442695
  %v4347 = vpow.pop %v4346
  %v4348 = vmul.f32 %v4317, 1.442695
  %v4349 = vpow.pop %v4348
  %v4350 = vadd.f32 %v4319, 1.0
  %v4351 = vadd.f32 %v4321, 1.0
  %v4352 = vadd.f32 %v4323, 1.0
  %v4353 = vadd.f32 %v4325, 1.0
  %v4354 = vadd.f32 %v4327, 1.0
  %v4355 = vadd.f32 %v4329, 1.0
  %v4356 = vadd.f32 %v4331, 1.0
  %v4357 = vadd.f32 %v4333, 1.0
  %v4358 = vadd.f32 %v4335, 1.0
  %v4359 = vadd.f32 %v4337, 1.0
  %v4360 = vadd.f32 %v4339, 1.0
  %v4361 = vadd.f32 %v4341, 1.0
  %v4362 = vadd.f32 %v4343, 1.0
  %v4363 = vadd.f32 %v4345, 1.0
  %v4364 = vadd.f32 %v4347, 1.0
  %v4365 = vadd.f32 %v4349, 1.0
  %v4366 = vrcp.pop %v4350
  %v4367 = vmul.f32 %v4350, %v4366
  %v4368 = vsub.f32 1.0, %v4367
  %v4369 = vmul.f32 %v4366, %v4368
  %v4370 = vadd.f32 %v4366, %v4369
  %vm4371 = vweird.f32 %v4350
  %vm4372 = vweird.f32 %v4366
  %vm4373 = vmor %vm4371, %vm4372
  %v4374 = vsel %vm4373, %v4366, %v4370
  %v4375 = vand.u32 2147483647, %v4350
  %vm4376 = vcmp.eq.f32.partialorder %v4375, 8.507059e+37
  %v4377 = vand.u32 %v4350, 2147483648
  %v4378 = vor.u32 1.1754944e-38, %v4377
  %v4379 = vsel %vm4376, %v4378, %v4374
  %v4380 = vmul.f32 1.0, %v4379
  %v4381 = vrcp.pop %v4351
  %v4382 = vmul.f32 %v4351, %v4381
  %v4383 = vsub.f32 1.0, %v4382
  %v4384 = vmul.f32 %v4381, %v4383
  %v4385 = vadd.f32 %v4381, %v4384
  %vm4386 = vweird.f32 %v4351
  %vm4387 = vweird.f32 %v4381
  %vm4388 = vmor %vm4386, %vm4387
  %v4389 = vsel %vm4388, %v4381, %v4385
  %v4390 = vand.u32 2147483647, %v4351
  %vm4391 = vcmp.eq.f32.partialorder %v4390, 8.507059e+37
  %v4392 = vand.u32 %v4351, 2147483648
  %v4393 = vor.u32 1.1754944e-38, %v4392
  %v4394 = vsel %vm4391, %v4393, %v4389
  %v4395 = vmul.f32 1.0, %v4394
  %v4396 = vrcp.pop %v4352
  %v4397 = vmul.f32 %v4352, %v4396
  %v4398 = vsub.f32 1.0, %v4397
  %v4399 = vmul.f32 %v4396, %v4398
  %v4400 = vadd.f32 %v4396, %v4399
  %vm4401 = vweird.f32 %v4352
  %vm4402 = vweird.f32 %v4396
  %vm4403 = vmor %vm4401, %vm4402
  %v4404 = vsel %vm4403, %v4396, %v4400
  %v4405 = vand.u32 2147483647, %v4352
  %vm4406 = vcmp.eq.f32.partialorder %v4405, 8.507059e+37
  %v4407 = vand.u32 %v4352, 2147483648
  %v4408 = vor.u32 1.1754944e-38, %v4407
  %v4409 = vsel %vm4406, %v4408, %v4404
  %v4410 = vmul.f32 1.0, %v4409
  %v4411 = vrcp.pop %v4353
  %v4412 = vmul.f32 %v4353, %v4411
  %v4413 = vsub.f32 1.0, %v4412
  %v4414 = vmul.f32 %v4411, %v4413
  %v4415 = vadd.f32 %v4411, %v4414
  %vm4416 = vweird.f32 %v4353
  %vm4417 = vweird.f32 %v4411
  %vm4418 = vmor %vm4416, %vm4417
  %v4419 = vsel %vm4418, %v4411, %v4415
  %v4420 = vand.u32 2147483647, %v4353
  %vm4421 = vcmp.eq.f32.partialorder %v4420, 8.507059e+37
  %v4422 = vand.u32 %v4353, 2147483648
  %v4423 = vor.u32 1.1754944e-38, %v4422
  %v4424 = vsel %vm4421, %v4423, %v4419
  %v4425 = vmul.f32 1.0, %v4424
  %v4426 = vrcp.pop %v4354
  %v4427 = vmul.f32 %v4354, %v4426
  %v4428 = vsub.f32 1.0, %v4427
  %v4429 = vmul.f32 %v4426, %v4428
  %v4430 = vadd.f32 %v4426, %v4429
  %vm4431 = vweird.f32 %v4354
  %vm4432 = vweird.f32 %v4426
  %vm4433 = vmor %vm4431, %vm4432
  %v4434 = vsel %vm4433, %v4426, %v4430
  %v4435 = vand.u32 2147483647, %v4354
  %vm4436 = vcmp.eq.f32.partialorder %v4435, 8.507059e+37
  %v4437 = vand.u32 %v4354, 2147483648
  %v4438 = vor.u32 1.1754944e-38, %v4437
  %v4439 = vsel %vm4436, %v4438, %v4434
  %v4440 = vmul.f32 1.0, %v4439
  %v4441 = vrcp.pop %v4355
  %v4442 = vmul.f32 %v4355, %v4441
  %v4443 = vsub.f32 1.0, %v4442
  %v4444 = vmul.f32 %v4441, %v4443
  %v4445 = vadd.f32 %v4441, %v4444
  %vm4446 = vweird.f32 %v4355
  %vm4447 = vweird.f32 %v4441
  %vm4448 = vmor %vm4446, %vm4447
  %v4449 = vsel %vm4448, %v4441, %v4445
  %v4450 = vand.u32 2147483647, %v4355
  %vm4451 = vcmp.eq.f32.partialorder %v4450, 8.507059e+37
  %v4452 = vand.u32 %v4355, 2147483648
  %v4453 = vor.u32 1.1754944e-38, %v4452
  %v4454 = vsel %vm4451, %v4453, %v4449
  %v4455 = vmul.f32 1.0, %v4454
  %v4456 = vrcp.pop %v4356
  %v4457 = vmul.f32 %v4356, %v4456
  %v4458 = vsub.f32 1.0, %v4457
  %v4459 = vmul.f32 %v4456, %v4458
  %v4460 = vadd.f32 %v4456, %v4459
  %vm4461 = vweird.f32 %v4356
  %vm4462 = vweird.f32 %v4456
  %vm4463 = vmor %vm4461, %vm4462
  %v4464 = vsel %vm4463, %v4456, %v4460
  %v4465 = vand.u32 2147483647, %v4356
  %vm4466 = vcmp.eq.f32.partialorder %v4465, 8.507059e+37
  %v4467 = vand.u32 %v4356, 2147483648
  %v4468 = vor.u32 1.1754944e-38, %v4467
  %v4469 = vsel %vm4466, %v4468, %v4464
  %v4470 = vmul.f32 1.0, %v4469
  %v4471 = vrcp.pop %v4357
  %v4472 = vmul.f32 %v4357, %v4471
  %v4473 = vsub.f32 1.0, %v4472
  %v4474 = vmul.f32 %v4471, %v4473
  %v4475 = vadd.f32 %v4471, %v4474
  %vm4476 = vweird.f32 %v4357
  %vm4477 = vweird.f32 %v4471
  %vm4478 = vmor %vm4476, %vm4477
  %v4479 = vsel %vm4478, %v4471, %v4475
  %v4480 = vand.u32 2147483647, %v4357
  %vm4481 = vcmp.eq.f32.partialorder %v4480, 8.507059e+37
  %v4482 = vand.u32 %v4357, 2147483648
  %v4483 = vor.u32 1.1754944e-38, %v4482
  %v4484 = vsel %vm4481, %v4483, %v4479
  %v4485 = vmul.f32 1.0, %v4484
  %v4486 = vrcp.pop %v4358
  %v4487 = vmul.f32 %v4358, %v4486
  %v4488 = vsub.f32 1.0, %v4487
  %v4489 = vmul.f32 %v4486, %v4488
  %v4490 = vadd.f32 %v4486, %v4489
  %vm4491 = vweird.f32 %v4358
  %vm4492 = vweird.f32 %v4486
  %vm4493 = vmor %vm4491, %vm4492
  %v4494 = vsel %vm4493, %v4486, %v4490
  %v4495 = vand.u32 2147483647, %v4358
  %vm4496 = vcmp.eq.f32.partialorder %v4495, 8.507059e+37
  %v4497 = vand.u32 %v4358, 2147483648
  %v4498 = vor.u32 1.1754944e-38, %v4497
  %v4499 = vsel %vm4496, %v4498, %v4494
  %v4500 = vmul.f32 1.0, %v4499
  %v4501 = vrcp.pop %v4359
  %v4502 = vmul.f32 %v4359, %v4501
  %v4503 = vsub.f32 1.0, %v4502
  %v4504 = vmul.f32 %v4501, %v4503
  %v4505 = vadd.f32 %v4501, %v4504
  %vm4506 = vweird.f32 %v4359
  %vm4507 = vweird.f32 %v4501
  %vm4508 = vmor %vm4506, %vm4507
  %v4509 = vsel %vm4508, %v4501, %v4505
  %v4510 = vand.u32 2147483647, %v4359
  %vm4511 = vcmp.eq.f32.partialorder %v4510, 8.507059e+37
  %v4512 = vand.u32 %v4359, 2147483648
  %v4513 = vor.u32 1.1754944e-38, %v4512
  %v4514 = vsel %vm4511, %v4513, %v4509
  %v4515 = vmul.f32 1.0, %v4514
  %v4516 = vrcp.pop %v4360
  %v4517 = vmul.f32 %v4360, %v4516
  %v4518 = vsub.f32 1.0, %v4517
  %v4519 = vmul.f32 %v4516, %v4518
  %v4520 = vadd.f32 %v4516, %v4519
  %vm4521 = vweird.f32 %v4360
  %vm4522 = vweird.f32 %v4516
  %vm4523 = vmor %vm4521, %vm4522
  %v4524 = vsel %vm4523, %v4516, %v4520
  %v4525 = vand.u32 2147483647, %v4360
  %vm4526 = vcmp.eq.f32.partialorder %v4525, 8.507059e+37
  %v4527 = vand.u32 %v4360, 2147483648
  %v4528 = vor.u32 1.1754944e-38, %v4527
  %v4529 = vsel %vm4526, %v4528, %v4524
  %v4530 = vmul.f32 1.0, %v4529
  %v4531 = vrcp.pop %v4361
  %v4532 = vmul.f32 %v4361, %v4531
  %v4533 = vsub.f32 1.0, %v4532
  %v4534 = vmul.f32 %v4531, %v4533
  %v4535 = vadd.f32 %v4531, %v4534
  %vm4536 = vweird.f32 %v4361
  %vm4537 = vweird.f32 %v4531
  %vm4538 = vmor %vm4536, %vm4537
  %v4539 = vsel %vm4538, %v4531, %v4535
  %v4540 = vand.u32 2147483647, %v4361
  %vm4541 = vcmp.eq.f32.partialorder %v4540, 8.507059e+37
  %v4542 = vand.u32 %v4361, 2147483648
  %v4543 = vor.u32 1.1754944e-38, %v4542
  %v4544 = vsel %vm4541, %v4543, %v4539
  %v4545 = vmul.f32 1.0, %v4544
  %v4546 = vrcp.pop %v4362
  %v4547 = vmul.f32 %v4362, %v4546
  %v4548 = vsub.f32 1.0, %v4547
  %v4549 = vmul.f32 %v4546, %v4548
  %v4550 = vadd.f32 %v4546, %v4549
  %vm4551 = vweird.f32 %v4362
  %vm4552 = vweird.f32 %v4546
  %vm4553 = vmor %vm4551, %vm4552
  %v4554 = vsel %vm4553, %v4546, %v4550
  %v4555 = vand.u32 2147483647, %v4362
  %vm4556 = vcmp.eq.f32.partialorder %v4555, 8.507059e+37
  %v4557 = vand.u32 %v4362, 2147483648
  %v4558 = vor.u32 1.1754944e-38, %v4557
  %v4559 = vsel %vm4556, %v4558, %v4554
  %v4560 = vmul.f32 1.0, %v4559
  %v4561 = vrcp.pop %v4363
  %v4562 = vmul.f32 %v4363, %v4561
  %v4563 = vsub.f32 1.0, %v4562
  %v4564 = vmul.f32 %v4561, %v4563
  %v4565 = vadd.f32 %v4561, %v4564
  %vm4566 = vweird.f32 %v4363
  %vm4567 = vweird.f32 %v4561
  %vm4568 = vmor %vm4566, %vm4567
  %v4569 = vsel %vm4568, %v4561, %v4565
  %v4570 = vand.u32 2147483647, %v4363
  %vm4571 = vcmp.eq.f32.partialorder %v4570, 8.507059e+37
  %v4572 = vand.u32 %v4363, 2147483648
  %v4573 = vor.u32 1.1754944e-38, %v4572
  %v4574 = vsel %vm4571, %v4573, %v4569
  %v4575 = vmul.f32 1.0, %v4574
  %v4576 = vrcp.pop %v4364
  %v4577 = vmul.f32 %v4364, %v4576
  %v4578 = vsub.f32 1.0, %v4577
  %v4579 = vmul.f32 %v4576, %v4578
  %v4580 = vadd.f32 %v4576, %v4579
  %vm4581 = vweird.f32 %v4364
  %vm4582 = vweird.f32 %v4576
  %vm4583 = vmor %vm4581, %vm4582
  %v4584 = vsel %vm4583, %v4576, %v4580
  %v4585 = vand.u32 2147483647, %v4364
  %vm4586 = vcmp.eq.f32.partialorder %v4585, 8.507059e+37
  %v4587 = vand.u32 %v4364, 2147483648
  %v4588 = vor.u32 1.1754944e-38, %v4587
  %v4589 = vsel %vm4586, %v4588, %v4584
  %v4590 = vmul.f32 1.0, %v4589
  %v4591 = vrcp.pop %v4365
  %v4592 = vmul.f32 %v4365, %v4591
  %v4593 = vsub.f32 1.0, %v4592
  %v4594 = vmul.f32 %v4591, %v4593
  %v4595 = vadd.f32 %v4591, %v4594
  %vm4596 = vweird.f32 %v4365
  %vm4597 = vweird.f32 %v4591
  %vm4598 = vmor %vm4596, %vm4597
  %v4599 = vsel %vm4598, %v4591, %v4595
  %v4600 = vand.u32 2147483647, %v4365
  %vm4601 = vcmp.eq.f32.partialorder %v4600, 8.507059e+37
  %v4602 = vand.u32 %v4365, 2147483648
  %v4603 = vor.u32 1.1754944e-38, %v4602
  %v4604 = vsel %vm4601, %v4603, %v4599
  %v4605 = vmul.f32 1.0, %v4604
  %v4606 = vmul.f32 %v3950, %v4380
  %v4607 = vmul.f32 %v3951, %v4395
  %v4608 = vmul.f32 %v3952, %v4410
  %v4609 = vmul.f32 %v3953, %v4425
  %v4610 = vmul.f32 %v3954, %v4440
  %v4611 = vmul.f32 %v3955, %v4455
  %v4612 = vmul.f32 %v3956, %v4470
  %v4613 = vmul.f32 %v3957, %v4485
  %v4614 = vmul.f32 %v3958, %v4500
  %v4615 = vmul.f32 %v3959, %v4515
  %v4616 = vmul.f32 %v3960, %v4530
  %v4617 = vmul.f32 %v3961, %v4545
  %v4618 = vmul.f32 %v3962, %v4560
  %v4619 = vmul.f32 %v3963, %v4575
  %v4620 = vmul.f32 %v3964, %v4590
  %v4621 = vmul.f32 %v3965, %v4605
  %v4622 = vlaneseq
  %v4623 = vshrl.u32 %v4622, 7
  %v4624 = vadd.s32 %v4623, 8
  %vm4625 = vcmp.lt.s32.totalorder %v4623, 12
  %vm4626 = vcmp.lt.s32.totalorder %v4624, 12
  %v4627 = vsel %vm4625, 1, 0
  %v4628 = vsel %vm4626, 1, 0
  %vm4629 = vcmp.eq.s32.totalorder %v4627, 1
  %vm4630 = vcmp.eq.s32.totalorder %v4628, 1
  %v4631 = vsel %vm4629, %v4286, -inf
  %v4632 = vsel %vm4629, %v4606, -inf
  %v4633 = vsel %vm4630, %v4287, -inf
  %v4634 = vsel %vm4630, %v4607, -inf
  %v4635 = vsel %vm4629, %v4288, -inf
  %v4636 = vsel %vm4629, %v4608, -inf
  %v4637 = vsel %vm4630, %v4289, -inf
  %v4638 = vsel %vm4630, %v4609, -inf
  %v4639 = vsel %vm4629, %v4290, -inf
  %v4640 = vsel %vm4629, %v4610, -inf
  %v4641 = vsel %vm4630, %v4291, -inf
  %v4642 = vsel %vm4630, %v4611, -inf
  %v4643 = vsel %vm4629, %v4292, -inf
  %v4644 = vsel %vm4629, %v4612, -inf
  %v4645 = vsel %vm4630, %v4293, -inf
  %v4646 = vsel %vm4630, %v4613, -inf
  %v4647 = vsel %vm4629, %v4294, -inf
  %v4648 = vsel %vm4629, %v4614, -inf
  %v4649 = vsel %vm4630, %v4295, -inf
  %v4650 = vsel %vm4630, %v4615, -inf
  %v4651 = vsel %vm4629, %v4296, -inf
  %v4652 = vsel %vm4629, %v4616, -inf
  %v4653 = vsel %vm4630, %v4297, -inf
  %v4654 = vsel %vm4630, %v4617, -inf
  %v4655 = vsel %vm4629, %v4298, -inf
  %v4656 = vsel %vm4629, %v4618, -inf
  %v4657 = vsel %vm4630, %v4299, -inf
  %v4658 = vsel %vm4630, %v4619, -inf
  %v4659 = vsel %vm4629, %v4300, -inf
  %v4660 = vsel %vm4629, %v4620, -inf
  %v4661 = vsel %vm4630, %v4301, -inf
  %v4662 = vsel %vm4630, %v4621, -inf
  %v4663 = vmax.f32 %v4631, %v4633
  %v4664 = vrot.slane %v4663, 4
  %v4665 = vmax.f32 %v4663, %v4664
  %v4666 = vrot.slane %v4665, 2
  %v4667 = vmax.f32 %v4665, %v4666
  %v4668 = vrot.slane %v4667, 1
  %v4669 = vmax.f32 %v4667, %v4668
  %v4670 = vmax.f32 %v4632, %v4634
  %v4671 = vrot.slane %v4670, 4
  %v4672 = vmax.f32 %v4670, %v4671
  %v4673 = vrot.slane %v4672, 2
  %v4674 = vmax.f32 %v4672, %v4673
  %v4675 = vrot.slane %v4674, 1
  %v4676 = vmax.f32 %v4674, %v4675
  %v4677 = vmax.f32 %v4635, %v4637
  %v4678 = vrot.slane %v4677, 4
  %v4679 = vmax.f32 %v4677, %v4678
  %v4680 = vrot.slane %v4679, 2
  %v4681 = vmax.f32 %v4679, %v4680
  %v4682 = vrot.slane %v4681, 1
  %v4683 = vmax.f32 %v4681, %v4682
  %v4684 = vmax.f32 %v4636, %v4638
  %v4685 = vrot.slane %v4684, 4
  %v4686 = vmax.f32 %v4684, %v4685
  %v4687 = vrot.slane %v4686, 2
  %v4688 = vmax.f32 %v4686, %v4687
  %v4689 = vrot.slane %v4688, 1
  %v4690 = vmax.f32 %v4688, %v4689
  %v4691 = vmax.f32 %v4639, %v4641
  %v4692 = vrot.slane %v4691, 4
  %v4693 = vmax.f32 %v4691, %v4692
  %v4694 = vrot.slane %v4693, 2
  %v4695 = vmax.f32 %v4693, %v4694
  %v4696 = vrot.slane %v4695, 1
  %v4697 = vmax.f32 %v4695, %v4696
  %v4698 = vmax.f32 %v4640, %v4642
  %v4699 = vrot.slane %v4698, 4
  %v4700 = vmax.f32 %v4698, %v4699
  %v4701 = vrot.slane %v4700, 2
  %v4702 = vmax.f32 %v4700, %v4701
  %v4703 = vrot.slane %v4702, 1
  %v4704 = vmax.f32 %v4702, %v4703
  %v4705 = vmax.f32 %v4643, %v4645
  %v4706 = vrot.slane %v4705, 4
  %v4707 = vmax.f32 %v4705, %v4706
  %v4708 = vrot.slane %v4707, 2
  %v4709 = vmax.f32 %v4707, %v4708
  %v4710 = vrot.slane %v4709, 1
  %v4711 = vmax.f32 %v4709, %v4710
  %v4712 = vmax.f32 %v4644, %v4646
  %v4713 = vrot.slane %v4712, 4
  %v4714 = vmax.f32 %v4712, %v4713
  %v4715 = vrot.slane %v4714, 2
  %v4716 = vmax.f32 %v4714, %v4715
  %v4717 = vrot.slane %v4716, 1
  %v4718 = vmax.f32 %v4716, %v4717
  %v4719 = vmax.f32 %v4647, %v4649
  %v4720 = vrot.slane %v4719, 4
  %v4721 = vmax.f32 %v4719, %v4720
  %v4722 = vrot.slane %v4721, 2
  %v4723 = vmax.f32 %v4721, %v4722
  %v4724 = vrot.slane %v4723, 1
  %v4725 = vmax.f32 %v4723, %v4724
  %v4726 = vmax.f32 %v4648, %v4650
  %v4727 = vrot.slane %v4726, 4
  %v4728 = vmax.f32 %v4726, %v4727
  %v4729 = vrot.slane %v4728, 2
  %v4730 = vmax.f32 %v4728, %v4729
  %v4731 = vrot.slane %v4730, 1
  %v4732 = vmax.f32 %v4730, %v4731
  %v4733 = vmax.f32 %v4651, %v4653
  %v4734 = vrot.slane %v4733, 4
  %v4735 = vmax.f32 %v4733, %v4734
  %v4736 = vrot.slane %v4735, 2
  %v4737 = vmax.f32 %v4735, %v4736
  %v4738 = vrot.slane %v4737, 1
  %v4739 = vmax.f32 %v4737, %v4738
  %v4740 = vmax.f32 %v4652, %v4654
  %v4741 = vrot.slane %v4740, 4
  %v4742 = vmax.f32 %v4740, %v4741
  %v4743 = vrot.slane %v4742, 2
  %v4744 = vmax.f32 %v4742, %v4743
  %v4745 = vrot.slane %v4744, 1
  %v4746 = vmax.f32 %v4744, %v4745
  %v4747 = vmax.f32 %v4655, %v4657
  %v4748 = vrot.slane %v4747, 4
  %v4749 = vmax.f32 %v4747, %v4748
  %v4750 = vrot.slane %v4749, 2
  %v4751 = vmax.f32 %v4749, %v4750
  %v4752 = vrot.slane %v4751, 1
  %v4753 = vmax.f32 %v4751, %v4752
  %v4754 = vmax.f32 %v4656, %v4658
  %v4755 = vrot.slane %v4754, 4
  %v4756 = vmax.f32 %v4754, %v4755
  %v4757 = vrot.slane %v4756, 2
  %v4758 = vmax.f32 %v4756, %v4757
  %v4759 = vrot.slane %v4758, 1
  %v4760 = vmax.f32 %v4758, %v4759
  %v4761 = vmax.f32 %v4659, %v4661
  %v4762 = vrot.slane %v4761, 4
  %v4763 = vmax.f32 %v4761, %v4762
  %v4764 = vrot.slane %v4763, 2
  %v4765 = vmax.f32 %v4763, %v4764
  %v4766 = vrot.slane %v4765, 1
  %v4767 = vmax.f32 %v4765, %v4766
  %v4768 = vmax.f32 %v4660, %v4662
  %v4769 = vrot.slane %v4768, 4
  %v4770 = vmax.f32 %v4768, %v4769
  %v4771 = vrot.slane %v4770, 2
  %v4772 = vmax.f32 %v4770, %v4771
  %v4773 = vrot.slane %v4772, 1
  %v4774 = vmax.f32 %v4772, %v4773
  %vm4791 = vcmask 1041409
  %v4792 = vsel %vm4791, %v2191, %v2179
  %vm4793 = vcmask 1042434
  %v4794 = vsel %vm4793, %v2203, %v4792
  %vm4795 = vcmask 1043459
  %v4796 = vsel %vm4795, %v2215, %v4794
  %vm4797 = vcmask 1044484
  %v4798 = vsel %vm4797, %v2227, %v4796
  %vm4799 = vcmask 1045509
  %v4800 = vsel %vm4799, %v2239, %v4798
  %vm4801 = vcmask 1046534
  %v4802 = vsel %vm4801, %v2251, %v4800
  %vm4803 = vcmask 1047559
  %v4804 = vsel %vm4803, %v2263, %v4802
  %v4805 = vsel %vm4791, %v2197, %v2185
  %v4806 = vsel %vm4793, %v2209, %v4805
  %v4807 = vsel %vm4795, %v2221, %v4806
  %v4808 = vsel %vm4797, %v2233, %v4807
  %v4809 = vsel %vm4799, %v2245, %v4808
  %v4810 = vsel %vm4801, %v2257, %v4809
  %v4811 = vsel %vm4803, %v2269, %v4810
  %v4830 = vsel %vm4791, %v4683, %v4669
  %v4831 = vsel %vm4793, %v4697, %v4830
  %v4832 = vsel %vm4795, %v4711, %v4831
  %v4833 = vsel %vm4797, %v4725, %v4832
  %v4834 = vsel %vm4799, %v4739, %v4833
  %v4835 = vsel %vm4801, %v4753, %v4834
  %v4836 = vsel %vm4803, %v4767, %v4835
  %v4837 = vsel %vm4791, %v4690, %v4676
  %v4838 = vsel %vm4793, %v4704, %v4837
  %v4839 = vsel %vm4795, %v4718, %v4838
  %v4840 = vsel %vm4797, %v4732, %v4839
  %v4841 = vsel %vm4799, %v4746, %v4840
  %v4842 = vsel %vm4801, %v4760, %v4841
  %v4843 = vsel %vm4803, %v4774, %v4842
  %v4846 = vpack.c.bf16 %v4804, %v4804
  %v4847 = vpack.c.bf16 %v4811, %v4811
  %v4848 = vpack.c.bf16 %v4836, %v4836
  %v4849 = vpack.c.bf16 %v4843, %v4843
  %v4850 = vld [vmem:[%s5] sm:$0xf]
  %v4851 = vld [vmem:[%s5 + $0x4] sm:$0xf]
  %v4852 = vld [vmem:[%s5 + $0x8] sm:$0xf]
  %v4853 = vld [vmem:[%s5 + $0xc] sm:$0xf]
  %v4854 = vld [vmem:[%s5 + $0x10] sm:$0xf]
  %v4855 = vld [vmem:[%s5 + $0x14] sm:$0xf]
  %v4856 = vld [vmem:[%s5 + $0x18] sm:$0xf]
  %v4857 = vld [vmem:[%s5 + $0x1c] sm:$0xf]
  %v4858 = vld [vmem:[%s5 + $0x20] sm:$0xf]
  %v4859 = vld [vmem:[%s5 + $0x24] sm:$0xf]
  %v4860 = vld [vmem:[%s5 + $0x28] sm:$0xf]
  %v4861 = vld [vmem:[%s5 + $0x2c] sm:$0xf]
  %v4862 = vld [vmem:[%s5 + $0x30] sm:$0xf]
  %v4863 = vld [vmem:[%s5 + $0x34] sm:$0xf]
  %v4864 = vld [vmem:[%s5 + $0x38] sm:$0xf]
  %v4865 = vld [vmem:[%s5 + $0x3c] sm:$0xf]
  %v4866 = vld [vmem:[%s5 + $0x40] sm:$0xf]
  %v4867 = vld [vmem:[%s5 + $0x44] sm:$0xf]
  %v4868 = vld [vmem:[%s5 + $0x48] sm:$0xf]
  %v4869 = vld [vmem:[%s5 + $0x4c] sm:$0xf]
  %v4870 = vld [vmem:[%s5 + $0x50] sm:$0xf]
  %v4871 = vld [vmem:[%s5 + $0x54] sm:$0xf]
  %v4872 = vld [vmem:[%s5 + $0x58] sm:$0xf]
  %v4873 = vld [vmem:[%s5 + $0x5c] sm:$0xf]
  %v4874 = vld [vmem:[%s5 + $0x60] sm:$0xf]
  %v4875 = vld [vmem:[%s5 + $0x64] sm:$0xf]
  %v4876 = vld [vmem:[%s5 + $0x68] sm:$0xf]
  %v4877 = vld [vmem:[%s5 + $0x6c] sm:$0xf]
  %v4878 = vld [vmem:[%s5 + $0x70] sm:$0xf]
  %v4879 = vld [vmem:[%s5 + $0x74] sm:$0xf]
  %v4880 = vld [vmem:[%s5 + $0x78] sm:$0xf]
  %v4881 = vld [vmem:[%s5 + $0x7c] sm:$0xf]
  %v4882 = vld [vmem:[%s5 + $0x80] sm:$0xf]
  %v4883 = vld [vmem:[%s5 + $0x84] sm:$0xf]
  %v4884 = vld [vmem:[%s5 + $0x88] sm:$0xf]
  %v4885 = vld [vmem:[%s5 + $0x8c] sm:$0xf]
  %v4886 = vld [vmem:[%s5 + $0x90] sm:$0xf]
  %v4887 = vld [vmem:[%s5 + $0x94] sm:$0xf]
  %v4888 = vld [vmem:[%s5 + $0x98] sm:$0xf]
  %v4889 = vld [vmem:[%s5 + $0x9c] sm:$0xf]
  %v4890 = vld [vmem:[%s5 + $0xa0] sm:$0xf]
  %v4891 = vld [vmem:[%s5 + $0xa4] sm:$0xf]
  %v4892 = vld [vmem:[%s5 + $0xa8] sm:$0xf]
  %v4893 = vld [vmem:[%s5 + $0xac] sm:$0xf]
  %v4894 = vld [vmem:[%s5 + $0xb0] sm:$0xf]
  %v4895 = vld [vmem:[%s5 + $0xb4] sm:$0xf]
  %v4896 = vld [vmem:[%s5 + $0xb8] sm:$0xf]
  %v4897 = vld [vmem:[%s5 + $0xbc] sm:$0xf]
  %v4898 = vld [vmem:[%s5 + $0xc0] sm:$0xf]
  %v4899 = vld [vmem:[%s5 + $0xc4] sm:$0xf]
  %v4900 = vld [vmem:[%s5 + $0xc8] sm:$0xf]
  %v4901 = vld [vmem:[%s5 + $0xcc] sm:$0xf]
  %v4902 = vld [vmem:[%s5 + $0xd0] sm:$0xf]
  %v4903 = vld [vmem:[%s5 + $0xd4] sm:$0xf]
  %v4904 = vld [vmem:[%s5 + $0xd8] sm:$0xf]
  %v4905 = vld [vmem:[%s5 + $0xdc] sm:$0xf]
  %v4906 = vld [vmem:[%s5 + $0xe0] sm:$0xf]
  %v4907 = vld [vmem:[%s5 + $0xe4] sm:$0xf]
  %v4908 = vld [vmem:[%s5 + $0xe8] sm:$0xf]
  %v4909 = vld [vmem:[%s5 + $0xec] sm:$0xf]
  %v4910 = vld [vmem:[%s5 + $0xf0] sm:$0xf]
  %v4911 = vld [vmem:[%s5 + $0xf4] sm:$0xf]
  %v4912 = vld [vmem:[%s5 + $0xf8] sm:$0xf]
  %v4913 = vld [vmem:[%s5 + $0xfc] sm:$0xf]
  %v4914 = vld [vmem:[%s6] sm:$0x1]
  %v4916 = vperm.slane %v4914, 0
  %v4982 = vunpack.c.l.b16 %v4850
  %v4983 = vunpack.c.l.b16 %v4851
  %v4984 = vunpack.c.l.b16 %v4852
  %v4985 = vunpack.c.l.b16 %v4853
  %v4986 = vunpack.c.l.b16 %v4854
  %v4987 = vunpack.c.l.b16 %v4855
  %v4988 = vunpack.c.l.b16 %v4856
  %v4989 = vunpack.c.l.b16 %v4857
  %v4990 = vunpack.c.l.b16 %v4858
  %v4991 = vunpack.c.l.b16 %v4859
  %v4992 = vunpack.c.l.b16 %v4860
  %v4993 = vunpack.c.l.b16 %v4861
  %v4994 = vunpack.c.l.b16 %v4862
  %v4995 = vunpack.c.l.b16 %v4863
  %v4996 = vunpack.c.l.b16 %v4864
  %v4997 = vunpack.c.l.b16 %v4865
  %v4998 = vunpack.c.l.b16 %v4866
  %v4999 = vunpack.c.l.b16 %v4867
  %v5000 = vunpack.c.l.b16 %v4868
  %v5001 = vunpack.c.l.b16 %v4869
  %v5002 = vunpack.c.l.b16 %v4870
  %v5003 = vunpack.c.l.b16 %v4871
  %v5004 = vunpack.c.l.b16 %v4872
  %v5005 = vunpack.c.l.b16 %v4873
  %v5006 = vunpack.c.l.b16 %v4874
  %v5007 = vunpack.c.l.b16 %v4875
  %v5008 = vunpack.c.l.b16 %v4876
  %v5009 = vunpack.c.l.b16 %v4877
  %v5010 = vunpack.c.l.b16 %v4878
  %v5011 = vunpack.c.l.b16 %v4879
  %v5012 = vunpack.c.l.b16 %v4880
  %v5013 = vunpack.c.l.b16 %v4881
  %v5014 = vunpack.c.l.b16 %v4882
  %v5015 = vunpack.c.l.b16 %v4883
  %v5016 = vunpack.c.l.b16 %v4884
  %v5017 = vunpack.c.l.b16 %v4885
  %v5018 = vunpack.c.l.b16 %v4886
  %v5019 = vunpack.c.l.b16 %v4887
  %v5020 = vunpack.c.l.b16 %v4888
  %v5021 = vunpack.c.l.b16 %v4889
  %v5022 = vunpack.c.l.b16 %v4890
  %v5023 = vunpack.c.l.b16 %v4891
  %v5024 = vunpack.c.l.b16 %v4892
  %v5025 = vunpack.c.l.b16 %v4893
  %v5026 = vunpack.c.l.b16 %v4894
  %v5027 = vunpack.c.l.b16 %v4895
  %v5028 = vunpack.c.l.b16 %v4896
  %v5029 = vunpack.c.l.b16 %v4897
  %v5030 = vunpack.c.l.b16 %v4898
  %v5031 = vunpack.c.l.b16 %v4899
  %v5032 = vunpack.c.l.b16 %v4900
  %v5033 = vunpack.c.l.b16 %v4901
  %v5034 = vunpack.c.l.b16 %v4902
  %v5035 = vunpack.c.l.b16 %v4903
  %v5036 = vunpack.c.l.b16 %v4904
  %v5037 = vunpack.c.l.b16 %v4905
  %v5038 = vunpack.c.l.b16 %v4906
  %v5039 = vunpack.c.l.b16 %v4907
  %v5040 = vunpack.c.l.b16 %v4908
  %v5041 = vunpack.c.l.b16 %v4909
  %v5042 = vunpack.c.l.b16 %v4910
  %v5043 = vunpack.c.l.b16 %v4911
  %v5044 = vunpack.c.l.b16 %v4912
  %v5045 = vunpack.c.l.b16 %v4913
  %v5046 = vpack.c.b16 %v4983, %v4982
  %v5047 = vpack.c.b16 %v4985, %v4984
  %v5048 = vpack.c.b16 %v4987, %v4986
  %v5049 = vpack.c.b16 %v4989, %v4988
  %v5050 = vpack.c.b16 %v4991, %v4990
  %v5051 = vpack.c.b16 %v4993, %v4992
  %v5052 = vpack.c.b16 %v4995, %v4994
  %v5053 = vpack.c.b16 %v4997, %v4996
  %v5054 = vpack.c.b16 %v4999, %v4998
  %v5055 = vpack.c.b16 %v5001, %v5000
  %v5056 = vpack.c.b16 %v5003, %v5002
  %v5057 = vpack.c.b16 %v5005, %v5004
  %v5058 = vpack.c.b16 %v5007, %v5006
  %v5059 = vpack.c.b16 %v5009, %v5008
  %v5060 = vpack.c.b16 %v5011, %v5010
  %v5061 = vpack.c.b16 %v5013, %v5012
  %v5062 = vpack.c.b16 %v5015, %v5014
  %v5063 = vpack.c.b16 %v5017, %v5016
  %v5064 = vpack.c.b16 %v5019, %v5018
  %v5065 = vpack.c.b16 %v5021, %v5020
  %v5066 = vpack.c.b16 %v5023, %v5022
  %v5067 = vpack.c.b16 %v5025, %v5024
  %v5068 = vpack.c.b16 %v5027, %v5026
  %v5069 = vpack.c.b16 %v5029, %v5028
  %v5070 = vpack.c.b16 %v5031, %v5030
  %v5071 = vpack.c.b16 %v5033, %v5032
  %v5072 = vpack.c.b16 %v5035, %v5034
  %v5073 = vpack.c.b16 %v5037, %v5036
  %v5074 = vpack.c.b16 %v5039, %v5038
  %v5075 = vpack.c.b16 %v5041, %v5040
  %v5076 = vpack.c.b16 %v5043, %v5042
  %v5077 = vpack.c.b16 %v5045, %v5044
  %5110 = vmatpush.bf16.msra.mxu0 %v5053
  %5111 = vmatpush.bf16.msra.mxu0 %v5052
  %5112 = vmatpush.bf16.msra.mxu0 %v5051
  %5113 = vmatpush.bf16.msra.mxu0 %v5050
  %5114 = vmatpush.bf16.msra.mxu0 %v5049
  %5115 = vmatpush.bf16.msra.mxu0 %v5048
  %5116 = vmatpush.bf16.msra.mxu0 %v5047
  %5117 = vmatpush.bf16.msra.mxu0 %v5046
  %5118 = vmatmul.bf16.gmra.mxu0 %v4846
  %v5119 = vpop.f32.mrf.mxu0
  %v5120 = vadd.f32 %v4916, %v5119
  %v5121 = vpop.f32.mrf.mxu0
  %5122 = vdwg.mxu0
  %5123 = vmatpush.bf16.msra.mxu0 %v5061
  %5124 = vmatpush.bf16.msra.mxu0 %v5060
  %5125 = vmatpush.bf16.msra.mxu0 %v5059
  %5126 = vmatpush.bf16.msra.mxu0 %v5058
  %5127 = vmatpush.bf16.msra.mxu0 %v5057
  %5128 = vmatpush.bf16.msra.mxu0 %v5056
  %5129 = vmatpush.bf16.msra.mxu0 %v5055
  %5130 = vmatpush.bf16.msra.mxu0 %v5054
  %5131 = vmatmul.bf16.gmra.mxu0 %v4847
  %v5132 = vpop.f32.mrf.mxu0
  %v5133 = vadd.f32 %v5120, %v5132
  %v5134 = vpop.f32.mrf.mxu0
  %5135 = vdwg.mxu0
  %5136 = vmatpush.bf16.msra.mxu0 %v5069
  %5137 = vmatpush.bf16.msra.mxu0 %v5068
  %5138 = vmatpush.bf16.msra.mxu0 %v5067
  %5139 = vmatpush.bf16.msra.mxu0 %v5066
  %5140 = vmatpush.bf16.msra.mxu0 %v5065
  %5141 = vmatpush.bf16.msra.mxu0 %v5064
  %5142 = vmatpush.bf16.msra.mxu0 %v5063
  %5143 = vmatpush.bf16.msra.mxu0 %v5062
  %5144 = vmatmul.bf16.gmra.mxu0 %v4848
  %v5145 = vpop.f32.mrf.mxu0
  %v5146 = vadd.f32 %v5133, %v5145
  %v5147 = vpop.f32.mrf.mxu0
  %5148 = vdwg.mxu0
  %5149 = vmatpush.bf16.msra.mxu0 %v5077
  %5150 = vmatpush.bf16.msra.mxu0 %v5076
  %5151 = vmatpush.bf16.msra.mxu0 %v5075
  %5152 = vmatpush.bf16.msra.mxu0 %v5074
  %5153 = vmatpush.bf16.msra.mxu0 %v5073
  %5154 = vmatpush.bf16.msra.mxu0 %v5072
  %5155 = vmatpush.bf16.msra.mxu0 %v5071
  %5156 = vmatpush.bf16.msra.mxu0 %v5070
  %5157 = vmatmul.bf16.gmra.mxu0 %v4849
  %v5158 = vpop.f32.mrf.mxu0
  %v5159 = vadd.f32 %v5146, %v5158
  %v5160 = vpop.f32.mrf.mxu0
  %5161 = vdwg.mxu0
  %v5162 = vmax.f32 %v5159, 0.0
  %v5163 = vpack.c.bf16 %v5162, %v5162
  %v5164 = vld [vmem:[%s7] sm:$0xf]
  %v5165 = vld [vmem:[%s7 + $0x4] sm:$0xf]
  %v5166 = vld [vmem:[%s7 + $0x8] sm:$0xf]
  %v5167 = vld [vmem:[%s7 + $0xc] sm:$0xf]
  %v5168 = vld [vmem:[%s7 + $0x10] sm:$0xf]
  %v5169 = vld [vmem:[%s7 + $0x14] sm:$0xf]
  %v5170 = vld [vmem:[%s7 + $0x18] sm:$0xf]
  %v5171 = vld [vmem:[%s7 + $0x1c] sm:$0xf]
  %v5172 = vld [vmem:[%s7 + $0x20] sm:$0xf]
  %v5173 = vld [vmem:[%s7 + $0x24] sm:$0xf]
  %v5174 = vld [vmem:[%s7 + $0x28] sm:$0xf]
  %v5175 = vld [vmem:[%s7 + $0x2c] sm:$0xf]
  %v5176 = vld [vmem:[%s7 + $0x30] sm:$0xf]
  %v5177 = vld [vmem:[%s7 + $0x34] sm:$0xf]
  %v5178 = vld [vmem:[%s7 + $0x38] sm:$0xf]
  %v5179 = vld [vmem:[%s7 + $0x3c] sm:$0xf]
  %v5180 = vld [vmem:[%s8] sm:$0x1]
  %v5182 = vperm.slane %v5180, 0
  %v5200 = vunpack.c.l.b16 %v5164
  %v5201 = vunpack.c.l.b16 %v5165
  %v5202 = vunpack.c.l.b16 %v5166
  %v5203 = vunpack.c.l.b16 %v5167
  %v5204 = vunpack.c.l.b16 %v5168
  %v5205 = vunpack.c.l.b16 %v5169
  %v5206 = vunpack.c.l.b16 %v5170
  %v5207 = vunpack.c.l.b16 %v5171
  %v5208 = vunpack.c.l.b16 %v5172
  %v5209 = vunpack.c.l.b16 %v5173
  %v5210 = vunpack.c.l.b16 %v5174
  %v5211 = vunpack.c.l.b16 %v5175
  %v5212 = vunpack.c.l.b16 %v5176
  %v5213 = vunpack.c.l.b16 %v5177
  %v5214 = vunpack.c.l.b16 %v5178
  %v5215 = vunpack.c.l.b16 %v5179
  %v5216 = vpack.c.b16 %v5201, %v5200
  %v5217 = vpack.c.b16 %v5203, %v5202
  %v5218 = vpack.c.b16 %v5205, %v5204
  %v5219 = vpack.c.b16 %v5207, %v5206
  %v5220 = vpack.c.b16 %v5209, %v5208
  %v5221 = vpack.c.b16 %v5211, %v5210
  %v5222 = vpack.c.b16 %v5213, %v5212
  %v5223 = vpack.c.b16 %v5215, %v5214
  %5232 = vmatpush.bf16.msra.mxu0 %v5223
  %5233 = vmatpush.bf16.msra.mxu0 %v5222
  %5234 = vmatpush.bf16.msra.mxu0 %v5221
  %5235 = vmatpush.bf16.msra.mxu0 %v5220
  %5236 = vmatpush.bf16.msra.mxu0 %v5219
  %5237 = vmatpush.bf16.msra.mxu0 %v5218
  %5238 = vmatpush.bf16.msra.mxu0 %v5217
  %5239 = vmatpush.bf16.msra.mxu0 %v5216
  %5240 = vmatmul.bf16.gmra.mxu0 %v5163
  %v5241 = vpop.f32.mrf.mxu0
  %v5242 = vadd.f32 %v5182, %v5241
  %v5243 = vpop.f32.mrf.mxu0
  %5244 = vdwg.mxu0
  %5245 = vst [vmem:[%s9] sm:$0xff] %v5242
  // Predicated region
  $region38: #{cate1_classifier_forward.1} parent=0 // pred_check
    _
  $region39: #{cate1_classifier_forward.1} parent=0 // pred_check_branch
    %5247 = sbr.rel (0) target = $region41
  $region40: #{cate1_classifier_forward.1} parent=0 // pred_region
    _
  $region41: #{cate1_classifier_forward.1} parent=0 // pred_fallthru
    _
  // Predicated region
  $region42: #{cate1_classifier_forward.1} parent=0 // pred_check
    _
  $region43: #{cate1_classifier_forward.1} parent=0 // pred_check_branch
    %5249 = sbr.rel (0) target = $region45
  $region44: #{cate1_classifier_forward.1} parent=0 // pred_region
    _
  $region45: #{cate1_classifier_forward.1} parent=0 // pred_fallthru
    _

</llo_original>
